<compile_context>
chip_gen: v5e
topology: v5e:2x2
jax: 0.10.0
libtpu: 0.0.40
codegen_flags: <defaults>
</compile_context>

<pallas_src>
import functools

import jax
import jax.numpy as jnp
from jax import lax
from jax.experimental import pallas as pl
from jax.experimental.pallas import tpu as pltpu


def _make_bidir_kernel(n_x, tc, hidden, nc, t_real, masked):
    """Kernel for one bidirectional LSTM layer (both directions fused).

    Ref order (inputs, outputs, scratch):
      inputs : x_fwd[0..n_x-1] (tc,B,D_k) bf16  -- forward-time chunk views
               x_bwd[0..n_x-1] (tc,B,D_k) bf16  -- reverse-time chunk views (same arrays)
               w_ih[0..n_x-1]  (2,D_k,4H) bf16  -- per-stream input weights, cols [i,f,o,g]
               w_hh            (2,H,4H)   bf16  -- recurrent weights, cols [i,f,o,g]
               b               (2,1,4H)   f32   -- fused b_ih + b_hh
      outputs: out_f (tc,B,H) bf16, out_b (tc,B,H) bf16, h_N (2,B,H) f32, c_N (2,B,H) f32
      scratch: hf, cf, hb, cb (B,H) f32 carries; gf, gb (tc,B,4H) f32 ih-projections
    """
    H = hidden

    def kernel(*refs):
        xs_f = refs[0:n_x]
        xs_b = refs[n_x:2 * n_x]
        w_ih = refs[2 * n_x:3 * n_x]
        w_hh_ref = refs[3 * n_x]
        b_ref = refs[3 * n_x + 1]
        out_f_ref, out_b_ref, hN_ref, cN_ref = refs[3 * n_x + 2:3 * n_x + 6]
        hf_sc, cf_sc, hb_sc, cb_sc, gf_sc, gb_sc = refs[3 * n_x + 6:]

        chunk = pl.program_id(0)
        B = hf_sc.shape[0]

        @pl.when(chunk == 0)
        def _():
            # init_hidden(): zeros for h_0 and c_0, both directions
            hf_sc[...] = jnp.zeros_like(hf_sc)
            cf_sc[...] = jnp.zeros_like(cf_sc)
            hb_sc[...] = jnp.zeros_like(hb_sc)
            cb_sc[...] = jnp.zeros_like(cb_sc)

        # ---- chunk-level input projection: one big MXU matmul per stream per
        # direction (M = tc*B), bias folded in once; staged into VMEM scratch.
        gih_f = b_ref[0]                                   # (1, 4H) f32, broadcasts
        gih_b = b_ref[1]
        for k in range(n_x):
            dk = xs_f[k].shape[-1]
            xf = xs_f[k][...].reshape(tc * B, dk)          # already bf16
            xb = xs_b[k][...].reshape(tc * B, dk)
            gih_f = gih_f + jnp.dot(xf, w_ih[k][0],
                                    preferred_element_type=jnp.float32)
            gih_b = gih_b + jnp.dot(xb, w_ih[k][1],
                                    preferred_element_type=jnp.float32)
        gf_sc[...] = gih_f.reshape(tc, B, 4 * H)
        gb_sc[...] = gih_b.reshape(tc, B, 4 * H)

        # loop-invariant recurrent weights, hoisted out of the time loop
        whh_f = w_hh_ref[0]                                # (H, 4H) bf16
        whh_b = w_hh_ref[1]

        def cell(g_pre, h_prev, c_prev, whh):
            # only the small HxH-scale recurrent matmul stays in the time loop
            gates = g_pre + jnp.dot(h_prev.astype(jnp.bfloat16), whh,
                                    preferred_element_type=jnp.float32)
            sig = jax.nn.sigmoid(gates[:, :3 * H])         # [i | f | o] one EUP slab
            g_t = jnp.tanh(gates[:, 3 * H:])
            i_g = sig[:, 0 * H:1 * H]
            f_g = sig[:, 1 * H:2 * H]
            o_g = sig[:, 2 * H:3 * H]
            c_new = f_g * c_prev + i_g * g_t
            h_new = o_g * jnp.tanh(c_new)
            return h_new, c_new

        def step(j, carry):
            h_f, c_f, h_b, c_b = carry
            jr = tc - 1 - j                                # bwd walks the chunk backwards
            nh_f, nc_f = cell(gf_sc[j], h_f, c_f, whh_f)
            nh_b, nc_b = cell(gb_sc[jr], h_b, c_b, whh_b)
            if masked:
                # padded timesteps (global t >= t_real) must not advance the recurrence
                vf = (chunk * tc + j) < t_real
                vb = ((nc - 1 - chunk) * tc + jr) < t_real
                nh_f = jnp.where(vf, nh_f, h_f)
                nc_f = jnp.where(vf, nc_f, c_f)
                nh_b = jnp.where(vb, nh_b, h_b)
                nc_b = jnp.where(vb, nc_b, c_b)
            out_f_ref[j] = nh_f.astype(out_f_ref.dtype)
            out_b_ref[jr] = nh_b.astype(out_b_ref.dtype)
            return nh_f, nc_f, nh_b, nc_b

        carry0 = (hf_sc[...], cf_sc[...], hb_sc[...], cb_sc[...])
        h_f, c_f, h_b, c_b = lax.fori_loop(0, tc, step, carry0,
                                           unroll=min(tc, 8))

        # persist carries for the next chunk
        hf_sc[...] = h_f
        cf_sc[...] = c_f
        hb_sc[...] = h_b
        cb_sc[...] = c_b

        @pl.when(chunk == pl.num_programs(0) - 1)
        def _():
            hN_ref[0] = h_f
            hN_ref[1] = h_b
            cN_ref[0] = c_f
            cN_ref[1] = c_b

    return kernel


def _nbytes(shape, dtype):
    n = 1
    for s in shape:
        n *= int(s)
    return n * jnp.dtype(dtype).itemsize


def _bidir_layer(xs, w_ih_parts, w_hh, b, hidden, tc, t_real):
    """One bidirectional layer.  xs: list of time-major (T_pad,B,D_k) bf16 streams
    (1 for layer 0, 2 = [out_f, out_b] for deeper layers; concatenated in-kernel).
    Returns out_f, out_b (T_pad,B,H) bf16 and h_N, c_N (2,B,H) f32."""
    T_pad, B = xs[0].shape[0], xs[0].shape[1]
    H = hidden
    assert T_pad % tc == 0
    nc = T_pad // tc
    n_x = len(xs)
    masked = (T_pad != t_real)

    in_specs = []
    for a in xs:       # forward-time chunk views (fwd direction)
        in_specs.append(pl.BlockSpec((tc, B, a.shape[2]), lambda c: (c, 0, 0)))
    for a in xs:       # reverse-time chunk views (bwd) -- reversal is free address math
        in_specs.append(pl.BlockSpec((tc, B, a.shape[2]),
                                     lambda c, _nc=nc: (_nc - 1 - c, 0, 0)))
    for w in w_ih_parts:   # resident weights (grid-invariant index map)
        in_specs.append(pl.BlockSpec(w.shape, lambda c: (0, 0, 0)))
    in_specs.append(pl.BlockSpec(w_hh.shape, lambda c: (0, 0, 0)))
    in_specs.append(pl.BlockSpec(b.shape, lambda c: (0, 0, 0)))

    out_shapes = (
        jax.ShapeDtypeStruct((T_pad, B, H), jnp.bfloat16),   # out_f
        jax.ShapeDtypeStruct((T_pad, B, H), jnp.bfloat16),   # out_b (forward-time order)
        jax.ShapeDtypeStruct((2, B, H), jnp.float32),        # h_N [fwd, bwd]
        jax.ShapeDtypeStruct((2, B, H), jnp.float32),        # c_N [fwd, bwd]
    )
    out_specs = [
        pl.BlockSpec((tc, B, H), lambda c: (c, 0, 0)),
        pl.BlockSpec((tc, B, H), lambda c, _nc=nc: (_nc - 1 - c, 0, 0)),
        pl.BlockSpec((2, B, H), lambda c: (0, 0, 0)),
        pl.BlockSpec((2, B, H), lambda c: (0, 0, 0)),
    ]

    scratch_shapes = (
        [pltpu.VMEM((B, H), jnp.float32) for _ in range(4)]        # h/c carries
        + [pltpu.VMEM((tc, B, 4 * H), jnp.float32) for _ in range(2)])  # ih projections

    # explicit VMEM budget from the actual block sizes (2x for double-buffered
    # streams / weights, plus headroom for compiler-internal scratch)
    stream = sum(2 * 2 * _nbytes((tc, B, a.shape[2]), a.dtype) for a in xs)
    weights = (sum(_nbytes(w.shape, w.dtype) for w in w_ih_parts)
               + _nbytes(w_hh.shape, w_hh.dtype) + _nbytes(b.shape, b.dtype))
    outs = (2 * 2 * _nbytes((tc, B, H), jnp.bfloat16)
            + 2 * 2 * _nbytes((2, B, H), jnp.float32))
    scratch = (4 * _nbytes((B, H), jnp.float32)
               + 2 * _nbytes((tc, B, 4 * H), jnp.float32))
    vmem_limit = int(min(64 * 1024 * 1024,
                         max(16 * 1024 * 1024,
                             2 * (stream + 2 * weights + outs + scratch) + (4 << 20))))

    grid_spec = pltpu.PrefetchScalarGridSpec(
        num_scalar_prefetch=0,
        grid=(nc,),
        in_specs=in_specs,
        out_specs=out_specs,
        scratch_shapes=scratch_shapes,
    )

    return pl.pallas_call(
        _make_bidir_kernel(n_x, tc, H, nc, t_real, masked),
        out_shape=out_shapes,
        grid_spec=grid_spec,
        compiler_params=pltpu.CompilerParams(
            dimension_semantics=("arbitrary",),       # time recurrence is sequential
            vmem_limit_bytes=vmem_limit),
    )(*xs, *xs, *w_ih_parts, w_hh, b)


def init_lstm_params(key, in_dim, hidden_dim, n_layer, bidirectional=True):
    """PyTorch-style uniform(-1/sqrt(H), 1/sqrt(H)) init, packed for the kernel.
    Per layer: (w_ih_parts: tuple of (2, D_k, 4H) bf16, w_hh (2, H, 4H) bf16,
    b (2, 1, 4H) f32). Gate columns reordered [i,f,g,o] -> [i,f,o,g]."""
    assert bidirectional, "this kernel implements the bidirectional module"
    H = hidden_dim
    bound = 1.0 / (H ** 0.5)

    def reorder_cols(w):   # columns [i,f,g,o] -> [i,f,o,g]
        return jnp.concatenate(
            [w[:, 0:2 * H], w[:, 3 * H:4 * H], w[:, 2 * H:3 * H]], axis=1)

    params = []
    for layer in range(n_layer):
        d_in = in_dim if layer == 0 else 2 * H
        w_ih_dirs, w_hh_dirs, b_dirs = [], [], []
        for _ in range(2):   # fwd, bwd
            key, k1, k2, k3, k4 = jax.random.split(key, 5)
            w_ih = jax.random.uniform(k1, (4 * H, d_in), jnp.float32, -bound, bound)
            w_hh = jax.random.uniform(k2, (4 * H, H), jnp.float32, -bound, bound)
            b_ih = jax.random.uniform(k3, (4 * H,), jnp.float32, -bound, bound)
            b_hh = jax.random.uniform(k4, (4 * H,), jnp.float32, -bound, bound)
            w_ih_dirs.append(reorder_cols(w_ih.T).astype(jnp.bfloat16))   # (d_in, 4H)
            w_hh_dirs.append(reorder_cols(w_hh.T).astype(jnp.bfloat16))   # (H, 4H)
            bias = b_ih + b_hh
            bias = jnp.concatenate(
                [bias[0:2 * H], bias[3 * H:4 * H], bias[2 * H:3 * H]])
            b_dirs.append(bias[None, :].astype(jnp.float32))
        w_ih_full = jnp.stack(w_ih_dirs, axis=0)          # (2, d_in, 4H)
        w_hh_l = jnp.stack(w_hh_dirs, axis=0)             # (2, H, 4H)
        b_l = jnp.stack(b_dirs, axis=0)                   # (2, 1, 4H)
        if layer == 0:
            w_ih_parts = (w_ih_full,)                     # one input stream (x)
        else:
            # split by input stream: rows [0:H] consume out_f, rows [H:2H] out_b
            w_ih_parts = (w_ih_full[:, :H, :], w_ih_full[:, H:, :])
        params.append((w_ih_parts, w_hh_l, b_l))
    return params


@functools.partial(jax.jit, static_argnums=(2,))
def lstm_forward(x, params, n_layer):
    """x: (B, T, in_dim) batch_first. Returns (output, (h_n, c_n)) like nn.LSTM
    with zero initial hidden state (the module's init_hidden)."""
    hidden = params[0][1].shape[-1] // 4          # w_hh: (2, H, 4H)
    _, T, _ = x.shape
    x_tm = jnp.transpose(x, (1, 0, 2)).astype(jnp.bfloat16)   # time-major, bf16, once
    max_chunk = 32
    tc = min(max_chunk, T)                        # timesteps per grid step
    t_pad = ((T + tc - 1) // tc) * tc             # pad T instead of tc=1 fallback
    if t_pad != T:
        x_tm = jnp.pad(x_tm, ((0, t_pad - T), (0, 0), (0, 0)))

    xs = [x_tm]
    h_finals, c_finals = [], []
    for layer in range(n_layer):
        w_ih_parts, w_hh, b = params[layer]
        out_f, out_b, h_n_l, c_n_l = _bidir_layer(xs, w_ih_parts, w_hh, b, hidden,
                                                  tc=tc, t_real=T)
        xs = [out_f, out_b]          # next layer concatenates features in-kernel
        h_finals.append(h_n_l)
        c_finals.append(c_n_l)

    output = jnp.concatenate(xs, axis=-1)[:T]               # (T, B, 2H), only once
    output = jnp.transpose(output, (1, 0, 2)).astype(jnp.float32)   # batch_first
    h_n = jnp.concatenate(h_finals, axis=0)                 # (2*n_layer, B, H)
    c_n = jnp.concatenate(c_finals, axis=0)
    return output, (h_n, c_n)


if __name__ == "__main__":
    # small shapes consistent with the module's forward
    batch, seq, in_dim, hidden, n_layer = 2, 8, 16, 32, 2

    key = jax.random.PRNGKey(0)
    key, kx = jax.random.split(key)
    x = jax.random.normal(kx, (batch, seq, in_dim), dtype=jnp.float32)

    params = init_lstm_params(key, in_dim, hidden, n_layer, bidirectional=True)

    output, (h_n, c_n) = lstm_forward(x, params, n_layer)
    jax.block_until_ready((output, h_n, c_n))

    assert output.shape == (batch, seq, 2 * hidden)
    assert h_n.shape == (2 * n_layer, batch, hidden)
    assert c_n.shape == (2 * n_layer, batch, hidden)
    print("KERNEL_OK")
</pallas_src>

<mosaic_0001>
module attributes {stable_mosaic.version = 11 : i64} {
  func.func @kernel(%arg0: i32, %arg1: memref<8x2x16xbf16, #tpu.memory_space<vmem>>, %arg2: memref<8x2x16xbf16, #tpu.memory_space<vmem>>, %arg3: memref<2x16x128xbf16, #tpu.memory_space<vmem>>, %arg4: memref<2x32x128xbf16, #tpu.memory_space<vmem>>, %arg5: memref<2x1x128xf32, #tpu.memory_space<vmem>>, %arg6: memref<8x2x32xbf16, #tpu.memory_space<vmem>>, %arg7: memref<8x2x32xbf16, #tpu.memory_space<vmem>>, %arg8: memref<2x2x32xf32, #tpu.memory_space<vmem>>, %arg9: memref<2x2x32xf32, #tpu.memory_space<vmem>>, %arg10: memref<2x32xf32, #tpu.memory_space<vmem>>, %arg11: memref<2x32xf32, #tpu.memory_space<vmem>>, %arg12: memref<2x32xf32, #tpu.memory_space<vmem>>, %arg13: memref<2x32xf32, #tpu.memory_space<vmem>>, %arg14: memref<8x2x128xf32, #tpu.memory_space<vmem>>, %arg15: memref<8x2x128xf32, #tpu.memory_space<vmem>>) attributes {dimension_semantics = [#tpu.dimension_semantics<arbitrary>], iteration_bounds = array<i64: 1>, scalar_prefetch = 0 : i64, scratch_operands = 6 : i64, tpu.core_type = #tpu.core_type<tc>, window_params = [{transform_indices = @transform_0, window_bounds = array<i64: 8, 2, 16>}, {transform_indices = @transform_1, window_bounds = array<i64: 8, 2, 16>}, {pipeline_mode = #tpu.pipeline_mode<synchronous>, transform_indices = @transform_2, window_bounds = array<i64: 2, 16, 128>}, {pipeline_mode = #tpu.pipeline_mode<synchronous>, transform_indices = @transform_3, window_bounds = array<i64: 2, 32, 128>}, {pipeline_mode = #tpu.pipeline_mode<synchronous>, transform_indices = @transform_4, window_bounds = array<i64: 2, 1, 128>}, {transform_indices = @transform_5, window_bounds = array<i64: 8, 2, 32>}, {transform_indices = @transform_6, window_bounds = array<i64: 8, 2, 32>}, {pipeline_mode = #tpu.pipeline_mode<synchronous>, transform_indices = @transform_7, window_bounds = array<i64: 2, 2, 32>}, {pipeline_mode = #tpu.pipeline_mode<synchronous>, transform_indices = @transform_8, window_bounds = array<i64: 2, 2, 32>}]} {
    %c0_i32 = arith.constant 0 : i32
    %0 = arith.cmpi eq, %arg0, %c0_i32 : i32
    %1 = arith.extui %0 : i1 to i32
    %c0_i32_0 = arith.constant 0 : i32
    %2 = arith.cmpi ne, %1, %c0_i32_0 : i32
    scf.if %2 {
      %cst_153 = arith.constant 0.000000e+00 : f32
      %480 = vector.broadcast %cst_153 : f32 to vector<2x32xf32>
      %c0_154 = arith.constant 0 : index
      %c0_155 = arith.constant 0 : index
      %481 = vector.load %arg10[%c0_154, %c0_155] : memref<2x32xf32, #tpu.memory_space<vmem>>, vector<2x32xf32>
      tpu.vector_store %arg10[%c0_154, %c0_155], %480 {strides = array<i32>} : memref<2x32xf32, #tpu.memory_space<vmem>>, vector<2x32xf32>,
      %cst_156 = arith.constant 0.000000e+00 : f32
      %482 = vector.broadcast %cst_156 : f32 to vector<2x32xf32>
      %c0_157 = arith.constant 0 : index
      %c0_158 = arith.constant 0 : index
      %483 = vector.load %arg11[%c0_157, %c0_158] : memref<2x32xf32, #tpu.memory_space<vmem>>, vector<2x32xf32>
      tpu.vector_store %arg11[%c0_157, %c0_158], %482 {strides = array<i32>} : memref<2x32xf32, #tpu.memory_space<vmem>>, vector<2x32xf32>,
      %cst_159 = arith.constant 0.000000e+00 : f32
      %484 = vector.broadcast %cst_159 : f32 to vector<2x32xf32>
      %c0_160 = arith.constant 0 : index
      %c0_161 = arith.constant 0 : index
      %485 = vector.load %arg12[%c0_160, %c0_161] : memref<2x32xf32, #tpu.memory_space<vmem>>, vector<2x32xf32>
      tpu.vector_store %arg12[%c0_160, %c0_161], %484 {strides = array<i32>} : memref<2x32xf32, #tpu.memory_space<vmem>>, vector<2x32xf32>,
      %cst_162 = arith.constant 0.000000e+00 : f32
      %486 = vector.broadcast %cst_162 : f32 to vector<2x32xf32>
      %c0_163 = arith.constant 0 : index
      %c0_164 = arith.constant 0 : index
      %487 = vector.load %arg13[%c0_163, %c0_164] : memref<2x32xf32, #tpu.memory_space<vmem>>, vector<2x32xf32>
      tpu.vector_store %arg13[%c0_163, %c0_164], %486 {strides = array<i32>} : memref<2x32xf32, #tpu.memory_space<vmem>>, vector<2x32xf32>,
    } else {
    }
    %c0 = arith.constant 0 : index
    %c0_1 = arith.constant 0 : index
    %c0_2 = arith.constant 0 : index
    %3 = vector.load %arg5[%c0, %c0_1, %c0_2] : memref<2x1x128xf32, #tpu.memory_space<vmem>>, vector<1x1x128xf32>
    %4 = vector.shape_cast %3 : vector<1x1x128xf32> to vector<1x128xf32>
    %c1 = arith.constant 1 : index
    %c0_3 = arith.constant 0 : index
    %c0_4 = arith.constant 0 : index
    %5 = vector.load %arg5[%c1, %c0_3, %c0_4] : memref<2x1x128xf32, #tpu.memory_space<vmem>>, vector<1x1x128xf32>
    %6 = vector.shape_cast %5 : vector<1x1x128xf32> to vector<1x128xf32>
    %c0_5 = arith.constant 0 : index
    %c0_6 = arith.constant 0 : index
    %c0_7 = arith.constant 0 : index
    %7 = vector.load %arg1[%c0_5, %c0_6, %c0_7] : memref<8x2x16xbf16, #tpu.memory_space<vmem>>, vector<8x2x16xbf16>
    %8 = vector.shape_cast %7 : vector<8x2x16xbf16> to vector<16x16xbf16>
    %c0_8 = arith.constant 0 : index
    %c0_9 = arith.constant 0 : index
    %c0_10 = arith.constant 0 : index
    %9 = vector.load %arg2[%c0_8, %c0_9, %c0_10] : memref<8x2x16xbf16, #tpu.memory_space<vmem>>, vector<8x2x16xbf16>
    %10 = vector.shape_cast %9 : vector<8x2x16xbf16> to vector<16x16xbf16>
    %c0_11 = arith.constant 0 : index
    %c0_12 = arith.constant 0 : index
    %c0_13 = arith.constant 0 : index
    %11 = vector.load %arg3[%c0_11, %c0_12, %c0_13] : memref<2x16x128xbf16, #tpu.memory_space<vmem>>, vector<1x16x128xbf16>
    %12 = vector.shape_cast %11 : vector<1x16x128xbf16> to vector<16x128xbf16>
    %cst = arith.constant dense<0.000000e+00> : vector<16x128xf32>
    %13 = tpu.matmul %8, %12, %cst {dimension_numbers = #tpu.dot_dimension_numbers<[1], [0], [0], [1], [0, 0, 1, 1], [], []>} : vector<16x16xbf16>, vector<16x128xbf16>, vector<16x128xf32> -> vector<16x128xf32>
    %14 = vector.broadcast %4 : vector<1x128xf32> to vector<16x128xf32>
    %15 = arith.addf %14, %13 : vector<16x128xf32>
    %c1_14 = arith.constant 1 : index
    %c0_15 = arith.constant 0 : index
    %c0_16 = arith.constant 0 : index
    %16 = vector.load %arg3[%c1_14, %c0_15, %c0_16] : memref<2x16x128xbf16, #tpu.memory_space<vmem>>, vector<1x16x128xbf16>
    %17 = vector.shape_cast %16 : vector<1x16x128xbf16> to vector<16x128xbf16>
    %cst_17 = arith.constant dense<0.000000e+00> : vector<16x128xf32>
    %18 = tpu.matmul %10, %17, %cst_17 {dimension_numbers = #tpu.dot_dimension_numbers<[1], [0], [0], [1], [0, 0, 1, 1], [], []>} : vector<16x16xbf16>, vector<16x128xbf16>, vector<16x128xf32> -> vector<16x128xf32>
    %19 = vector.broadcast %6 : vector<1x128xf32> to vector<16x128xf32>
    %20 = arith.addf %19, %18 : vector<16x128xf32>
    %21 = vector.shape_cast %15 : vector<16x128xf32> to vector<8x2x128xf32>
    %c0_18 = arith.constant 0 : index
    %c0_19 = arith.constant 0 : index
    %c0_20 = arith.constant 0 : index
    %22 = vector.load %arg14[%c0_18, %c0_19, %c0_20] : memref<8x2x128xf32, #tpu.memory_space<vmem>>, vector<8x2x128xf32>
    tpu.vector_store %arg14[%c0_18, %c0_19, %c0_20], %21 {strides = array<i32>} : memref<8x2x128xf32, #tpu.memory_space<vmem>>, vector<8x2x128xf32>,
    %23 = vector.shape_cast %20 : vector<16x128xf32> to vector<8x2x128xf32>
    %c0_21 = arith.constant 0 : index
    %c0_22 = arith.constant 0 : index
    %c0_23 = arith.constant 0 : index
    %24 = vector.load %arg15[%c0_21, %c0_22, %c0_23] : memref<8x2x128xf32, #tpu.memory_space<vmem>>, vector<8x2x128xf32>
    tpu.vector_store %arg15[%c0_21, %c0_22, %c0_23], %23 {strides = array<i32>} : memref<8x2x128xf32, #tpu.memory_space<vmem>>, vector<8x2x128xf32>,
    %c0_24 = arith.constant 0 : index
    %c0_25 = arith.constant 0 : index
    %c0_26 = arith.constant 0 : index
    %25 = vector.load %arg4[%c0_24, %c0_25, %c0_26] : memref<2x32x128xbf16, #tpu.memory_space<vmem>>, vector<1x32x128xbf16>
    %26 = vector.shape_cast %25 : vector<1x32x128xbf16> to vector<32x128xbf16>
    %c1_27 = arith.constant 1 : index
    %c0_28 = arith.constant 0 : index
    %c0_29 = arith.constant 0 : index
    %27 = vector.load %arg4[%c1_27, %c0_28, %c0_29] : memref<2x32x128xbf16, #tpu.memory_space<vmem>>, vector<1x32x128xbf16>
    %28 = vector.shape_cast %27 : vector<1x32x128xbf16> to vector<32x128xbf16>
    %c0_30 = arith.constant 0 : index
    %c0_31 = arith.constant 0 : index
    %29 = vector.load %arg10[%c0_30, %c0_31] : memref<2x32xf32, #tpu.memory_space<vmem>>, vector<2x32xf32>
    %c0_32 = arith.constant 0 : index
    %c0_33 = arith.constant 0 : index
    %30 = vector.load %arg11[%c0_32, %c0_33] : memref<2x32xf32, #tpu.memory_space<vmem>>, vector<2x32xf32>
    %c0_34 = arith.constant 0 : index
    %c0_35 = arith.constant 0 : index
    %31 = vector.load %arg12[%c0_34, %c0_35] : memref<2x32xf32, #tpu.memory_space<vmem>>, vector<2x32xf32>
    %c0_36 = arith.constant 0 : index
    %c0_37 = arith.constant 0 : index
    %32 = vector.load %arg13[%c0_36, %c0_37] : memref<2x32xf32, #tpu.memory_space<vmem>>, vector<2x32xf32>
    %c0_i32_38 = arith.constant 0 : i32
    %c7_i32 = arith.constant 7 : i32
    %33 = arith.subi %c7_i32, %c0_i32_38 : i32
    %34 = arith.index_cast %c0_i32_38 : i32 to index
    %c0_39 = arith.constant 0 : index
    %c0_40 = arith.constant 0 : index
    %35 = vector.load %arg14[%34, %c0_39, %c0_40] : memref<8x2x128xf32, #tpu.memory_space<vmem>>, vector<1x2x128xf32>
    %36 = vector.shape_cast %35 : vector<1x2x128xf32> to vector<2x128xf32>
    %37 = arith.truncf %29 : vector<2x32xf32> to vector<2x32xbf16>
    %cst_41 = arith.constant dense<0.000000e+00> : vector<2x128xf32>
    %38 = tpu.matmul %37, %26, %cst_41 {dimension_numbers = #tpu.dot_dimension_numbers<[1], [0], [0], [1], [0, 0, 1, 1], [], []>} : vector<2x32xbf16>, vector<32x128xbf16>, vector<2x128xf32> -> vector<2x128xf32>
    %39 = arith.addf %36, %38 : vector<2x128xf32>
    %40 = vector.extract_strided_slice %39 {offsets = [0, 0], sizes = [2, 96], strides = [1, 1]} : vector<2x128xf32> to vector<2x96xf32>
    %41 = arith.negf %40 : vector<2x96xf32>
    %42 = math.exp %41 : vector<2x96xf32>
    %cst_42 = arith.constant 1.000000e+00 : f32
    %43 = vector.broadcast %cst_42 : f32 to vector<2x96xf32>
    %44 = arith.addf %43, %42 : vector<2x96xf32>
    %45 = arith.divf %43, %44 : vector<2x96xf32>
    %46 = vector.extract_strided_slice %39 {offsets = [0, 96], sizes = [2, 32], strides = [1, 1]} : vector<2x128xf32> to vector<2x32xf32>
    %47 = math.tanh %46 : vector<2x32xf32>
    %48 = vector.extract_strided_slice %45 {offsets = [0, 0], sizes = [2, 32], strides = [1, 1]} : vector<2x96xf32> to vector<2x32xf32>
    %49 = vector.extract_strided_slice %45 {offsets = [0, 32], sizes = [2, 32], strides = [1, 1]} : vector<2x96xf32> to vector<2x32xf32>
    %50 = vector.extract_strided_slice %45 {offsets = [0, 64], sizes = [2, 32], strides = [1, 1]} : vector<2x96xf32> to vector<2x32xf32>
    %51 = arith.mulf %49, %30 : vector<2x32xf32>
    %52 = arith.mulf %48, %47 : vector<2x32xf32>
    %53 = arith.addf %51, %52 : vector<2x32xf32>
    %54 = math.tanh %53 : vector<2x32xf32>
    %55 = arith.mulf %50, %54 : vector<2x32xf32>
    %56 = arith.index_cast %33 : i32 to index
    %c0_43 = arith.constant 0 : index
    %c0_44 = arith.constant 0 : index
    %57 = vector.load %arg15[%56, %c0_43, %c0_44] : memref<8x2x128xf32, #tpu.memory_space<vmem>>, vector<1x2x128xf32>
    %58 = vector.shape_cast %57 : vector<1x2x128xf32> to vector<2x128xf32>
    %59 = arith.truncf %31 : vector<2x32xf32> to vector<2x32xbf16>
    %cst_45 = arith.constant dense<0.000000e+00> : vector<2x128xf32>
    %60 = tpu.matmul %59, %28, %cst_45 {dimension_numbers = #tpu.dot_dimension_numbers<[1], [0], [0], [1], [0, 0, 1, 1], [], []>} : vector<2x32xbf16>, vector<32x128xbf16>, vector<2x128xf32> -> vector<2x128xf32>
    %61 = arith.addf %58, %60 : vector<2x128xf32>
    %62 = vector.extract_strided_slice %61 {offsets = [0, 0], sizes = [2, 96], strides = [1, 1]} : vector<2x128xf32> to vector<2x96xf32>
    %63 = arith.negf %62 : vector<2x96xf32>
    %64 = math.exp %63 : vector<2x96xf32>
    %cst_46 = arith.constant 1.000000e+00 : f32
    %65 = vector.broadcast %cst_46 : f32 to vector<2x96xf32>
    %66 = arith.addf %65, %64 : vector<2x96xf32>
    %67 = arith.divf %65, %66 : vector<2x96xf32>
    %68 = vector.extract_strided_slice %61 {offsets = [0, 96], sizes = [2, 32], strides = [1, 1]} : vector<2x128xf32> to vector<2x32xf32>
    %69 = math.tanh %68 : vector<2x32xf32>
    %70 = vector.extract_strided_slice %67 {offsets = [0, 0], sizes = [2, 32], strides = [1, 1]} : vector<2x96xf32> to vector<2x32xf32>
    %71 = vector.extract_strided_slice %67 {offsets = [0, 32], sizes = [2, 32], strides = [1, 1]} : vector<2x96xf32> to vector<2x32xf32>
    %72 = vector.extract_strided_slice %67 {offsets = [0, 64], sizes = [2, 32], strides = [1, 1]} : vector<2x96xf32> to vector<2x32xf32>
    %73 = arith.mulf %71, %32 : vector<2x32xf32>
    %74 = arith.mulf %70, %69 : vector<2x32xf32>
    %75 = arith.addf %73, %74 : vector<2x32xf32>
    %76 = math.tanh %75 : vector<2x32xf32>
    %77 = arith.mulf %72, %76 : vector<2x32xf32>
    %78 = arith.truncf %55 : vector<2x32xf32> to vector<2x32xbf16>
    %79 = arith.index_cast %c0_i32_38 : i32 to index
    %c0_47 = arith.constant 0 : index
    %c0_48 = arith.constant 0 : index
    %80 = vector.load %arg6[%79, %c0_47, %c0_48] : memref<8x2x32xbf16, #tpu.memory_space<vmem>>, vector<1x2x32xbf16>
    %81 = vector.shape_cast %80 : vector<1x2x32xbf16> to vector<2x32xbf16>
    %82 = vector.shape_cast %78 : vector<2x32xbf16> to vector<1x2x32xbf16>
    tpu.vector_store %arg6[%79, %c0_47, %c0_48], %82 {strides = array<i32>} : memref<8x2x32xbf16, #tpu.memory_space<vmem>>, vector<1x2x32xbf16>,
    %83 = arith.truncf %77 : vector<2x32xf32> to vector<2x32xbf16>
    %84 = arith.index_cast %33 : i32 to index
    %c0_49 = arith.constant 0 : index
    %c0_50 = arith.constant 0 : index
    %85 = vector.load %arg7[%84, %c0_49, %c0_50] : memref<8x2x32xbf16, #tpu.memory_space<vmem>>, vector<1x2x32xbf16>
    %86 = vector.shape_cast %85 : vector<1x2x32xbf16> to vector<2x32xbf16>
    %87 = vector.shape_cast %83 : vector<2x32xbf16> to vector<1x2x32xbf16>
    tpu.vector_store %arg7[%84, %c0_49, %c0_50], %87 {strides = array<i32>} : memref<8x2x32xbf16, #tpu.memory_space<vmem>>, vector<1x2x32xbf16>,
    %c1_i32 = arith.constant 1 : i32
    %c7_i32_51 = arith.constant 7 : i32
    %88 = arith.subi %c7_i32_51, %c1_i32 : i32
    %89 = arith.index_cast %c1_i32 : i32 to index
    %c0_52 = arith.constant 0 : index
    %c0_53 = arith.constant 0 : index
    %90 = vector.load %arg14[%89, %c0_52, %c0_53] : memref<8x2x128xf32, #tpu.memory_space<vmem>>, vector<1x2x128xf32>
    %91 = vector.shape_cast %90 : vector<1x2x128xf32> to vector<2x128xf32>
    %92 = arith.truncf %55 : vector<2x32xf32> to vector<2x32xbf16>
    %cst_54 = arith.constant dense<0.000000e+00> : vector<2x128xf32>
    %93 = tpu.matmul %92, %26, %cst_54 {dimension_numbers = #tpu.dot_dimension_numbers<[1], [0], [0], [1], [0, 0, 1, 1], [], []>} : vector<2x32xbf16>, vector<32x128xbf16>, vector<2x128xf32> -> vector<2x128xf32>
    %94 = arith.addf %91, %93 : vector<2x128xf32>
    %95 = vector.extract_strided_slice %94 {offsets = [0, 0], sizes = [2, 96], strides = [1, 1]} : vector<2x128xf32> to vector<2x96xf32>
    %96 = arith.negf %95 : vector<2x96xf32>
    %97 = math.exp %96 : vector<2x96xf32>
    %cst_55 = arith.constant 1.000000e+00 : f32
    %98 = vector.broadcast %cst_55 : f32 to vector<2x96xf32>
    %99 = arith.addf %98, %97 : vector<2x96xf32>
    %100 = arith.divf %98, %99 : vector<2x96xf32>
    %101 = vector.extract_strided_slice %94 {offsets = [0, 96], sizes = [2, 32], strides = [1, 1]} : vector<2x128xf32> to vector<2x32xf32>
    %102 = math.tanh %101 : vector<2x32xf32>
    %103 = vector.extract_strided_slice %100 {offsets = [0, 0], sizes = [2, 32], strides = [1, 1]} : vector<2x96xf32> to vector<2x32xf32>
    %104 = vector.extract_strided_slice %100 {offsets = [0, 32], sizes = [2, 32], strides = [1, 1]} : vector<2x96xf32> to vector<2x32xf32>
    %105 = vector.extract_strided_slice %100 {offsets = [0, 64], sizes = [2, 32], strides = [1, 1]} : vector<2x96xf32> to vector<2x32xf32>
    %106 = arith.mulf %104, %53 : vector<2x32xf32>
    %107 = arith.mulf %103, %102 : vector<2x32xf32>
    %108 = arith.addf %106, %107 : vector<2x32xf32>
    %109 = math.tanh %108 : vector<2x32xf32>
    %110 = arith.mulf %105, %109 : vector<2x32xf32>
    %111 = arith.index_cast %88 : i32 to index
    %c0_56 = arith.constant 0 : index
    %c0_57 = arith.constant 0 : index
    %112 = vector.load %arg15[%111, %c0_56, %c0_57] : memref<8x2x128xf32, #tpu.memory_space<vmem>>, vector<1x2x128xf32>
    %113 = vector.shape_cast %112 : vector<1x2x128xf32> to vector<2x128xf32>
    %114 = arith.truncf %77 : vector<2x32xf32> to vector<2x32xbf16>
    %cst_58 = arith.constant dense<0.000000e+00> : vector<2x128xf32>
    %115 = tpu.matmul %114, %28, %cst_58 {dimension_numbers = #tpu.dot_dimension_numbers<[1], [0], [0], [1], [0, 0, 1, 1], [], []>} : vector<2x32xbf16>, vector<32x128xbf16>, vector<2x128xf32> -> vector<2x128xf32>
    %116 = arith.addf %113, %115 : vector<2x128xf32>
    %117 = vector.extract_strided_slice %116 {offsets = [0, 0], sizes = [2, 96], strides = [1, 1]} : vector<2x128xf32> to vector<2x96xf32>
    %118 = arith.negf %117 : vector<2x96xf32>
    %119 = math.exp %118 : vector<2x96xf32>
    %cst_59 = arith.constant 1.000000e+00 : f32
    %120 = vector.broadcast %cst_59 : f32 to vector<2x96xf32>
    %121 = arith.addf %120, %119 : vector<2x96xf32>
    %122 = arith.divf %120, %121 : vector<2x96xf32>
    %123 = vector.extract_strided_slice %116 {offsets = [0, 96], sizes = [2, 32], strides = [1, 1]} : vector<2x128xf32> to vector<2x32xf32>
    %124 = math.tanh %123 : vector<2x32xf32>
    %125 = vector.extract_strided_slice %122 {offsets = [0, 0], sizes = [2, 32], strides = [1, 1]} : vector<2x96xf32> to vector<2x32xf32>
    %126 = vector.extract_strided_slice %122 {offsets = [0, 32], sizes = [2, 32], strides = [1, 1]} : vector<2x96xf32> to vector<2x32xf32>
    %127 = vector.extract_strided_slice %122 {offsets = [0, 64], sizes = [2, 32], strides = [1, 1]} : vector<2x96xf32> to vector<2x32xf32>
    %128 = arith.mulf %126, %75 : vector<2x32xf32>
    %129 = arith.mulf %125, %124 : vector<2x32xf32>
    %130 = arith.addf %128, %129 : vector<2x32xf32>
    %131 = math.tanh %130 : vector<2x32xf32>
    %132 = arith.mulf %127, %131 : vector<2x32xf32>
    %133 = arith.truncf %110 : vector<2x32xf32> to vector<2x32xbf16>
    %134 = arith.index_cast %c1_i32 : i32 to index
    %c0_60 = arith.constant 0 : index
    %c0_61 = arith.constant 0 : index
    %135 = vector.load %arg6[%134, %c0_60, %c0_61] : memref<8x2x32xbf16, #tpu.memory_space<vmem>>, vector<1x2x32xbf16>
    %136 = vector.shape_cast %135 : vector<1x2x32xbf16> to vector<2x32xbf16>
    %137 = vector.shape_cast %133 : vector<2x32xbf16> to vector<1x2x32xbf16>
    tpu.vector_store %arg6[%134, %c0_60, %c0_61], %137 {strides = array<i32>} : memref<8x2x32xbf16, #tpu.memory_space<vmem>>, vector<1x2x32xbf16>,
    %138 = arith.truncf %132 : vector<2x32xf32> to vector<2x32xbf16>
    %139 = arith.index_cast %88 : i32 to index
    %c0_62 = arith.constant 0 : index
    %c0_63 = arith.constant 0 : index
    %140 = vector.load %arg7[%139, %c0_62, %c0_63] : memref<8x2x32xbf16, #tpu.memory_space<vmem>>, vector<1x2x32xbf16>
    %141 = vector.shape_cast %140 : vector<1x2x32xbf16> to vector<2x32xbf16>
    %142 = vector.shape_cast %138 : vector<2x32xbf16> to vector<1x2x32xbf16>
    tpu.vector_store %arg7[%139, %c0_62, %c0_63], %142 {strides = array<i32>} : memref<8x2x32xbf16, #tpu.memory_space<vmem>>, vector<1x2x32xbf16>,
    %c2_i32 = arith.constant 2 : i32
    %c7_i32_64 = arith.constant 7 : i32
    %143 = arith.subi %c7_i32_64, %c2_i32 : i32
    %144 = arith.index_cast %c2_i32 : i32 to index
    %c0_65 = arith.constant 0 : index
    %c0_66 = arith.constant 0 : index
    %145 = vector.load %arg14[%144, %c0_65, %c0_66] : memref<8x2x128xf32, #tpu.memory_space<vmem>>, vector<1x2x128xf32>
    %146 = vector.shape_cast %145 : vector<1x2x128xf32> to vector<2x128xf32>
    %147 = arith.truncf %110 : vector<2x32xf32> to vector<2x32xbf16>
    %cst_67 = arith.constant dense<0.000000e+00> : vector<2x128xf32>
    %148 = tpu.matmul %147, %26, %cst_67 {dimension_numbers = #tpu.dot_dimension_numbers<[1], [0], [0], [1], [0, 0, 1, 1], [], []>} : vector<2x32xbf16>, vector<32x128xbf16>, vector<2x128xf32> -> vector<2x128xf32>
    %149 = arith.addf %146, %148 : vector<2x128xf32>
    %150 = vector.extract_strided_slice %149 {offsets = [0, 0], sizes = [2, 96], strides = [1, 1]} : vector<2x128xf32> to vector<2x96xf32>
    %151 = arith.negf %150 : vector<2x96xf32>
    %152 = math.exp %151 : vector<2x96xf32>
    %cst_68 = arith.constant 1.000000e+00 : f32
    %153 = vector.broadcast %cst_68 : f32 to vector<2x96xf32>
    %154 = arith.addf %153, %152 : vector<2x96xf32>
    %155 = arith.divf %153, %154 : vector<2x96xf32>
    %156 = vector.extract_strided_slice %149 {offsets = [0, 96], sizes = [2, 32], strides = [1, 1]} : vector<2x128xf32> to vector<2x32xf32>
    %157 = math.tanh %156 : vector<2x32xf32>
    %158 = vector.extract_strided_slice %155 {offsets = [0, 0], sizes = [2, 32], strides = [1, 1]} : vector<2x96xf32> to vector<2x32xf32>
    %159 = vector.extract_strided_slice %155 {offsets = [0, 32], sizes = [2, 32], strides = [1, 1]} : vector<2x96xf32> to vector<2x32xf32>
    %160 = vector.extract_strided_slice %155 {offsets = [0, 64], sizes = [2, 32], strides = [1, 1]} : vector<2x96xf32> to vector<2x32xf32>
    %161 = arith.mulf %159, %108 : vector<2x32xf32>
    %162 = arith.mulf %158, %157 : vector<2x32xf32>
    %163 = arith.addf %161, %162 : vector<2x32xf32>
    %164 = math.tanh %163 : vector<2x32xf32>
    %165 = arith.mulf %160, %164 : vector<2x32xf32>
    %166 = arith.index_cast %143 : i32 to index
    %c0_69 = arith.constant 0 : index
    %c0_70 = arith.constant 0 : index
    %167 = vector.load %arg15[%166, %c0_69, %c0_70] : memref<8x2x128xf32, #tpu.memory_space<vmem>>, vector<1x2x128xf32>
    %168 = vector.shape_cast %167 : vector<1x2x128xf32> to vector<2x128xf32>
    %169 = arith.truncf %132 : vector<2x32xf32> to vector<2x32xbf16>
    %cst_71 = arith.constant dense<0.000000e+00> : vector<2x128xf32>
    %170 = tpu.matmul %169, %28, %cst_71 {dimension_numbers = #tpu.dot_dimension_numbers<[1], [0], [0], [1], [0, 0, 1, 1], [], []>} : vector<2x32xbf16>, vector<32x128xbf16>, vector<2x128xf32> -> vector<2x128xf32>
    %171 = arith.addf %168, %170 : vector<2x128xf32>
    %172 = vector.extract_strided_slice %171 {offsets = [0, 0], sizes = [2, 96], strides = [1, 1]} : vector<2x128xf32> to vector<2x96xf32>
    %173 = arith.negf %172 : vector<2x96xf32>
    %174 = math.exp %173 : vector<2x96xf32>
    %cst_72 = arith.constant 1.000000e+00 : f32
    %175 = vector.broadcast %cst_72 : f32 to vector<2x96xf32>
    %176 = arith.addf %175, %174 : vector<2x96xf32>
    %177 = arith.divf %175, %176 : vector<2x96xf32>
    %178 = vector.extract_strided_slice %171 {offsets = [0, 96], sizes = [2, 32], strides = [1, 1]} : vector<2x128xf32> to vector<2x32xf32>
    %179 = math.tanh %178 : vector<2x32xf32>
    %180 = vector.extract_strided_slice %177 {offsets = [0, 0], sizes = [2, 32], strides = [1, 1]} : vector<2x96xf32> to vector<2x32xf32>
    %181 = vector.extract_strided_slice %177 {offsets = [0, 32], sizes = [2, 32], strides = [1, 1]} : vector<2x96xf32> to vector<2x32xf32>
    %182 = vector.extract_strided_slice %177 {offsets = [0, 64], sizes = [2, 32], strides = [1, 1]} : vector<2x96xf32> to vector<2x32xf32>
    %183 = arith.mulf %181, %130 : vector<2x32xf32>
    %184 = arith.mulf %180, %179 : vector<2x32xf32>
    %185 = arith.addf %183, %184 : vector<2x32xf32>
    %186 = math.tanh %185 : vector<2x32xf32>
    %187 = arith.mulf %182, %186 : vector<2x32xf32>
    %188 = arith.truncf %165 : vector<2x32xf32> to vector<2x32xbf16>
    %189 = arith.index_cast %c2_i32 : i32 to index
    %c0_73 = arith.constant 0 : index
    %c0_74 = arith.constant 0 : index
    %190 = vector.load %arg6[%189, %c0_73, %c0_74] : memref<8x2x32xbf16, #tpu.memory_space<vmem>>, vector<1x2x32xbf16>
    %191 = vector.shape_cast %190 : vector<1x2x32xbf16> to vector<2x32xbf16>
    %192 = vector.shape_cast %188 : vector<2x32xbf16> to vector<1x2x32xbf16>
    tpu.vector_store %arg6[%189, %c0_73, %c0_74], %192 {strides = array<i32>} : memref<8x2x32xbf16, #tpu.memory_space<vmem>>, vector<1x2x32xbf16>,
    %193 = arith.truncf %187 : vector<2x32xf32> to vector<2x32xbf16>
    %194 = arith.index_cast %143 : i32 to index
    %c0_75 = arith.constant 0 : index
    %c0_76 = arith.constant 0 : index
    %195 = vector.load %arg7[%194, %c0_75, %c0_76] : memref<8x2x32xbf16, #tpu.memory_space<vmem>>, vector<1x2x32xbf16>
    %196 = vector.shape_cast %195 : vector<1x2x32xbf16> to vector<2x32xbf16>
    %197 = vector.shape_cast %193 : vector<2x32xbf16> to vector<1x2x32xbf16>
    tpu.vector_store %arg7[%194, %c0_75, %c0_76], %197 {strides = array<i32>} : memref<8x2x32xbf16, #tpu.memory_space<vmem>>, vector<1x2x32xbf16>,
    %c3_i32 = arith.constant 3 : i32
    %c7_i32_77 = arith.constant 7 : i32
    %198 = arith.subi %c7_i32_77, %c3_i32 : i32
    %199 = arith.index_cast %c3_i32 : i32 to index
    %c0_78 = arith.constant 0 : index
    %c0_79 = arith.constant 0 : index
    %200 = vector.load %arg14[%199, %c0_78, %c0_79] : memref<8x2x128xf32, #tpu.memory_space<vmem>>, vector<1x2x128xf32>
    %201 = vector.shape_cast %200 : vector<1x2x128xf32> to vector<2x128xf32>
    %202 = arith.truncf %165 : vector<2x32xf32> to vector<2x32xbf16>
    %cst_80 = arith.constant dense<0.000000e+00> : vector<2x128xf32>
    %203 = tpu.matmul %202, %26, %cst_80 {dimension_numbers = #tpu.dot_dimension_numbers<[1], [0], [0], [1], [0, 0, 1, 1], [], []>} : vector<2x32xbf16>, vector<32x128xbf16>, vector<2x128xf32> -> vector<2x128xf32>
    %204 = arith.addf %201, %203 : vector<2x128xf32>
    %205 = vector.extract_strided_slice %204 {offsets = [0, 0], sizes = [2, 96], strides = [1, 1]} : vector<2x128xf32> to vector<2x96xf32>
    %206 = arith.negf %205 : vector<2x96xf32>
    %207 = math.exp %206 : vector<2x96xf32>
    %cst_81 = arith.constant 1.000000e+00 : f32
    %208 = vector.broadcast %cst_81 : f32 to vector<2x96xf32>
    %209 = arith.addf %208, %207 : vector<2x96xf32>
    %210 = arith.divf %208, %209 : vector<2x96xf32>
    %211 = vector.extract_strided_slice %204 {offsets = [0, 96], sizes = [2, 32], strides = [1, 1]} : vector<2x128xf32> to vector<2x32xf32>
    %212 = math.tanh %211 : vector<2x32xf32>
    %213 = vector.extract_strided_slice %210 {offsets = [0, 0], sizes = [2, 32], strides = [1, 1]} : vector<2x96xf32> to vector<2x32xf32>
    %214 = vector.extract_strided_slice %210 {offsets = [0, 32], sizes = [2, 32], strides = [1, 1]} : vector<2x96xf32> to vector<2x32xf32>
    %215 = vector.extract_strided_slice %210 {offsets = [0, 64], sizes = [2, 32], strides = [1, 1]} : vector<2x96xf32> to vector<2x32xf32>
    %216 = arith.mulf %214, %163 : vector<2x32xf32>
    %217 = arith.mulf %213, %212 : vector<2x32xf32>
    %218 = arith.addf %216, %217 : vector<2x32xf32>
    %219 = math.tanh %218 : vector<2x32xf32>
    %220 = arith.mulf %215, %219 : vector<2x32xf32>
    %221 = arith.index_cast %198 : i32 to index
    %c0_82 = arith.constant 0 : index
    %c0_83 = arith.constant 0 : index
    %222 = vector.load %arg15[%221, %c0_82, %c0_83] : memref<8x2x128xf32, #tpu.memory_space<vmem>>, vector<1x2x128xf32>
    %223 = vector.shape_cast %222 : vector<1x2x128xf32> to vector<2x128xf32>
    %224 = arith.truncf %187 : vector<2x32xf32> to vector<2x32xbf16>
    %cst_84 = arith.constant dense<0.000000e+00> : vector<2x128xf32>
    %225 = tpu.matmul %224, %28, %cst_84 {dimension_numbers = #tpu.dot_dimension_numbers<[1], [0], [0], [1], [0, 0, 1, 1], [], []>} : vector<2x32xbf16>, vector<32x128xbf16>, vector<2x128xf32> -> vector<2x128xf32>
    %226 = arith.addf %223, %225 : vector<2x128xf32>
    %227 = vector.extract_strided_slice %226 {offsets = [0, 0], sizes = [2, 96], strides = [1, 1]} : vector<2x128xf32> to vector<2x96xf32>
    %228 = arith.negf %227 : vector<2x96xf32>
    %229 = math.exp %228 : vector<2x96xf32>
    %cst_85 = arith.constant 1.000000e+00 : f32
    %230 = vector.broadcast %cst_85 : f32 to vector<2x96xf32>
    %231 = arith.addf %230, %229 : vector<2x96xf32>
    %232 = arith.divf %230, %231 : vector<2x96xf32>
    %233 = vector.extract_strided_slice %226 {offsets = [0, 96], sizes = [2, 32], strides = [1, 1]} : vector<2x128xf32> to vector<2x32xf32>
    %234 = math.tanh %233 : vector<2x32xf32>
    %235 = vector.extract_strided_slice %232 {offsets = [0, 0], sizes = [2, 32], strides = [1, 1]} : vector<2x96xf32> to vector<2x32xf32>
    %236 = vector.extract_strided_slice %232 {offsets = [0, 32], sizes = [2, 32], strides = [1, 1]} : vector<2x96xf32> to vector<2x32xf32>
    %237 = vector.extract_strided_slice %232 {offsets = [0, 64], sizes = [2, 32], strides = [1, 1]} : vector<2x96xf32> to vector<2x32xf32>
    %238 = arith.mulf %236, %185 : vector<2x32xf32>
    %239 = arith.mulf %235, %234 : vector<2x32xf32>
    %240 = arith.addf %238, %239 : vector<2x32xf32>
    %241 = math.tanh %240 : vector<2x32xf32>
    %242 = arith.mulf %237, %241 : vector<2x32xf32>
    %243 = arith.truncf %220 : vector<2x32xf32> to vector<2x32xbf16>
    %244 = arith.index_cast %c3_i32 : i32 to index
    %c0_86 = arith.constant 0 : index
    %c0_87 = arith.constant 0 : index
    %245 = vector.load %arg6[%244, %c0_86, %c0_87] : memref<8x2x32xbf16, #tpu.memory_space<vmem>>, vector<1x2x32xbf16>
    %246 = vector.shape_cast %245 : vector<1x2x32xbf16> to vector<2x32xbf16>
    %247 = vector.shape_cast %243 : vector<2x32xbf16> to vector<1x2x32xbf16>
    tpu.vector_store %arg6[%244, %c0_86, %c0_87], %247 {strides = array<i32>} : memref<8x2x32xbf16, #tpu.memory_space<vmem>>, vector<1x2x32xbf16>,
    %248 = arith.truncf %242 : vector<2x32xf32> to vector<2x32xbf16>
    %249 = arith.index_cast %198 : i32 to index
    %c0_88 = arith.constant 0 : index
    %c0_89 = arith.constant 0 : index
    %250 = vector.load %arg7[%249, %c0_88, %c0_89] : memref<8x2x32xbf16, #tpu.memory_space<vmem>>, vector<1x2x32xbf16>
    %251 = vector.shape_cast %250 : vector<1x2x32xbf16> to vector<2x32xbf16>
    %252 = vector.shape_cast %248 : vector<2x32xbf16> to vector<1x2x32xbf16>
    tpu.vector_store %arg7[%249, %c0_88, %c0_89], %252 {strides = array<i32>} : memref<8x2x32xbf16, #tpu.memory_space<vmem>>, vector<1x2x32xbf16>,
    %c4_i32 = arith.constant 4 : i32
    %c7_i32_90 = arith.constant 7 : i32
    %253 = arith.subi %c7_i32_90, %c4_i32 : i32
    %254 = arith.index_cast %c4_i32 : i32 to index
    %c0_91 = arith.constant 0 : index
    %c0_92 = arith.constant 0 : index
    %255 = vector.load %arg14[%254, %c0_91, %c0_92] : memref<8x2x128xf32, #tpu.memory_space<vmem>>, vector<1x2x128xf32>
    %256 = vector.shape_cast %255 : vector<1x2x128xf32> to vector<2x128xf32>
    %257 = arith.truncf %220 : vector<2x32xf32> to vector<2x32xbf16>
    %cst_93 = arith.constant dense<0.000000e+00> : vector<2x128xf32>
    %258 = tpu.matmul %257, %26, %cst_93 {dimension_numbers = #tpu.dot_dimension_numbers<[1], [0], [0], [1], [0, 0, 1, 1], [], []>} : vector<2x32xbf16>, vector<32x128xbf16>, vector<2x128xf32> -> vector<2x128xf32>
    %259 = arith.addf %256, %258 : vector<2x128xf32>
    %260 = vector.extract_strided_slice %259 {offsets = [0, 0], sizes = [2, 96], strides = [1, 1]} : vector<2x128xf32> to vector<2x96xf32>
    %261 = arith.negf %260 : vector<2x96xf32>
    %262 = math.exp %261 : vector<2x96xf32>
    %cst_94 = arith.constant 1.000000e+00 : f32
    %263 = vector.broadcast %cst_94 : f32 to vector<2x96xf32>
    %264 = arith.addf %263, %262 : vector<2x96xf32>
    %265 = arith.divf %263, %264 : vector<2x96xf32>
    %266 = vector.extract_strided_slice %259 {offsets = [0, 96], sizes = [2, 32], strides = [1, 1]} : vector<2x128xf32> to vector<2x32xf32>
    %267 = math.tanh %266 : vector<2x32xf32>
    %268 = vector.extract_strided_slice %265 {offsets = [0, 0], sizes = [2, 32], strides = [1, 1]} : vector<2x96xf32> to vector<2x32xf32>
    %269 = vector.extract_strided_slice %265 {offsets = [0, 32], sizes = [2, 32], strides = [1, 1]} : vector<2x96xf32> to vector<2x32xf32>
    %270 = vector.extract_strided_slice %265 {offsets = [0, 64], sizes = [2, 32], strides = [1, 1]} : vector<2x96xf32> to vector<2x32xf32>
    %271 = arith.mulf %269, %218 : vector<2x32xf32>
    %272 = arith.mulf %268, %267 : vector<2x32xf32>
    %273 = arith.addf %271, %272 : vector<2x32xf32>
    %274 = math.tanh %273 : vector<2x32xf32>
    %275 = arith.mulf %270, %274 : vector<2x32xf32>
    %276 = arith.index_cast %253 : i32 to index
    %c0_95 = arith.constant 0 : index
    %c0_96 = arith.constant 0 : index
    %277 = vector.load %arg15[%276, %c0_95, %c0_96] : memref<8x2x128xf32, #tpu.memory_space<vmem>>, vector<1x2x128xf32>
    %278 = vector.shape_cast %277 : vector<1x2x128xf32> to vector<2x128xf32>
    %279 = arith.truncf %242 : vector<2x32xf32> to vector<2x32xbf16>
    %cst_97 = arith.constant dense<0.000000e+00> : vector<2x128xf32>
    %280 = tpu.matmul %279, %28, %cst_97 {dimension_numbers = #tpu.dot_dimension_numbers<[1], [0], [0], [1], [0, 0, 1, 1], [], []>} : vector<2x32xbf16>, vector<32x128xbf16>, vector<2x128xf32> -> vector<2x128xf32>
    %281 = arith.addf %278, %280 : vector<2x128xf32>
    %282 = vector.extract_strided_slice %281 {offsets = [0, 0], sizes = [2, 96], strides = [1, 1]} : vector<2x128xf32> to vector<2x96xf32>
    %283 = arith.negf %282 : vector<2x96xf32>
    %284 = math.exp %283 : vector<2x96xf32>
    %cst_98 = arith.constant 1.000000e+00 : f32
    %285 = vector.broadcast %cst_98 : f32 to vector<2x96xf32>
    %286 = arith.addf %285, %284 : vector<2x96xf32>
    %287 = arith.divf %285, %286 : vector<2x96xf32>
    %288 = vector.extract_strided_slice %281 {offsets = [0, 96], sizes = [2, 32], strides = [1, 1]} : vector<2x128xf32> to vector<2x32xf32>
    %289 = math.tanh %288 : vector<2x32xf32>
    %290 = vector.extract_strided_slice %287 {offsets = [0, 0], sizes = [2, 32], strides = [1, 1]} : vector<2x96xf32> to vector<2x32xf32>
    %291 = vector.extract_strided_slice %287 {offsets = [0, 32], sizes = [2, 32], strides = [1, 1]} : vector<2x96xf32> to vector<2x32xf32>
    %292 = vector.extract_strided_slice %287 {offsets = [0, 64], sizes = [2, 32], strides = [1, 1]} : vector<2x96xf32> to vector<2x32xf32>
    %293 = arith.mulf %291, %240 : vector<2x32xf32>
    %294 = arith.mulf %290, %289 : vector<2x32xf32>
    %295 = arith.addf %293, %294 : vector<2x32xf32>
    %296 = math.tanh %295 : vector<2x32xf32>
    %297 = arith.mulf %292, %296 : vector<2x32xf32>
    %298 = arith.truncf %275 : vector<2x32xf32> to vector<2x32xbf16>
    %299 = arith.index_cast %c4_i32 : i32 to index
    %c0_99 = arith.constant 0 : index
    %c0_100 = arith.constant 0 : index
    %300 = vector.load %arg6[%299, %c0_99, %c0_100] : memref<8x2x32xbf16, #tpu.memory_space<vmem>>, vector<1x2x32xbf16>
    %301 = vector.shape_cast %300 : vector<1x2x32xbf16> to vector<2x32xbf16>
    %302 = vector.shape_cast %298 : vector<2x32xbf16> to vector<1x2x32xbf16>
    tpu.vector_store %arg6[%299, %c0_99, %c0_100], %302 {strides = array<i32>} : memref<8x2x32xbf16, #tpu.memory_space<vmem>>, vector<1x2x32xbf16>,
    %303 = arith.truncf %297 : vector<2x32xf32> to vector<2x32xbf16>
    %304 = arith.index_cast %253 : i32 to index
    %c0_101 = arith.constant 0 : index
    %c0_102 = arith.constant 0 : index
    %305 = vector.load %arg7[%304, %c0_101, %c0_102] : memref<8x2x32xbf16, #tpu.memory_space<vmem>>, vector<1x2x32xbf16>
    %306 = vector.shape_cast %305 : vector<1x2x32xbf16> to vector<2x32xbf16>
    %307 = vector.shape_cast %303 : vector<2x32xbf16> to vector<1x2x32xbf16>
    tpu.vector_store %arg7[%304, %c0_101, %c0_102], %307 {strides = array<i32>} : memref<8x2x32xbf16, #tpu.memory_space<vmem>>, vector<1x2x32xbf16>,
    %c5_i32 = arith.constant 5 : i32
    %c7_i32_103 = arith.constant 7 : i32
    %308 = arith.subi %c7_i32_103, %c5_i32 : i32
    %309 = arith.index_cast %c5_i32 : i32 to index
    %c0_104 = arith.constant 0 : index
    %c0_105 = arith.constant 0 : index
    %310 = vector.load %arg14[%309, %c0_104, %c0_105] : memref<8x2x128xf32, #tpu.memory_space<vmem>>, vector<1x2x128xf32>
    %311 = vector.shape_cast %310 : vector<1x2x128xf32> to vector<2x128xf32>
    %312 = arith.truncf %275 : vector<2x32xf32> to vector<2x32xbf16>
    %cst_106 = arith.constant dense<0.000000e+00> : vector<2x128xf32>
    %313 = tpu.matmul %312, %26, %cst_106 {dimension_numbers = #tpu.dot_dimension_numbers<[1], [0], [0], [1], [0, 0, 1, 1], [], []>} : vector<2x32xbf16>, vector<32x128xbf16>, vector<2x128xf32> -> vector<2x128xf32>
    %314 = arith.addf %311, %313 : vector<2x128xf32>
    %315 = vector.extract_strided_slice %314 {offsets = [0, 0], sizes = [2, 96], strides = [1, 1]} : vector<2x128xf32> to vector<2x96xf32>
    %316 = arith.negf %315 : vector<2x96xf32>
    %317 = math.exp %316 : vector<2x96xf32>
    %cst_107 = arith.constant 1.000000e+00 : f32
    %318 = vector.broadcast %cst_107 : f32 to vector<2x96xf32>
    %319 = arith.addf %318, %317 : vector<2x96xf32>
    %320 = arith.divf %318, %319 : vector<2x96xf32>
    %321 = vector.extract_strided_slice %314 {offsets = [0, 96], sizes = [2, 32], strides = [1, 1]} : vector<2x128xf32> to vector<2x32xf32>
    %322 = math.tanh %321 : vector<2x32xf32>
    %323 = vector.extract_strided_slice %320 {offsets = [0, 0], sizes = [2, 32], strides = [1, 1]} : vector<2x96xf32> to vector<2x32xf32>
    %324 = vector.extract_strided_slice %320 {offsets = [0, 32], sizes = [2, 32], strides = [1, 1]} : vector<2x96xf32> to vector<2x32xf32>
    %325 = vector.extract_strided_slice %320 {offsets = [0, 64], sizes = [2, 32], strides = [1, 1]} : vector<2x96xf32> to vector<2x32xf32>
    %326 = arith.mulf %324, %273 : vector<2x32xf32>
    %327 = arith.mulf %323, %322 : vector<2x32xf32>
    %328 = arith.addf %326, %327 : vector<2x32xf32>
    %329 = math.tanh %328 : vector<2x32xf32>
    %330 = arith.mulf %325, %329 : vector<2x32xf32>
    %331 = arith.index_cast %308 : i32 to index
    %c0_108 = arith.constant 0 : index
    %c0_109 = arith.constant 0 : index
    %332 = vector.load %arg15[%331, %c0_108, %c0_109] : memref<8x2x128xf32, #tpu.memory_space<vmem>>, vector<1x2x128xf32>
    %333 = vector.shape_cast %332 : vector<1x2x128xf32> to vector<2x128xf32>
    %334 = arith.truncf %297 : vector<2x32xf32> to vector<2x32xbf16>
    %cst_110 = arith.constant dense<0.000000e+00> : vector<2x128xf32>
    %335 = tpu.matmul %334, %28, %cst_110 {dimension_numbers = #tpu.dot_dimension_numbers<[1], [0], [0], [1], [0, 0, 1, 1], [], []>} : vector<2x32xbf16>, vector<32x128xbf16>, vector<2x128xf32> -> vector<2x128xf32>
    %336 = arith.addf %333, %335 : vector<2x128xf32>
    %337 = vector.extract_strided_slice %336 {offsets = [0, 0], sizes = [2, 96], strides = [1, 1]} : vector<2x128xf32> to vector<2x96xf32>
    %338 = arith.negf %337 : vector<2x96xf32>
    %339 = math.exp %338 : vector<2x96xf32>
    %cst_111 = arith.constant 1.000000e+00 : f32
    %340 = vector.broadcast %cst_111 : f32 to vector<2x96xf32>
    %341 = arith.addf %340, %339 : vector<2x96xf32>
    %342 = arith.divf %340, %341 : vector<2x96xf32>
    %343 = vector.extract_strided_slice %336 {offsets = [0, 96], sizes = [2, 32], strides = [1, 1]} : vector<2x128xf32> to vector<2x32xf32>
    %344 = math.tanh %343 : vector<2x32xf32>
    %345 = vector.extract_strided_slice %342 {offsets = [0, 0], sizes = [2, 32], strides = [1, 1]} : vector<2x96xf32> to vector<2x32xf32>
    %346 = vector.extract_strided_slice %342 {offsets = [0, 32], sizes = [2, 32], strides = [1, 1]} : vector<2x96xf32> to vector<2x32xf32>
    %347 = vector.extract_strided_slice %342 {offsets = [0, 64], sizes = [2, 32], strides = [1, 1]} : vector<2x96xf32> to vector<2x32xf32>
    %348 = arith.mulf %346, %295 : vector<2x32xf32>
    %349 = arith.mulf %345, %344 : vector<2x32xf32>
    %350 = arith.addf %348, %349 : vector<2x32xf32>
    %351 = math.tanh %350 : vector<2x32xf32>
    %352 = arith.mulf %347, %351 : vector<2x32xf32>
    %353 = arith.truncf %330 : vector<2x32xf32> to vector<2x32xbf16>
    %354 = arith.index_cast %c5_i32 : i32 to index
    %c0_112 = arith.constant 0 : index
    %c0_113 = arith.constant 0 : index
    %355 = vector.load %arg6[%354, %c0_112, %c0_113] : memref<8x2x32xbf16, #tpu.memory_space<vmem>>, vector<1x2x32xbf16>
    %356 = vector.shape_cast %355 : vector<1x2x32xbf16> to vector<2x32xbf16>
    %357 = vector.shape_cast %353 : vector<2x32xbf16> to vector<1x2x32xbf16>
    tpu.vector_store %arg6[%354, %c0_112, %c0_113], %357 {strides = array<i32>} : memref<8x2x32xbf16, #tpu.memory_space<vmem>>, vector<1x2x32xbf16>,
    %358 = arith.truncf %352 : vector<2x32xf32> to vector<2x32xbf16>
    %359 = arith.index_cast %308 : i32 to index
    %c0_114 = arith.constant 0 : index
    %c0_115 = arith.constant 0 : index
    %360 = vector.load %arg7[%359, %c0_114, %c0_115] : memref<8x2x32xbf16, #tpu.memory_space<vmem>>, vector<1x2x32xbf16>
    %361 = vector.shape_cast %360 : vector<1x2x32xbf16> to vector<2x32xbf16>
    %362 = vector.shape_cast %358 : vector<2x32xbf16> to vector<1x2x32xbf16>
    tpu.vector_store %arg7[%359, %c0_114, %c0_115], %362 {strides = array<i32>} : memref<8x2x32xbf16, #tpu.memory_space<vmem>>, vector<1x2x32xbf16>,
    %c6_i32 = arith.constant 6 : i32
    %c7_i32_116 = arith.constant 7 : i32
    %363 = arith.subi %c7_i32_116, %c6_i32 : i32
    %364 = arith.index_cast %c6_i32 : i32 to index
    %c0_117 = arith.constant 0 : index
    %c0_118 = arith.constant 0 : index
    %365 = vector.load %arg14[%364, %c0_117, %c0_118] : memref<8x2x128xf32, #tpu.memory_space<vmem>>, vector<1x2x128xf32>
    %366 = vector.shape_cast %365 : vector<1x2x128xf32> to vector<2x128xf32>
    %367 = arith.truncf %330 : vector<2x32xf32> to vector<2x32xbf16>
    %cst_119 = arith.constant dense<0.000000e+00> : vector<2x128xf32>
    %368 = tpu.matmul %367, %26, %cst_119 {dimension_numbers = #tpu.dot_dimension_numbers<[1], [0], [0], [1], [0, 0, 1, 1], [], []>} : vector<2x32xbf16>, vector<32x128xbf16>, vector<2x128xf32> -> vector<2x128xf32>
    %369 = arith.addf %366, %368 : vector<2x128xf32>
    %370 = vector.extract_strided_slice %369 {offsets = [0, 0], sizes = [2, 96], strides = [1, 1]} : vector<2x128xf32> to vector<2x96xf32>
    %371 = arith.negf %370 : vector<2x96xf32>
    %372 = math.exp %371 : vector<2x96xf32>
    %cst_120 = arith.constant 1.000000e+00 : f32
    %373 = vector.broadcast %cst_120 : f32 to vector<2x96xf32>
    %374 = arith.addf %373, %372 : vector<2x96xf32>
    %375 = arith.divf %373, %374 : vector<2x96xf32>
    %376 = vector.extract_strided_slice %369 {offsets = [0, 96], sizes = [2, 32], strides = [1, 1]} : vector<2x128xf32> to vector<2x32xf32>
    %377 = math.tanh %376 : vector<2x32xf32>
    %378 = vector.extract_strided_slice %375 {offsets = [0, 0], sizes = [2, 32], strides = [1, 1]} : vector<2x96xf32> to vector<2x32xf32>
    %379 = vector.extract_strided_slice %375 {offsets = [0, 32], sizes = [2, 32], strides = [1, 1]} : vector<2x96xf32> to vector<2x32xf32>
    %380 = vector.extract_strided_slice %375 {offsets = [0, 64], sizes = [2, 32], strides = [1, 1]} : vector<2x96xf32> to vector<2x32xf32>
    %381 = arith.mulf %379, %328 : vector<2x32xf32>
    %382 = arith.mulf %378, %377 : vector<2x32xf32>
    %383 = arith.addf %381, %382 : vector<2x32xf32>
    %384 = math.tanh %383 : vector<2x32xf32>
    %385 = arith.mulf %380, %384 : vector<2x32xf32>
    %386 = arith.index_cast %363 : i32 to index
    %c0_121 = arith.constant 0 : index
    %c0_122 = arith.constant 0 : index
    %387 = vector.load %arg15[%386, %c0_121, %c0_122] : memref<8x2x128xf32, #tpu.memory_space<vmem>>, vector<1x2x128xf32>
    %388 = vector.shape_cast %387 : vector<1x2x128xf32> to vector<2x128xf32>
    %389 = arith.truncf %352 : vector<2x32xf32> to vector<2x32xbf16>
    %cst_123 = arith.constant dense<0.000000e+00> : vector<2x128xf32>
    %390 = tpu.matmul %389, %28, %cst_123 {dimension_numbers = #tpu.dot_dimension_numbers<[1], [0], [0], [1], [0, 0, 1, 1], [], []>} : vector<2x32xbf16>, vector<32x128xbf16>, vector<2x128xf32> -> vector<2x128xf32>
    %391 = arith.addf %388, %390 : vector<2x128xf32>
    %392 = vector.extract_strided_slice %391 {offsets = [0, 0], sizes = [2, 96], strides = [1, 1]} : vector<2x128xf32> to vector<2x96xf32>
    %393 = arith.negf %392 : vector<2x96xf32>
    %394 = math.exp %393 : vector<2x96xf32>
    %cst_124 = arith.constant 1.000000e+00 : f32
    %395 = vector.broadcast %cst_124 : f32 to vector<2x96xf32>
    %396 = arith.addf %395, %394 : vector<2x96xf32>
    %397 = arith.divf %395, %396 : vector<2x96xf32>
    %398 = vector.extract_strided_slice %391 {offsets = [0, 96], sizes = [2, 32], strides = [1, 1]} : vector<2x128xf32> to vector<2x32xf32>
    %399 = math.tanh %398 : vector<2x32xf32>
    %400 = vector.extract_strided_slice %397 {offsets = [0, 0], sizes = [2, 32], strides = [1, 1]} : vector<2x96xf32> to vector<2x32xf32>
    %401 = vector.extract_strided_slice %397 {offsets = [0, 32], sizes = [2, 32], strides = [1, 1]} : vector<2x96xf32> to vector<2x32xf32>
    %402 = vector.extract_strided_slice %397 {offsets = [0, 64], sizes = [2, 32], strides = [1, 1]} : vector<2x96xf32> to vector<2x32xf32>
    %403 = arith.mulf %401, %350 : vector<2x32xf32>
    %404 = arith.mulf %400, %399 : vector<2x32xf32>
    %405 = arith.addf %403, %404 : vector<2x32xf32>
    %406 = math.tanh %405 : vector<2x32xf32>
    %407 = arith.mulf %402, %406 : vector<2x32xf32>
    %408 = arith.truncf %385 : vector<2x32xf32> to vector<2x32xbf16>
    %409 = arith.index_cast %c6_i32 : i32 to index
    %c0_125 = arith.constant 0 : index
    %c0_126 = arith.constant 0 : index
    %410 = vector.load %arg6[%409, %c0_125, %c0_126] : memref<8x2x32xbf16, #tpu.memory_space<vmem>>, vector<1x2x32xbf16>
    %411 = vector.shape_cast %410 : vector<1x2x32xbf16> to vector<2x32xbf16>
    %412 = vector.shape_cast %408 : vector<2x32xbf16> to vector<1x2x32xbf16>
    tpu.vector_store %arg6[%409, %c0_125, %c0_126], %412 {strides = array<i32>} : memref<8x2x32xbf16, #tpu.memory_space<vmem>>, vector<1x2x32xbf16>,
    %413 = arith.truncf %407 : vector<2x32xf32> to vector<2x32xbf16>
    %414 = arith.index_cast %363 : i32 to index
    %c0_127 = arith.constant 0 : index
    %c0_128 = arith.constant 0 : index
    %415 = vector.load %arg7[%414, %c0_127, %c0_128] : memref<8x2x32xbf16, #tpu.memory_space<vmem>>, vector<1x2x32xbf16>
    %416 = vector.shape_cast %415 : vector<1x2x32xbf16> to vector<2x32xbf16>
    %417 = vector.shape_cast %413 : vector<2x32xbf16> to vector<1x2x32xbf16>
    tpu.vector_store %arg7[%414, %c0_127, %c0_128], %417 {strides = array<i32>} : memref<8x2x32xbf16, #tpu.memory_space<vmem>>, vector<1x2x32xbf16>,
    %c7_i32_129 = arith.constant 7 : i32
    %c7_i32_130 = arith.constant 7 : i32
    %418 = arith.subi %c7_i32_130, %c7_i32_129 : i32
    %419 = arith.index_cast %c7_i32_129 : i32 to index
    %c0_131 = arith.constant 0 : index
    %c0_132 = arith.constant 0 : index
    %420 = vector.load %arg14[%419, %c0_131, %c0_132] : memref<8x2x128xf32, #tpu.memory_space<vmem>>, vector<1x2x128xf32>
    %421 = vector.shape_cast %420 : vector<1x2x128xf32> to vector<2x128xf32>
    %422 = arith.truncf %385 : vector<2x32xf32> to vector<2x32xbf16>
    %cst_133 = arith.constant dense<0.000000e+00> : vector<2x128xf32>
    %423 = tpu.matmul %422, %26, %cst_133 {dimension_numbers = #tpu.dot_dimension_numbers<[1], [0], [0], [1], [0, 0, 1, 1], [], []>} : vector<2x32xbf16>, vector<32x128xbf16>, vector<2x128xf32> -> vector<2x128xf32>
    %424 = arith.addf %421, %423 : vector<2x128xf32>
    %425 = vector.extract_strided_slice %424 {offsets = [0, 0], sizes = [2, 96], strides = [1, 1]} : vector<2x128xf32> to vector<2x96xf32>
    %426 = arith.negf %425 : vector<2x96xf32>
    %427 = math.exp %426 : vector<2x96xf32>
    %cst_134 = arith.constant 1.000000e+00 : f32
    %428 = vector.broadcast %cst_134 : f32 to vector<2x96xf32>
    %429 = arith.addf %428, %427 : vector<2x96xf32>
    %430 = arith.divf %428, %429 : vector<2x96xf32>
    %431 = vector.extract_strided_slice %424 {offsets = [0, 96], sizes = [2, 32], strides = [1, 1]} : vector<2x128xf32> to vector<2x32xf32>
    %432 = math.tanh %431 : vector<2x32xf32>
    %433 = vector.extract_strided_slice %430 {offsets = [0, 0], sizes = [2, 32], strides = [1, 1]} : vector<2x96xf32> to vector<2x32xf32>
    %434 = vector.extract_strided_slice %430 {offsets = [0, 32], sizes = [2, 32], strides = [1, 1]} : vector<2x96xf32> to vector<2x32xf32>
    %435 = vector.extract_strided_slice %430 {offsets = [0, 64], sizes = [2, 32], strides = [1, 1]} : vector<2x96xf32> to vector<2x32xf32>
    %436 = arith.mulf %434, %383 : vector<2x32xf32>
    %437 = arith.mulf %433, %432 : vector<2x32xf32>
    %438 = arith.addf %436, %437 : vector<2x32xf32>
    %439 = math.tanh %438 : vector<2x32xf32>
    %440 = arith.mulf %435, %439 : vector<2x32xf32>
    %441 = arith.index_cast %418 : i32 to index
    %c0_135 = arith.constant 0 : index
    %c0_136 = arith.constant 0 : index
    %442 = vector.load %arg15[%441, %c0_135, %c0_136] : memref<8x2x128xf32, #tpu.memory_space<vmem>>, vector<1x2x128xf32>
    %443 = vector.shape_cast %442 : vector<1x2x128xf32> to vector<2x128xf32>
    %444 = arith.truncf %407 : vector<2x32xf32> to vector<2x32xbf16>
    %cst_137 = arith.constant dense<0.000000e+00> : vector<2x128xf32>
    %445 = tpu.matmul %444, %28, %cst_137 {dimension_numbers = #tpu.dot_dimension_numbers<[1], [0], [0], [1], [0, 0, 1, 1], [], []>} : vector<2x32xbf16>, vector<32x128xbf16>, vector<2x128xf32> -> vector<2x128xf32>
    %446 = arith.addf %443, %445 : vector<2x128xf32>
    %447 = vector.extract_strided_slice %446 {offsets = [0, 0], sizes = [2, 96], strides = [1, 1]} : vector<2x128xf32> to vector<2x96xf32>
    %448 = arith.negf %447 : vector<2x96xf32>
    %449 = math.exp %448 : vector<2x96xf32>
    %cst_138 = arith.constant 1.000000e+00 : f32
    %450 = vector.broadcast %cst_138 : f32 to vector<2x96xf32>
    %451 = arith.addf %450, %449 : vector<2x96xf32>
    %452 = arith.divf %450, %451 : vector<2x96xf32>
    %453 = vector.extract_strided_slice %446 {offsets = [0, 96], sizes = [2, 32], strides = [1, 1]} : vector<2x128xf32> to vector<2x32xf32>
    %454 = math.tanh %453 : vector<2x32xf32>
    %455 = vector.extract_strided_slice %452 {offsets = [0, 0], sizes = [2, 32], strides = [1, 1]} : vector<2x96xf32> to vector<2x32xf32>
    %456 = vector.extract_strided_slice %452 {offsets = [0, 32], sizes = [2, 32], strides = [1, 1]} : vector<2x96xf32> to vector<2x32xf32>
    %457 = vector.extract_strided_slice %452 {offsets = [0, 64], sizes = [2, 32], strides = [1, 1]} : vector<2x96xf32> to vector<2x32xf32>
    %458 = arith.mulf %456, %405 : vector<2x32xf32>
    %459 = arith.mulf %455, %454 : vector<2x32xf32>
    %460 = arith.addf %458, %459 : vector<2x32xf32>
    %461 = math.tanh %460 : vector<2x32xf32>
    %462 = arith.mulf %457, %461 : vector<2x32xf32>
    %463 = arith.truncf %440 : vector<2x32xf32> to vector<2x32xbf16>
    %464 = arith.index_cast %c7_i32_129 : i32 to index
    %c0_139 = arith.constant 0 : index
    %c0_140 = arith.constant 0 : index
    %465 = vector.load %arg6[%464, %c0_139, %c0_140] : memref<8x2x32xbf16, #tpu.memory_space<vmem>>, vector<1x2x32xbf16>
    %466 = vector.shape_cast %465 : vector<1x2x32xbf16> to vector<2x32xbf16>
    %467 = vector.shape_cast %463 : vector<2x32xbf16> to vector<1x2x32xbf16>
    tpu.vector_store %arg6[%464, %c0_139, %c0_140], %467 {strides = array<i32>} : memref<8x2x32xbf16, #tpu.memory_space<vmem>>, vector<1x2x32xbf16>,
    %468 = arith.truncf %462 : vector<2x32xf32> to vector<2x32xbf16>
    %469 = arith.index_cast %418 : i32 to index
    %c0_141 = arith.constant 0 : index
    %c0_142 = arith.constant 0 : index
    %470 = vector.load %arg7[%469, %c0_141, %c0_142] : memref<8x2x32xbf16, #tpu.memory_space<vmem>>, vector<1x2x32xbf16>
    %471 = vector.shape_cast %470 : vector<1x2x32xbf16> to vector<2x32xbf16>
    %472 = vector.shape_cast %468 : vector<2x32xbf16> to vector<1x2x32xbf16>
    tpu.vector_store %arg7[%469, %c0_141, %c0_142], %472 {strides = array<i32>} : memref<8x2x32xbf16, #tpu.memory_space<vmem>>, vector<1x2x32xbf16>,
    %c8_i32 = arith.constant 8 : i32
    %c0_143 = arith.constant 0 : index
    %c0_144 = arith.constant 0 : index
    %473 = vector.load %arg10[%c0_143, %c0_144] : memref<2x32xf32, #tpu.memory_space<vmem>>, vector<2x32xf32>
    tpu.vector_store %arg10[%c0_143, %c0_144], %440 {strides = array<i32>} : memref<2x32xf32, #tpu.memory_space<vmem>>, vector<2x32xf32>,
    %c0_145 = arith.constant 0 : index
    %c0_146 = arith.constant 0 : index
    %474 = vector.load %arg11[%c0_145, %c0_146] : memref<2x32xf32, #tpu.memory_space<vmem>>, vector<2x32xf32>
    tpu.vector_store %arg11[%c0_145, %c0_146], %438 {strides = array<i32>} : memref<2x32xf32, #tpu.memory_space<vmem>>, vector<2x32xf32>,
    %c0_147 = arith.constant 0 : index
    %c0_148 = arith.constant 0 : index
    %475 = vector.load %arg12[%c0_147, %c0_148] : memref<2x32xf32, #tpu.memory_space<vmem>>, vector<2x32xf32>
    tpu.vector_store %arg12[%c0_147, %c0_148], %462 {strides = array<i32>} : memref<2x32xf32, #tpu.memory_space<vmem>>, vector<2x32xf32>,
    %c0_149 = arith.constant 0 : index
    %c0_150 = arith.constant 0 : index
    %476 = vector.load %arg13[%c0_149, %c0_150] : memref<2x32xf32, #tpu.memory_space<vmem>>, vector<2x32xf32>
    tpu.vector_store %arg13[%c0_149, %c0_150], %460 {strides = array<i32>} : memref<2x32xf32, #tpu.memory_space<vmem>>, vector<2x32xf32>,
    %c0_i32_151 = arith.constant 0 : i32
    %477 = arith.cmpi eq, %arg0, %c0_i32_151 : i32
    %478 = arith.extui %477 : i1 to i32
    %c0_i32_152 = arith.constant 0 : i32
    %479 = arith.cmpi ne, %478, %c0_i32_152 : i32
    scf.if %479 {
      %c0_153 = arith.constant 0 : index
      %c0_154 = arith.constant 0 : index
      %c0_155 = arith.constant 0 : index
      %480 = vector.load %arg8[%c0_153, %c0_154, %c0_155] : memref<2x2x32xf32, #tpu.memory_space<vmem>>, vector<1x2x32xf32>
      %481 = vector.shape_cast %480 : vector<1x2x32xf32> to vector<2x32xf32>
      %482 = vector.shape_cast %440 : vector<2x32xf32> to vector<1x2x32xf32>
      tpu.vector_store %arg8[%c0_153, %c0_154, %c0_155], %482 {strides = array<i32>} : memref<2x2x32xf32, #tpu.memory_space<vmem>>, vector<1x2x32xf32>,
      %c1_156 = arith.constant 1 : index
      %c0_157 = arith.constant 0 : index
      %c0_158 = arith.constant 0 : index
      %483 = vector.load %arg8[%c1_156, %c0_157, %c0_158] : memref<2x2x32xf32, #tpu.memory_space<vmem>>, vector<1x2x32xf32>
      %484 = vector.shape_cast %483 : vector<1x2x32xf32> to vector<2x32xf32>
      %485 = vector.shape_cast %462 : vector<2x32xf32> to vector<1x2x32xf32>
      tpu.vector_store %arg8[%c1_156, %c0_157, %c0_158], %485 {strides = array<i32>} : memref<2x2x32xf32, #tpu.memory_space<vmem>>, vector<1x2x32xf32>,
      %c0_159 = arith.constant 0 : index
      %c0_160 = arith.constant 0 : index
      %c0_161 = arith.constant 0 : index
      %486 = vector.load %arg9[%c0_159, %c0_160, %c0_161] : memref<2x2x32xf32, #tpu.memory_space<vmem>>, vector<1x2x32xf32>
      %487 = vector.shape_cast %486 : vector<1x2x32xf32> to vector<2x32xf32>
      %488 = vector.shape_cast %438 : vector<2x32xf32> to vector<1x2x32xf32>
      tpu.vector_store %arg9[%c0_159, %c0_160, %c0_161], %488 {strides = array<i32>} : memref<2x2x32xf32, #tpu.memory_space<vmem>>, vector<1x2x32xf32>,
      %c1_162 = arith.constant 1 : index
      %c0_163 = arith.constant 0 : index
      %c0_164 = arith.constant 0 : index
      %489 = vector.load %arg9[%c1_162, %c0_163, %c0_164] : memref<2x2x32xf32, #tpu.memory_space<vmem>>, vector<1x2x32xf32>
      %490 = vector.shape_cast %489 : vector<1x2x32xf32> to vector<2x32xf32>
      %491 = vector.shape_cast %460 : vector<2x32xf32> to vector<1x2x32xf32>
      tpu.vector_store %arg9[%c1_162, %c0_163, %c0_164], %491 {strides = array<i32>} : memref<2x2x32xf32, #tpu.memory_space<vmem>>, vector<1x2x32xf32>,
    } else {
    }
    return
  }
  func.func @transform_0(%arg0: i32) -> (i32, i32, i32) {
    %c0_i32 = arith.constant 0 : i32
    %c0_i32_0 = arith.constant 0 : i32
    %c0_i32_1 = arith.constant 0 : i32
    return %arg0, %c0_i32, %c0_i32_0 : i32, i32, i32
  }
  func.func @transform_1(%arg0: i32) -> (i32, i32, i32) {
    %c0_i32 = arith.constant 0 : i32
    %0 = arith.subi %c0_i32, %arg0 : i32
    %c0_i32_0 = arith.constant 0 : i32
    %c0_i32_1 = arith.constant 0 : i32
    %c0_i32_2 = arith.constant 0 : i32
    return %0, %c0_i32_0, %c0_i32_1 : i32, i32, i32
  }
  func.func @transform_2(%arg0: i32) -> (i32, i32, i32) {
    %c0_i32 = arith.constant 0 : i32
    %c0_i32_0 = arith.constant 0 : i32
    %c0_i32_1 = arith.constant 0 : i32
    %c0_i32_2 = arith.constant 0 : i32
    return %c0_i32, %c0_i32_0, %c0_i32_1 : i32, i32, i32
  }
  func.func @transform_3(%arg0: i32) -> (i32, i32, i32) {
    %c0_i32 = arith.constant 0 : i32
    %c0_i32_0 = arith.constant 0 : i32
    %c0_i32_1 = arith.constant 0 : i32
    %c0_i32_2 = arith.constant 0 : i32
    return %c0_i32, %c0_i32_0, %c0_i32_1 : i32, i32, i32
  }
  func.func @transform_4(%arg0: i32) -> (i32, i32, i32) {
    %c0_i32 = arith.constant 0 : i32
    %c0_i32_0 = arith.constant 0 : i32
    %c0_i32_1 = arith.constant 0 : i32
    %c0_i32_2 = arith.constant 0 : i32
    return %c0_i32, %c0_i32_0, %c0_i32_1 : i32, i32, i32
  }
  func.func @transform_5(%arg0: i32) -> (i32, i32, i32) {
    %c0_i32 = arith.constant 0 : i32
    %c0_i32_0 = arith.constant 0 : i32
    %c0_i32_1 = arith.constant 0 : i32
    return %arg0, %c0_i32, %c0_i32_0 : i32, i32, i32
  }
  func.func @transform_6(%arg0: i32) -> (i32, i32, i32) {
    %c0_i32 = arith.constant 0 : i32
    %0 = arith.subi %c0_i32, %arg0 : i32
    %c0_i32_0 = arith.constant 0 : i32
    %c0_i32_1 = arith.constant 0 : i32
    %c0_i32_2 = arith.constant 0 : i32
    return %0, %c0_i32_0, %c0_i32_1 : i32, i32, i32
  }
  func.func @transform_7(%arg0: i32) -> (i32, i32, i32) {
    %c0_i32 = arith.constant 0 : i32
    %c0_i32_0 = arith.constant 0 : i32
    %c0_i32_1 = arith.constant 0 : i32
    %c0_i32_2 = arith.constant 0 : i32
    return %c0_i32, %c0_i32_0, %c0_i32_1 : i32, i32, i32
  }
  func.func @transform_8(%arg0: i32) -> (i32, i32, i32) {
    %c0_i32 = arith.constant 0 : i32
    %c0_i32_0 = arith.constant 0 : i32
    %c0_i32_1 = arith.constant 0 : i32
    %c0_i32_2 = arith.constant 0 : i32
    return %c0_i32, %c0_i32_0, %c0_i32_1 : i32, i32, i32
  }
}

module attributes {stable_mosaic.version = 11 : i64} {
  func.func @kernel(%arg0: i32, %arg1: memref<8x2x32xbf16, #tpu.memory_space<vmem>>, %arg2: memref<8x2x32xbf16, #tpu.memory_space<vmem>>, %arg3: memref<8x2x32xbf16, #tpu.memory_space<vmem>>, %arg4: memref<8x2x32xbf16, #tpu.memory_space<vmem>>, %arg5: memref<2x32x128xbf16, #tpu.memory_space<vmem>>, %arg6: memref<2x32x128xbf16, #tpu.memory_space<vmem>>, %arg7: memref<2x32x128xbf16, #tpu.memory_space<vmem>>, %arg8: memref<2x1x128xf32, #tpu.memory_space<vmem>>, %arg9: memref<8x2x32xbf16, #tpu.memory_space<vmem>>, %arg10: memref<8x2x32xbf16, #tpu.memory_space<vmem>>, %arg11: memref<2x2x32xf32, #tpu.memory_space<vmem>>, %arg12: memref<2x2x32xf32, #tpu.memory_space<vmem>>, %arg13: memref<2x32xf32, #tpu.memory_space<vmem>>, %arg14: memref<2x32xf32, #tpu.memory_space<vmem>>, %arg15: memref<2x32xf32, #tpu.memory_space<vmem>>, %arg16: memref<2x32xf32, #tpu.memory_space<vmem>>, %arg17: memref<8x2x128xf32, #tpu.memory_space<vmem>>, %arg18: memref<8x2x128xf32, #tpu.memory_space<vmem>>) attributes {dimension_semantics = [#tpu.dimension_semantics<arbitrary>], iteration_bounds = array<i64: 1>, scalar_prefetch = 0 : i64, scratch_operands = 6 : i64, tpu.core_type = #tpu.core_type<tc>, window_params = [{transform_indices = @transform_0, window_bounds = array<i64: 8, 2, 32>}, {transform_indices = @transform_1, window_bounds = array<i64: 8, 2, 32>}, {transform_indices = @transform_2, window_bounds = array<i64: 8, 2, 32>}, {transform_indices = @transform_3, window_bounds = array<i64: 8, 2, 32>}, {pipeline_mode = #tpu.pipeline_mode<synchronous>, transform_indices = @transform_4, window_bounds = array<i64: 2, 32, 128>}, {pipeline_mode = #tpu.pipeline_mode<synchronous>, transform_indices = @transform_5, window_bounds = array<i64: 2, 32, 128>}, {pipeline_mode = #tpu.pipeline_mode<synchronous>, transform_indices = @transform_6, window_bounds = array<i64: 2, 32, 128>}, {pipeline_mode = #tpu.pipeline_mode<synchronous>, transform_indices = @transform_7, window_bounds = array<i64: 2, 1, 128>}, {transform_indices = @transform_8, window_bounds = array<i64: 8, 2, 32>}, {transform_indices = @transform_9, window_bounds = array<i64: 8, 2, 32>}, {pipeline_mode = #tpu.pipeline_mode<synchronous>, transform_indices = @transform_10, window_bounds = array<i64: 2, 2, 32>}, {pipeline_mode = #tpu.pipeline_mode<synchronous>, transform_indices = @transform_11, window_bounds = array<i64: 2, 2, 32>}]} {
    %c0_i32 = arith.constant 0 : i32
    %0 = arith.cmpi eq, %arg0, %c0_i32 : i32
    %1 = arith.extui %0 : i1 to i32
    %c0_i32_0 = arith.constant 0 : i32
    %2 = arith.cmpi ne, %1, %c0_i32_0 : i32
    scf.if %2 {
      %cst_167 = arith.constant 0.000000e+00 : f32
      %492 = vector.broadcast %cst_167 : f32 to vector<2x32xf32>
      %c0_168 = arith.constant 0 : index
      %c0_169 = arith.constant 0 : index
      %493 = vector.load %arg13[%c0_168, %c0_169] : memref<2x32xf32, #tpu.memory_space<vmem>>, vector<2x32xf32>
      tpu.vector_store %arg13[%c0_168, %c0_169], %492 {strides = array<i32>} : memref<2x32xf32, #tpu.memory_space<vmem>>, vector<2x32xf32>,
      %cst_170 = arith.constant 0.000000e+00 : f32
      %494 = vector.broadcast %cst_170 : f32 to vector<2x32xf32>
      %c0_171 = arith.constant 0 : index
      %c0_172 = arith.constant 0 : index
      %495 = vector.load %arg14[%c0_171, %c0_172] : memref<2x32xf32, #tpu.memory_space<vmem>>, vector<2x32xf32>
      tpu.vector_store %arg14[%c0_171, %c0_172], %494 {strides = array<i32>} : memref<2x32xf32, #tpu.memory_space<vmem>>, vector<2x32xf32>,
      %cst_173 = arith.constant 0.000000e+00 : f32
      %496 = vector.broadcast %cst_173 : f32 to vector<2x32xf32>
      %c0_174 = arith.constant 0 : index
      %c0_175 = arith.constant 0 : index
      %497 = vector.load %arg15[%c0_174, %c0_175] : memref<2x32xf32, #tpu.memory_space<vmem>>, vector<2x32xf32>
      tpu.vector_store %arg15[%c0_174, %c0_175], %496 {strides = array<i32>} : memref<2x32xf32, #tpu.memory_space<vmem>>, vector<2x32xf32>,
      %cst_176 = arith.constant 0.000000e+00 : f32
      %498 = vector.broadcast %cst_176 : f32 to vector<2x32xf32>
      %c0_177 = arith.constant 0 : index
      %c0_178 = arith.constant 0 : index
      %499 = vector.load %arg16[%c0_177, %c0_178] : memref<2x32xf32, #tpu.memory_space<vmem>>, vector<2x32xf32>
      tpu.vector_store %arg16[%c0_177, %c0_178], %498 {strides = array<i32>} : memref<2x32xf32, #tpu.memory_space<vmem>>, vector<2x32xf32>,
    } else {
    }
    %c0 = arith.constant 0 : index
    %c0_1 = arith.constant 0 : index
    %c0_2 = arith.constant 0 : index
    %3 = vector.load %arg8[%c0, %c0_1, %c0_2] : memref<2x1x128xf32, #tpu.memory_space<vmem>>, vector<1x1x128xf32>
    %4 = vector.shape_cast %3 : vector<1x1x128xf32> to vector<1x128xf32>
    %c1 = arith.constant 1 : index
    %c0_3 = arith.constant 0 : index
    %c0_4 = arith.constant 0 : index
    %5 = vector.load %arg8[%c1, %c0_3, %c0_4] : memref<2x1x128xf32, #tpu.memory_space<vmem>>, vector<1x1x128xf32>
    %6 = vector.shape_cast %5 : vector<1x1x128xf32> to vector<1x128xf32>
    %c0_5 = arith.constant 0 : index
    %c0_6 = arith.constant 0 : index
    %c0_7 = arith.constant 0 : index
    %7 = vector.load %arg1[%c0_5, %c0_6, %c0_7] : memref<8x2x32xbf16, #tpu.memory_space<vmem>>, vector<8x2x32xbf16>
    %8 = vector.shape_cast %7 : vector<8x2x32xbf16> to vector<16x32xbf16>
    %c0_8 = arith.constant 0 : index
    %c0_9 = arith.constant 0 : index
    %c0_10 = arith.constant 0 : index
    %9 = vector.load %arg3[%c0_8, %c0_9, %c0_10] : memref<8x2x32xbf16, #tpu.memory_space<vmem>>, vector<8x2x32xbf16>
    %10 = vector.shape_cast %9 : vector<8x2x32xbf16> to vector<16x32xbf16>
    %c0_11 = arith.constant 0 : index
    %c0_12 = arith.constant 0 : index
    %c0_13 = arith.constant 0 : index
    %11 = vector.load %arg5[%c0_11, %c0_12, %c0_13] : memref<2x32x128xbf16, #tpu.memory_space<vmem>>, vector<1x32x128xbf16>
    %12 = vector.shape_cast %11 : vector<1x32x128xbf16> to vector<32x128xbf16>
    %cst = arith.constant dense<0.000000e+00> : vector<16x128xf32>
    %13 = tpu.matmul %8, %12, %cst {dimension_numbers = #tpu.dot_dimension_numbers<[1], [0], [0], [1], [0, 0, 1, 1], [], []>} : vector<16x32xbf16>, vector<32x128xbf16>, vector<16x128xf32> -> vector<16x128xf32>
    %14 = vector.broadcast %4 : vector<1x128xf32> to vector<16x128xf32>
    %15 = arith.addf %14, %13 : vector<16x128xf32>
    %c1_14 = arith.constant 1 : index
    %c0_15 = arith.constant 0 : index
    %c0_16 = arith.constant 0 : index
    %16 = vector.load %arg5[%c1_14, %c0_15, %c0_16] : memref<2x32x128xbf16, #tpu.memory_space<vmem>>, vector<1x32x128xbf16>
    %17 = vector.shape_cast %16 : vector<1x32x128xbf16> to vector<32x128xbf16>
    %cst_17 = arith.constant dense<0.000000e+00> : vector<16x128xf32>
    %18 = tpu.matmul %10, %17, %cst_17 {dimension_numbers = #tpu.dot_dimension_numbers<[1], [0], [0], [1], [0, 0, 1, 1], [], []>} : vector<16x32xbf16>, vector<32x128xbf16>, vector<16x128xf32> -> vector<16x128xf32>
    %19 = vector.broadcast %6 : vector<1x128xf32> to vector<16x128xf32>
    %20 = arith.addf %19, %18 : vector<16x128xf32>
    %c0_18 = arith.constant 0 : index
    %c0_19 = arith.constant 0 : index
    %c0_20 = arith.constant 0 : index
    %21 = vector.load %arg2[%c0_18, %c0_19, %c0_20] : memref<8x2x32xbf16, #tpu.memory_space<vmem>>, vector<8x2x32xbf16>
    %22 = vector.shape_cast %21 : vector<8x2x32xbf16> to vector<16x32xbf16>
    %c0_21 = arith.constant 0 : index
    %c0_22 = arith.constant 0 : index
    %c0_23 = arith.constant 0 : index
    %23 = vector.load %arg4[%c0_21, %c0_22, %c0_23] : memref<8x2x32xbf16, #tpu.memory_space<vmem>>, vector<8x2x32xbf16>
    %24 = vector.shape_cast %23 : vector<8x2x32xbf16> to vector<16x32xbf16>
    %c0_24 = arith.constant 0 : index
    %c0_25 = arith.constant 0 : index
    %c0_26 = arith.constant 0 : index
    %25 = vector.load %arg6[%c0_24, %c0_25, %c0_26] : memref<2x32x128xbf16, #tpu.memory_space<vmem>>, vector<1x32x128xbf16>
    %26 = vector.shape_cast %25 : vector<1x32x128xbf16> to vector<32x128xbf16>
    %cst_27 = arith.constant dense<0.000000e+00> : vector<16x128xf32>
    %27 = tpu.matmul %22, %26, %cst_27 {dimension_numbers = #tpu.dot_dimension_numbers<[1], [0], [0], [1], [0, 0, 1, 1], [], []>} : vector<16x32xbf16>, vector<32x128xbf16>, vector<16x128xf32> -> vector<16x128xf32>
    %28 = arith.addf %15, %27 : vector<16x128xf32>
    %c1_28 = arith.constant 1 : index
    %c0_29 = arith.constant 0 : index
    %c0_30 = arith.constant 0 : index
    %29 = vector.load %arg6[%c1_28, %c0_29, %c0_30] : memref<2x32x128xbf16, #tpu.memory_space<vmem>>, vector<1x32x128xbf16>
    %30 = vector.shape_cast %29 : vector<1x32x128xbf16> to vector<32x128xbf16>
    %cst_31 = arith.constant dense<0.000000e+00> : vector<16x128xf32>
    %31 = tpu.matmul %24, %30, %cst_31 {dimension_numbers = #tpu.dot_dimension_numbers<[1], [0], [0], [1], [0, 0, 1, 1], [], []>} : vector<16x32xbf16>, vector<32x128xbf16>, vector<16x128xf32> -> vector<16x128xf32>
    %32 = arith.addf %20, %31 : vector<16x128xf32>
    %33 = vector.shape_cast %28 : vector<16x128xf32> to vector<8x2x128xf32>
    %c0_32 = arith.constant 0 : index
    %c0_33 = arith.constant 0 : index
    %c0_34 = arith.constant 0 : index
    %34 = vector.load %arg17[%c0_32, %c0_33, %c0_34] : memref<8x2x128xf32, #tpu.memory_space<vmem>>, vector<8x2x128xf32>
    tpu.vector_store %arg17[%c0_32, %c0_33, %c0_34], %33 {strides = array<i32>} : memref<8x2x128xf32, #tpu.memory_space<vmem>>, vector<8x2x128xf32>,
    %35 = vector.shape_cast %32 : vector<16x128xf32> to vector<8x2x128xf32>
    %c0_35 = arith.constant 0 : index
    %c0_36 = arith.constant 0 : index
    %c0_37 = arith.constant 0 : index
    %36 = vector.load %arg18[%c0_35, %c0_36, %c0_37] : memref<8x2x128xf32, #tpu.memory_space<vmem>>, vector<8x2x128xf32>
    tpu.vector_store %arg18[%c0_35, %c0_36, %c0_37], %35 {strides = array<i32>} : memref<8x2x128xf32, #tpu.memory_space<vmem>>, vector<8x2x128xf32>,
    %c0_38 = arith.constant 0 : index
    %c0_39 = arith.constant 0 : index
    %c0_40 = arith.constant 0 : index
    %37 = vector.load %arg7[%c0_38, %c0_39, %c0_40] : memref<2x32x128xbf16, #tpu.memory_space<vmem>>, vector<1x32x128xbf16>
    %38 = vector.shape_cast %37 : vector<1x32x128xbf16> to vector<32x128xbf16>
    %c1_41 = arith.constant 1 : index
    %c0_42 = arith.constant 0 : index
    %c0_43 = arith.constant 0 : index
    %39 = vector.load %arg7[%c1_41, %c0_42, %c0_43] : memref<2x32x128xbf16, #tpu.memory_space<vmem>>, vector<1x32x128xbf16>
    %40 = vector.shape_cast %39 : vector<1x32x128xbf16> to vector<32x128xbf16>
    %c0_44 = arith.constant 0 : index
    %c0_45 = arith.constant 0 : index
    %41 = vector.load %arg13[%c0_44, %c0_45] : memref<2x32xf32, #tpu.memory_space<vmem>>, vector<2x32xf32>
    %c0_46 = arith.constant 0 : index
    %c0_47 = arith.constant 0 : index
    %42 = vector.load %arg14[%c0_46, %c0_47] : memref<2x32xf32, #tpu.memory_space<vmem>>, vector<2x32xf32>
    %c0_48 = arith.constant 0 : index
    %c0_49 = arith.constant 0 : index
    %43 = vector.load %arg15[%c0_48, %c0_49] : memref<2x32xf32, #tpu.memory_space<vmem>>, vector<2x32xf32>
    %c0_50 = arith.constant 0 : index
    %c0_51 = arith.constant 0 : index
    %44 = vector.load %arg16[%c0_50, %c0_51] : memref<2x32xf32, #tpu.memory_space<vmem>>, vector<2x32xf32>
    %c0_i32_52 = arith.constant 0 : i32
    %c7_i32 = arith.constant 7 : i32
    %45 = arith.subi %c7_i32, %c0_i32_52 : i32
    %46 = arith.index_cast %c0_i32_52 : i32 to index
    %c0_53 = arith.constant 0 : index
    %c0_54 = arith.constant 0 : index
    %47 = vector.load %arg17[%46, %c0_53, %c0_54] : memref<8x2x128xf32, #tpu.memory_space<vmem>>, vector<1x2x128xf32>
    %48 = vector.shape_cast %47 : vector<1x2x128xf32> to vector<2x128xf32>
    %49 = arith.truncf %41 : vector<2x32xf32> to vector<2x32xbf16>
    %cst_55 = arith.constant dense<0.000000e+00> : vector<2x128xf32>
    %50 = tpu.matmul %49, %38, %cst_55 {dimension_numbers = #tpu.dot_dimension_numbers<[1], [0], [0], [1], [0, 0, 1, 1], [], []>} : vector<2x32xbf16>, vector<32x128xbf16>, vector<2x128xf32> -> vector<2x128xf32>
    %51 = arith.addf %48, %50 : vector<2x128xf32>
    %52 = vector.extract_strided_slice %51 {offsets = [0, 0], sizes = [2, 96], strides = [1, 1]} : vector<2x128xf32> to vector<2x96xf32>
    %53 = arith.negf %52 : vector<2x96xf32>
    %54 = math.exp %53 : vector<2x96xf32>
    %cst_56 = arith.constant 1.000000e+00 : f32
    %55 = vector.broadcast %cst_56 : f32 to vector<2x96xf32>
    %56 = arith.addf %55, %54 : vector<2x96xf32>
    %57 = arith.divf %55, %56 : vector<2x96xf32>
    %58 = vector.extract_strided_slice %51 {offsets = [0, 96], sizes = [2, 32], strides = [1, 1]} : vector<2x128xf32> to vector<2x32xf32>
    %59 = math.tanh %58 : vector<2x32xf32>
    %60 = vector.extract_strided_slice %57 {offsets = [0, 0], sizes = [2, 32], strides = [1, 1]} : vector<2x96xf32> to vector<2x32xf32>
    %61 = vector.extract_strided_slice %57 {offsets = [0, 32], sizes = [2, 32], strides = [1, 1]} : vector<2x96xf32> to vector<2x32xf32>
    %62 = vector.extract_strided_slice %57 {offsets = [0, 64], sizes = [2, 32], strides = [1, 1]} : vector<2x96xf32> to vector<2x32xf32>
    %63 = arith.mulf %61, %42 : vector<2x32xf32>
    %64 = arith.mulf %60, %59 : vector<2x32xf32>
    %65 = arith.addf %63, %64 : vector<2x32xf32>
    %66 = math.tanh %65 : vector<2x32xf32>
    %67 = arith.mulf %62, %66 : vector<2x32xf32>
    %68 = arith.index_cast %45 : i32 to index
    %c0_57 = arith.constant 0 : index
    %c0_58 = arith.constant 0 : index
    %69 = vector.load %arg18[%68, %c0_57, %c0_58] : memref<8x2x128xf32, #tpu.memory_space<vmem>>, vector<1x2x128xf32>
    %70 = vector.shape_cast %69 : vector<1x2x128xf32> to vector<2x128xf32>
    %71 = arith.truncf %43 : vector<2x32xf32> to vector<2x32xbf16>
    %cst_59 = arith.constant dense<0.000000e+00> : vector<2x128xf32>
    %72 = tpu.matmul %71, %40, %cst_59 {dimension_numbers = #tpu.dot_dimension_numbers<[1], [0], [0], [1], [0, 0, 1, 1], [], []>} : vector<2x32xbf16>, vector<32x128xbf16>, vector<2x128xf32> -> vector<2x128xf32>
    %73 = arith.addf %70, %72 : vector<2x128xf32>
    %74 = vector.extract_strided_slice %73 {offsets = [0, 0], sizes = [2, 96], strides = [1, 1]} : vector<2x128xf32> to vector<2x96xf32>
    %75 = arith.negf %74 : vector<2x96xf32>
    %76 = math.exp %75 : vector<2x96xf32>
    %cst_60 = arith.constant 1.000000e+00 : f32
    %77 = vector.broadcast %cst_60 : f32 to vector<2x96xf32>
    %78 = arith.addf %77, %76 : vector<2x96xf32>
    %79 = arith.divf %77, %78 : vector<2x96xf32>
    %80 = vector.extract_strided_slice %73 {offsets = [0, 96], sizes = [2, 32], strides = [1, 1]} : vector<2x128xf32> to vector<2x32xf32>
    %81 = math.tanh %80 : vector<2x32xf32>
    %82 = vector.extract_strided_slice %79 {offsets = [0, 0], sizes = [2, 32], strides = [1, 1]} : vector<2x96xf32> to vector<2x32xf32>
    %83 = vector.extract_strided_slice %79 {offsets = [0, 32], sizes = [2, 32], strides = [1, 1]} : vector<2x96xf32> to vector<2x32xf32>
    %84 = vector.extract_strided_slice %79 {offsets = [0, 64], sizes = [2, 32], strides = [1, 1]} : vector<2x96xf32> to vector<2x32xf32>
    %85 = arith.mulf %83, %44 : vector<2x32xf32>
    %86 = arith.mulf %82, %81 : vector<2x32xf32>
    %87 = arith.addf %85, %86 : vector<2x32xf32>
    %88 = math.tanh %87 : vector<2x32xf32>
    %89 = arith.mulf %84, %88 : vector<2x32xf32>
    %90 = arith.truncf %67 : vector<2x32xf32> to vector<2x32xbf16>
    %91 = arith.index_cast %c0_i32_52 : i32 to index
    %c0_61 = arith.constant 0 : index
    %c0_62 = arith.constant 0 : index
    %92 = vector.load %arg9[%91, %c0_61, %c0_62] : memref<8x2x32xbf16, #tpu.memory_space<vmem>>, vector<1x2x32xbf16>
    %93 = vector.shape_cast %92 : vector<1x2x32xbf16> to vector<2x32xbf16>
    %94 = vector.shape_cast %90 : vector<2x32xbf16> to vector<1x2x32xbf16>
    tpu.vector_store %arg9[%91, %c0_61, %c0_62], %94 {strides = array<i32>} : memref<8x2x32xbf16, #tpu.memory_space<vmem>>, vector<1x2x32xbf16>,
    %95 = arith.truncf %89 : vector<2x32xf32> to vector<2x32xbf16>
    %96 = arith.index_cast %45 : i32 to index
    %c0_63 = arith.constant 0 : index
    %c0_64 = arith.constant 0 : index
    %97 = vector.load %arg10[%96, %c0_63, %c0_64] : memref<8x2x32xbf16, #tpu.memory_space<vmem>>, vector<1x2x32xbf16>
    %98 = vector.shape_cast %97 : vector<1x2x32xbf16> to vector<2x32xbf16>
    %99 = vector.shape_cast %95 : vector<2x32xbf16> to vector<1x2x32xbf16>
    tpu.vector_store %arg10[%96, %c0_63, %c0_64], %99 {strides = array<i32>} : memref<8x2x32xbf16, #tpu.memory_space<vmem>>, vector<1x2x32xbf16>,
    %c1_i32 = arith.constant 1 : i32
    %c7_i32_65 = arith.constant 7 : i32
    %100 = arith.subi %c7_i32_65, %c1_i32 : i32
    %101 = arith.index_cast %c1_i32 : i32 to index
    %c0_66 = arith.constant 0 : index
    %c0_67 = arith.constant 0 : index
    %102 = vector.load %arg17[%101, %c0_66, %c0_67] : memref<8x2x128xf32, #tpu.memory_space<vmem>>, vector<1x2x128xf32>
    %103 = vector.shape_cast %102 : vector<1x2x128xf32> to vector<2x128xf32>
    %104 = arith.truncf %67 : vector<2x32xf32> to vector<2x32xbf16>
    %cst_68 = arith.constant dense<0.000000e+00> : vector<2x128xf32>
    %105 = tpu.matmul %104, %38, %cst_68 {dimension_numbers = #tpu.dot_dimension_numbers<[1], [0], [0], [1], [0, 0, 1, 1], [], []>} : vector<2x32xbf16>, vector<32x128xbf16>, vector<2x128xf32> -> vector<2x128xf32>
    %106 = arith.addf %103, %105 : vector<2x128xf32>
    %107 = vector.extract_strided_slice %106 {offsets = [0, 0], sizes = [2, 96], strides = [1, 1]} : vector<2x128xf32> to vector<2x96xf32>
    %108 = arith.negf %107 : vector<2x96xf32>
    %109 = math.exp %108 : vector<2x96xf32>
    %cst_69 = arith.constant 1.000000e+00 : f32
    %110 = vector.broadcast %cst_69 : f32 to vector<2x96xf32>
    %111 = arith.addf %110, %109 : vector<2x96xf32>
    %112 = arith.divf %110, %111 : vector<2x96xf32>
    %113 = vector.extract_strided_slice %106 {offsets = [0, 96], sizes = [2, 32], strides = [1, 1]} : vector<2x128xf32> to vector<2x32xf32>
    %114 = math.tanh %113 : vector<2x32xf32>
    %115 = vector.extract_strided_slice %112 {offsets = [0, 0], sizes = [2, 32], strides = [1, 1]} : vector<2x96xf32> to vector<2x32xf32>
    %116 = vector.extract_strided_slice %112 {offsets = [0, 32], sizes = [2, 32], strides = [1, 1]} : vector<2x96xf32> to vector<2x32xf32>
    %117 = vector.extract_strided_slice %112 {offsets = [0, 64], sizes = [2, 32], strides = [1, 1]} : vector<2x96xf32> to vector<2x32xf32>
    %118 = arith.mulf %116, %65 : vector<2x32xf32>
    %119 = arith.mulf %115, %114 : vector<2x32xf32>
    %120 = arith.addf %118, %119 : vector<2x32xf32>
    %121 = math.tanh %120 : vector<2x32xf32>
    %122 = arith.mulf %117, %121 : vector<2x32xf32>
    %123 = arith.index_cast %100 : i32 to index
    %c0_70 = arith.constant 0 : index
    %c0_71 = arith.constant 0 : index
    %124 = vector.load %arg18[%123, %c0_70, %c0_71] : memref<8x2x128xf32, #tpu.memory_space<vmem>>, vector<1x2x128xf32>
    %125 = vector.shape_cast %124 : vector<1x2x128xf32> to vector<2x128xf32>
    %126 = arith.truncf %89 : vector<2x32xf32> to vector<2x32xbf16>
    %cst_72 = arith.constant dense<0.000000e+00> : vector<2x128xf32>
    %127 = tpu.matmul %126, %40, %cst_72 {dimension_numbers = #tpu.dot_dimension_numbers<[1], [0], [0], [1], [0, 0, 1, 1], [], []>} : vector<2x32xbf16>, vector<32x128xbf16>, vector<2x128xf32> -> vector<2x128xf32>
    %128 = arith.addf %125, %127 : vector<2x128xf32>
    %129 = vector.extract_strided_slice %128 {offsets = [0, 0], sizes = [2, 96], strides = [1, 1]} : vector<2x128xf32> to vector<2x96xf32>
    %130 = arith.negf %129 : vector<2x96xf32>
    %131 = math.exp %130 : vector<2x96xf32>
    %cst_73 = arith.constant 1.000000e+00 : f32
    %132 = vector.broadcast %cst_73 : f32 to vector<2x96xf32>
    %133 = arith.addf %132, %131 : vector<2x96xf32>
    %134 = arith.divf %132, %133 : vector<2x96xf32>
    %135 = vector.extract_strided_slice %128 {offsets = [0, 96], sizes = [2, 32], strides = [1, 1]} : vector<2x128xf32> to vector<2x32xf32>
    %136 = math.tanh %135 : vector<2x32xf32>
    %137 = vector.extract_strided_slice %134 {offsets = [0, 0], sizes = [2, 32], strides = [1, 1]} : vector<2x96xf32> to vector<2x32xf32>
    %138 = vector.extract_strided_slice %134 {offsets = [0, 32], sizes = [2, 32], strides = [1, 1]} : vector<2x96xf32> to vector<2x32xf32>
    %139 = vector.extract_strided_slice %134 {offsets = [0, 64], sizes = [2, 32], strides = [1, 1]} : vector<2x96xf32> to vector<2x32xf32>
    %140 = arith.mulf %138, %87 : vector<2x32xf32>
    %141 = arith.mulf %137, %136 : vector<2x32xf32>
    %142 = arith.addf %140, %141 : vector<2x32xf32>
    %143 = math.tanh %142 : vector<2x32xf32>
    %144 = arith.mulf %139, %143 : vector<2x32xf32>
    %145 = arith.truncf %122 : vector<2x32xf32> to vector<2x32xbf16>
    %146 = arith.index_cast %c1_i32 : i32 to index
    %c0_74 = arith.constant 0 : index
    %c0_75 = arith.constant 0 : index
    %147 = vector.load %arg9[%146, %c0_74, %c0_75] : memref<8x2x32xbf16, #tpu.memory_space<vmem>>, vector<1x2x32xbf16>
    %148 = vector.shape_cast %147 : vector<1x2x32xbf16> to vector<2x32xbf16>
    %149 = vector.shape_cast %145 : vector<2x32xbf16> to vector<1x2x32xbf16>
    tpu.vector_store %arg9[%146, %c0_74, %c0_75], %149 {strides = array<i32>} : memref<8x2x32xbf16, #tpu.memory_space<vmem>>, vector<1x2x32xbf16>,
    %150 = arith.truncf %144 : vector<2x32xf32> to vector<2x32xbf16>
    %151 = arith.index_cast %100 : i32 to index
    %c0_76 = arith.constant 0 : index
    %c0_77 = arith.constant 0 : index
    %152 = vector.load %arg10[%151, %c0_76, %c0_77] : memref<8x2x32xbf16, #tpu.memory_space<vmem>>, vector<1x2x32xbf16>
    %153 = vector.shape_cast %152 : vector<1x2x32xbf16> to vector<2x32xbf16>
    %154 = vector.shape_cast %150 : vector<2x32xbf16> to vector<1x2x32xbf16>
    tpu.vector_store %arg10[%151, %c0_76, %c0_77], %154 {strides = array<i32>} : memref<8x2x32xbf16, #tpu.memory_space<vmem>>, vector<1x2x32xbf16>,
    %c2_i32 = arith.constant 2 : i32
    %c7_i32_78 = arith.constant 7 : i32
    %155 = arith.subi %c7_i32_78, %c2_i32 : i32
    %156 = arith.index_cast %c2_i32 : i32 to index
    %c0_79 = arith.constant 0 : index
    %c0_80 = arith.constant 0 : index
    %157 = vector.load %arg17[%156, %c0_79, %c0_80] : memref<8x2x128xf32, #tpu.memory_space<vmem>>, vector<1x2x128xf32>
    %158 = vector.shape_cast %157 : vector<1x2x128xf32> to vector<2x128xf32>
    %159 = arith.truncf %122 : vector<2x32xf32> to vector<2x32xbf16>
    %cst_81 = arith.constant dense<0.000000e+00> : vector<2x128xf32>
    %160 = tpu.matmul %159, %38, %cst_81 {dimension_numbers = #tpu.dot_dimension_numbers<[1], [0], [0], [1], [0, 0, 1, 1], [], []>} : vector<2x32xbf16>, vector<32x128xbf16>, vector<2x128xf32> -> vector<2x128xf32>
    %161 = arith.addf %158, %160 : vector<2x128xf32>
    %162 = vector.extract_strided_slice %161 {offsets = [0, 0], sizes = [2, 96], strides = [1, 1]} : vector<2x128xf32> to vector<2x96xf32>
    %163 = arith.negf %162 : vector<2x96xf32>
    %164 = math.exp %163 : vector<2x96xf32>
    %cst_82 = arith.constant 1.000000e+00 : f32
    %165 = vector.broadcast %cst_82 : f32 to vector<2x96xf32>
    %166 = arith.addf %165, %164 : vector<2x96xf32>
    %167 = arith.divf %165, %166 : vector<2x96xf32>
    %168 = vector.extract_strided_slice %161 {offsets = [0, 96], sizes = [2, 32], strides = [1, 1]} : vector<2x128xf32> to vector<2x32xf32>
    %169 = math.tanh %168 : vector<2x32xf32>
    %170 = vector.extract_strided_slice %167 {offsets = [0, 0], sizes = [2, 32], strides = [1, 1]} : vector<2x96xf32> to vector<2x32xf32>
    %171 = vector.extract_strided_slice %167 {offsets = [0, 32], sizes = [2, 32], strides = [1, 1]} : vector<2x96xf32> to vector<2x32xf32>
    %172 = vector.extract_strided_slice %167 {offsets = [0, 64], sizes = [2, 32], strides = [1, 1]} : vector<2x96xf32> to vector<2x32xf32>
    %173 = arith.mulf %171, %120 : vector<2x32xf32>
    %174 = arith.mulf %170, %169 : vector<2x32xf32>
    %175 = arith.addf %173, %174 : vector<2x32xf32>
    %176 = math.tanh %175 : vector<2x32xf32>
    %177 = arith.mulf %172, %176 : vector<2x32xf32>
    %178 = arith.index_cast %155 : i32 to index
    %c0_83 = arith.constant 0 : index
    %c0_84 = arith.constant 0 : index
    %179 = vector.load %arg18[%178, %c0_83, %c0_84] : memref<8x2x128xf32, #tpu.memory_space<vmem>>, vector<1x2x128xf32>
    %180 = vector.shape_cast %179 : vector<1x2x128xf32> to vector<2x128xf32>
    %181 = arith.truncf %144 : vector<2x32xf32> to vector<2x32xbf16>
    %cst_85 = arith.constant dense<0.000000e+00> : vector<2x128xf32>
    %182 = tpu.matmul %181, %40, %cst_85 {dimension_numbers = #tpu.dot_dimension_numbers<[1], [0], [0], [1], [0, 0, 1, 1], [], []>} : vector<2x32xbf16>, vector<32x128xbf16>, vector<2x128xf32> -> vector<2x128xf32>
    %183 = arith.addf %180, %182 : vector<2x128xf32>
    %184 = vector.extract_strided_slice %183 {offsets = [0, 0], sizes = [2, 96], strides = [1, 1]} : vector<2x128xf32> to vector<2x96xf32>
    %185 = arith.negf %184 : vector<2x96xf32>
    %186 = math.exp %185 : vector<2x96xf32>
    %cst_86 = arith.constant 1.000000e+00 : f32
    %187 = vector.broadcast %cst_86 : f32 to vector<2x96xf32>
    %188 = arith.addf %187, %186 : vector<2x96xf32>
    %189 = arith.divf %187, %188 : vector<2x96xf32>
    %190 = vector.extract_strided_slice %183 {offsets = [0, 96], sizes = [2, 32], strides = [1, 1]} : vector<2x128xf32> to vector<2x32xf32>
    %191 = math.tanh %190 : vector<2x32xf32>
    %192 = vector.extract_strided_slice %189 {offsets = [0, 0], sizes = [2, 32], strides = [1, 1]} : vector<2x96xf32> to vector<2x32xf32>
    %193 = vector.extract_strided_slice %189 {offsets = [0, 32], sizes = [2, 32], strides = [1, 1]} : vector<2x96xf32> to vector<2x32xf32>
    %194 = vector.extract_strided_slice %189 {offsets = [0, 64], sizes = [2, 32], strides = [1, 1]} : vector<2x96xf32> to vector<2x32xf32>
    %195 = arith.mulf %193, %142 : vector<2x32xf32>
    %196 = arith.mulf %192, %191 : vector<2x32xf32>
    %197 = arith.addf %195, %196 : vector<2x32xf32>
    %198 = math.tanh %197 : vector<2x32xf32>
    %199 = arith.mulf %194, %198 : vector<2x32xf32>
    %200 = arith.truncf %177 : vector<2x32xf32> to vector<2x32xbf16>
    %201 = arith.index_cast %c2_i32 : i32 to index
    %c0_87 = arith.constant 0 : index
    %c0_88 = arith.constant 0 : index
    %202 = vector.load %arg9[%201, %c0_87, %c0_88] : memref<8x2x32xbf16, #tpu.memory_space<vmem>>, vector<1x2x32xbf16>
    %203 = vector.shape_cast %202 : vector<1x2x32xbf16> to vector<2x32xbf16>
    %204 = vector.shape_cast %200 : vector<2x32xbf16> to vector<1x2x32xbf16>
    tpu.vector_store %arg9[%201, %c0_87, %c0_88], %204 {strides = array<i32>} : memref<8x2x32xbf16, #tpu.memory_space<vmem>>, vector<1x2x32xbf16>,
    %205 = arith.truncf %199 : vector<2x32xf32> to vector<2x32xbf16>
    %206 = arith.index_cast %155 : i32 to index
    %c0_89 = arith.constant 0 : index
    %c0_90 = arith.constant 0 : index
    %207 = vector.load %arg10[%206, %c0_89, %c0_90] : memref<8x2x32xbf16, #tpu.memory_space<vmem>>, vector<1x2x32xbf16>
    %208 = vector.shape_cast %207 : vector<1x2x32xbf16> to vector<2x32xbf16>
    %209 = vector.shape_cast %205 : vector<2x32xbf16> to vector<1x2x32xbf16>
    tpu.vector_store %arg10[%206, %c0_89, %c0_90], %209 {strides = array<i32>} : memref<8x2x32xbf16, #tpu.memory_space<vmem>>, vector<1x2x32xbf16>,
    %c3_i32 = arith.constant 3 : i32
    %c7_i32_91 = arith.constant 7 : i32
    %210 = arith.subi %c7_i32_91, %c3_i32 : i32
    %211 = arith.index_cast %c3_i32 : i32 to index
    %c0_92 = arith.constant 0 : index
    %c0_93 = arith.constant 0 : index
    %212 = vector.load %arg17[%211, %c0_92, %c0_93] : memref<8x2x128xf32, #tpu.memory_space<vmem>>, vector<1x2x128xf32>
    %213 = vector.shape_cast %212 : vector<1x2x128xf32> to vector<2x128xf32>
    %214 = arith.truncf %177 : vector<2x32xf32> to vector<2x32xbf16>
    %cst_94 = arith.constant dense<0.000000e+00> : vector<2x128xf32>
    %215 = tpu.matmul %214, %38, %cst_94 {dimension_numbers = #tpu.dot_dimension_numbers<[1], [0], [0], [1], [0, 0, 1, 1], [], []>} : vector<2x32xbf16>, vector<32x128xbf16>, vector<2x128xf32> -> vector<2x128xf32>
    %216 = arith.addf %213, %215 : vector<2x128xf32>
    %217 = vector.extract_strided_slice %216 {offsets = [0, 0], sizes = [2, 96], strides = [1, 1]} : vector<2x128xf32> to vector<2x96xf32>
    %218 = arith.negf %217 : vector<2x96xf32>
    %219 = math.exp %218 : vector<2x96xf32>
    %cst_95 = arith.constant 1.000000e+00 : f32
    %220 = vector.broadcast %cst_95 : f32 to vector<2x96xf32>
    %221 = arith.addf %220, %219 : vector<2x96xf32>
    %222 = arith.divf %220, %221 : vector<2x96xf32>
    %223 = vector.extract_strided_slice %216 {offsets = [0, 96], sizes = [2, 32], strides = [1, 1]} : vector<2x128xf32> to vector<2x32xf32>
    %224 = math.tanh %223 : vector<2x32xf32>
    %225 = vector.extract_strided_slice %222 {offsets = [0, 0], sizes = [2, 32], strides = [1, 1]} : vector<2x96xf32> to vector<2x32xf32>
    %226 = vector.extract_strided_slice %222 {offsets = [0, 32], sizes = [2, 32], strides = [1, 1]} : vector<2x96xf32> to vector<2x32xf32>
    %227 = vector.extract_strided_slice %222 {offsets = [0, 64], sizes = [2, 32], strides = [1, 1]} : vector<2x96xf32> to vector<2x32xf32>
    %228 = arith.mulf %226, %175 : vector<2x32xf32>
    %229 = arith.mulf %225, %224 : vector<2x32xf32>
    %230 = arith.addf %228, %229 : vector<2x32xf32>
    %231 = math.tanh %230 : vector<2x32xf32>
    %232 = arith.mulf %227, %231 : vector<2x32xf32>
    %233 = arith.index_cast %210 : i32 to index
    %c0_96 = arith.constant 0 : index
    %c0_97 = arith.constant 0 : index
    %234 = vector.load %arg18[%233, %c0_96, %c0_97] : memref<8x2x128xf32, #tpu.memory_space<vmem>>, vector<1x2x128xf32>
    %235 = vector.shape_cast %234 : vector<1x2x128xf32> to vector<2x128xf32>
    %236 = arith.truncf %199 : vector<2x32xf32> to vector<2x32xbf16>
    %cst_98 = arith.constant dense<0.000000e+00> : vector<2x128xf32>
    %237 = tpu.matmul %236, %40, %cst_98 {dimension_numbers = #tpu.dot_dimension_numbers<[1], [0], [0], [1], [0, 0, 1, 1], [], []>} : vector<2x32xbf16>, vector<32x128xbf16>, vector<2x128xf32> -> vector<2x128xf32>
    %238 = arith.addf %235, %237 : vector<2x128xf32>
    %239 = vector.extract_strided_slice %238 {offsets = [0, 0], sizes = [2, 96], strides = [1, 1]} : vector<2x128xf32> to vector<2x96xf32>
    %240 = arith.negf %239 : vector<2x96xf32>
    %241 = math.exp %240 : vector<2x96xf32>
    %cst_99 = arith.constant 1.000000e+00 : f32
    %242 = vector.broadcast %cst_99 : f32 to vector<2x96xf32>
    %243 = arith.addf %242, %241 : vector<2x96xf32>
    %244 = arith.divf %242, %243 : vector<2x96xf32>
    %245 = vector.extract_strided_slice %238 {offsets = [0, 96], sizes = [2, 32], strides = [1, 1]} : vector<2x128xf32> to vector<2x32xf32>
    %246 = math.tanh %245 : vector<2x32xf32>
    %247 = vector.extract_strided_slice %244 {offsets = [0, 0], sizes = [2, 32], strides = [1, 1]} : vector<2x96xf32> to vector<2x32xf32>
    %248 = vector.extract_strided_slice %244 {offsets = [0, 32], sizes = [2, 32], strides = [1, 1]} : vector<2x96xf32> to vector<2x32xf32>
    %249 = vector.extract_strided_slice %244 {offsets = [0, 64], sizes = [2, 32], strides = [1, 1]} : vector<2x96xf32> to vector<2x32xf32>
    %250 = arith.mulf %248, %197 : vector<2x32xf32>
    %251 = arith.mulf %247, %246 : vector<2x32xf32>
    %252 = arith.addf %250, %251 : vector<2x32xf32>
    %253 = math.tanh %252 : vector<2x32xf32>
    %254 = arith.mulf %249, %253 : vector<2x32xf32>
    %255 = arith.truncf %232 : vector<2x32xf32> to vector<2x32xbf16>
    %256 = arith.index_cast %c3_i32 : i32 to index
    %c0_100 = arith.constant 0 : index
    %c0_101 = arith.constant 0 : index
    %257 = vector.load %arg9[%256, %c0_100, %c0_101] : memref<8x2x32xbf16, #tpu.memory_space<vmem>>, vector<1x2x32xbf16>
    %258 = vector.shape_cast %257 : vector<1x2x32xbf16> to vector<2x32xbf16>
    %259 = vector.shape_cast %255 : vector<2x32xbf16> to vector<1x2x32xbf16>
    tpu.vector_store %arg9[%256, %c0_100, %c0_101], %259 {strides = array<i32>} : memref<8x2x32xbf16, #tpu.memory_space<vmem>>, vector<1x2x32xbf16>,
    %260 = arith.truncf %254 : vector<2x32xf32> to vector<2x32xbf16>
    %261 = arith.index_cast %210 : i32 to index
    %c0_102 = arith.constant 0 : index
    %c0_103 = arith.constant 0 : index
    %262 = vector.load %arg10[%261, %c0_102, %c0_103] : memref<8x2x32xbf16, #tpu.memory_space<vmem>>, vector<1x2x32xbf16>
    %263 = vector.shape_cast %262 : vector<1x2x32xbf16> to vector<2x32xbf16>
    %264 = vector.shape_cast %260 : vector<2x32xbf16> to vector<1x2x32xbf16>
    tpu.vector_store %arg10[%261, %c0_102, %c0_103], %264 {strides = array<i32>} : memref<8x2x32xbf16, #tpu.memory_space<vmem>>, vector<1x2x32xbf16>,
    %c4_i32 = arith.constant 4 : i32
    %c7_i32_104 = arith.constant 7 : i32
    %265 = arith.subi %c7_i32_104, %c4_i32 : i32
    %266 = arith.index_cast %c4_i32 : i32 to index
    %c0_105 = arith.constant 0 : index
    %c0_106 = arith.constant 0 : index
    %267 = vector.load %arg17[%266, %c0_105, %c0_106] : memref<8x2x128xf32, #tpu.memory_space<vmem>>, vector<1x2x128xf32>
    %268 = vector.shape_cast %267 : vector<1x2x128xf32> to vector<2x128xf32>
    %269 = arith.truncf %232 : vector<2x32xf32> to vector<2x32xbf16>
    %cst_107 = arith.constant dense<0.000000e+00> : vector<2x128xf32>
    %270 = tpu.matmul %269, %38, %cst_107 {dimension_numbers = #tpu.dot_dimension_numbers<[1], [0], [0], [1], [0, 0, 1, 1], [], []>} : vector<2x32xbf16>, vector<32x128xbf16>, vector<2x128xf32> -> vector<2x128xf32>
    %271 = arith.addf %268, %270 : vector<2x128xf32>
    %272 = vector.extract_strided_slice %271 {offsets = [0, 0], sizes = [2, 96], strides = [1, 1]} : vector<2x128xf32> to vector<2x96xf32>
    %273 = arith.negf %272 : vector<2x96xf32>
    %274 = math.exp %273 : vector<2x96xf32>
    %cst_108 = arith.constant 1.000000e+00 : f32
    %275 = vector.broadcast %cst_108 : f32 to vector<2x96xf32>
    %276 = arith.addf %275, %274 : vector<2x96xf32>
    %277 = arith.divf %275, %276 : vector<2x96xf32>
    %278 = vector.extract_strided_slice %271 {offsets = [0, 96], sizes = [2, 32], strides = [1, 1]} : vector<2x128xf32> to vector<2x32xf32>
    %279 = math.tanh %278 : vector<2x32xf32>
    %280 = vector.extract_strided_slice %277 {offsets = [0, 0], sizes = [2, 32], strides = [1, 1]} : vector<2x96xf32> to vector<2x32xf32>
    %281 = vector.extract_strided_slice %277 {offsets = [0, 32], sizes = [2, 32], strides = [1, 1]} : vector<2x96xf32> to vector<2x32xf32>
    %282 = vector.extract_strided_slice %277 {offsets = [0, 64], sizes = [2, 32], strides = [1, 1]} : vector<2x96xf32> to vector<2x32xf32>
    %283 = arith.mulf %281, %230 : vector<2x32xf32>
    %284 = arith.mulf %280, %279 : vector<2x32xf32>
    %285 = arith.addf %283, %284 : vector<2x32xf32>
    %286 = math.tanh %285 : vector<2x32xf32>
    %287 = arith.mulf %282, %286 : vector<2x32xf32>
    %288 = arith.index_cast %265 : i32 to index
    %c0_109 = arith.constant 0 : index
    %c0_110 = arith.constant 0 : index
    %289 = vector.load %arg18[%288, %c0_109, %c0_110] : memref<8x2x128xf32, #tpu.memory_space<vmem>>, vector<1x2x128xf32>
    %290 = vector.shape_cast %289 : vector<1x2x128xf32> to vector<2x128xf32>
    %291 = arith.truncf %254 : vector<2x32xf32> to vector<2x32xbf16>
    %cst_111 = arith.constant dense<0.000000e+00> : vector<2x128xf32>
    %292 = tpu.matmul %291, %40, %cst_111 {dimension_numbers = #tpu.dot_dimension_numbers<[1], [0], [0], [1], [0, 0, 1, 1], [], []>} : vector<2x32xbf16>, vector<32x128xbf16>, vector<2x128xf32> -> vector<2x128xf32>
    %293 = arith.addf %290, %292 : vector<2x128xf32>
    %294 = vector.extract_strided_slice %293 {offsets = [0, 0], sizes = [2, 96], strides = [1, 1]} : vector<2x128xf32> to vector<2x96xf32>
    %295 = arith.negf %294 : vector<2x96xf32>
    %296 = math.exp %295 : vector<2x96xf32>
    %cst_112 = arith.constant 1.000000e+00 : f32
    %297 = vector.broadcast %cst_112 : f32 to vector<2x96xf32>
    %298 = arith.addf %297, %296 : vector<2x96xf32>
    %299 = arith.divf %297, %298 : vector<2x96xf32>
    %300 = vector.extract_strided_slice %293 {offsets = [0, 96], sizes = [2, 32], strides = [1, 1]} : vector<2x128xf32> to vector<2x32xf32>
    %301 = math.tanh %300 : vector<2x32xf32>
    %302 = vector.extract_strided_slice %299 {offsets = [0, 0], sizes = [2, 32], strides = [1, 1]} : vector<2x96xf32> to vector<2x32xf32>
    %303 = vector.extract_strided_slice %299 {offsets = [0, 32], sizes = [2, 32], strides = [1, 1]} : vector<2x96xf32> to vector<2x32xf32>
    %304 = vector.extract_strided_slice %299 {offsets = [0, 64], sizes = [2, 32], strides = [1, 1]} : vector<2x96xf32> to vector<2x32xf32>
    %305 = arith.mulf %303, %252 : vector<2x32xf32>
    %306 = arith.mulf %302, %301 : vector<2x32xf32>
    %307 = arith.addf %305, %306 : vector<2x32xf32>
    %308 = math.tanh %307 : vector<2x32xf32>
    %309 = arith.mulf %304, %308 : vector<2x32xf32>
    %310 = arith.truncf %287 : vector<2x32xf32> to vector<2x32xbf16>
    %311 = arith.index_cast %c4_i32 : i32 to index
    %c0_113 = arith.constant 0 : index
    %c0_114 = arith.constant 0 : index
    %312 = vector.load %arg9[%311, %c0_113, %c0_114] : memref<8x2x32xbf16, #tpu.memory_space<vmem>>, vector<1x2x32xbf16>
    %313 = vector.shape_cast %312 : vector<1x2x32xbf16> to vector<2x32xbf16>
    %314 = vector.shape_cast %310 : vector<2x32xbf16> to vector<1x2x32xbf16>
    tpu.vector_store %arg9[%311, %c0_113, %c0_114], %314 {strides = array<i32>} : memref<8x2x32xbf16, #tpu.memory_space<vmem>>, vector<1x2x32xbf16>,
    %315 = arith.truncf %309 : vector<2x32xf32> to vector<2x32xbf16>
    %316 = arith.index_cast %265 : i32 to index
    %c0_115 = arith.constant 0 : index
    %c0_116 = arith.constant 0 : index
    %317 = vector.load %arg10[%316, %c0_115, %c0_116] : memref<8x2x32xbf16, #tpu.memory_space<vmem>>, vector<1x2x32xbf16>
    %318 = vector.shape_cast %317 : vector<1x2x32xbf16> to vector<2x32xbf16>
    %319 = vector.shape_cast %315 : vector<2x32xbf16> to vector<1x2x32xbf16>
    tpu.vector_store %arg10[%316, %c0_115, %c0_116], %319 {strides = array<i32>} : memref<8x2x32xbf16, #tpu.memory_space<vmem>>, vector<1x2x32xbf16>,
    %c5_i32 = arith.constant 5 : i32
    %c7_i32_117 = arith.constant 7 : i32
    %320 = arith.subi %c7_i32_117, %c5_i32 : i32
    %321 = arith.index_cast %c5_i32 : i32 to index
    %c0_118 = arith.constant 0 : index
    %c0_119 = arith.constant 0 : index
    %322 = vector.load %arg17[%321, %c0_118, %c0_119] : memref<8x2x128xf32, #tpu.memory_space<vmem>>, vector<1x2x128xf32>
    %323 = vector.shape_cast %322 : vector<1x2x128xf32> to vector<2x128xf32>
    %324 = arith.truncf %287 : vector<2x32xf32> to vector<2x32xbf16>
    %cst_120 = arith.constant dense<0.000000e+00> : vector<2x128xf32>
    %325 = tpu.matmul %324, %38, %cst_120 {dimension_numbers = #tpu.dot_dimension_numbers<[1], [0], [0], [1], [0, 0, 1, 1], [], []>} : vector<2x32xbf16>, vector<32x128xbf16>, vector<2x128xf32> -> vector<2x128xf32>
    %326 = arith.addf %323, %325 : vector<2x128xf32>
    %327 = vector.extract_strided_slice %326 {offsets = [0, 0], sizes = [2, 96], strides = [1, 1]} : vector<2x128xf32> to vector<2x96xf32>
    %328 = arith.negf %327 : vector<2x96xf32>
    %329 = math.exp %328 : vector<2x96xf32>
    %cst_121 = arith.constant 1.000000e+00 : f32
    %330 = vector.broadcast %cst_121 : f32 to vector<2x96xf32>
    %331 = arith.addf %330, %329 : vector<2x96xf32>
    %332 = arith.divf %330, %331 : vector<2x96xf32>
    %333 = vector.extract_strided_slice %326 {offsets = [0, 96], sizes = [2, 32], strides = [1, 1]} : vector<2x128xf32> to vector<2x32xf32>
    %334 = math.tanh %333 : vector<2x32xf32>
    %335 = vector.extract_strided_slice %332 {offsets = [0, 0], sizes = [2, 32], strides = [1, 1]} : vector<2x96xf32> to vector<2x32xf32>
    %336 = vector.extract_strided_slice %332 {offsets = [0, 32], sizes = [2, 32], strides = [1, 1]} : vector<2x96xf32> to vector<2x32xf32>
    %337 = vector.extract_strided_slice %332 {offsets = [0, 64], sizes = [2, 32], strides = [1, 1]} : vector<2x96xf32> to vector<2x32xf32>
    %338 = arith.mulf %336, %285 : vector<2x32xf32>
    %339 = arith.mulf %335, %334 : vector<2x32xf32>
    %340 = arith.addf %338, %339 : vector<2x32xf32>
    %341 = math.tanh %340 : vector<2x32xf32>
    %342 = arith.mulf %337, %341 : vector<2x32xf32>
    %343 = arith.index_cast %320 : i32 to index
    %c0_122 = arith.constant 0 : index
    %c0_123 = arith.constant 0 : index
    %344 = vector.load %arg18[%343, %c0_122, %c0_123] : memref<8x2x128xf32, #tpu.memory_space<vmem>>, vector<1x2x128xf32>
    %345 = vector.shape_cast %344 : vector<1x2x128xf32> to vector<2x128xf32>
    %346 = arith.truncf %309 : vector<2x32xf32> to vector<2x32xbf16>
    %cst_124 = arith.constant dense<0.000000e+00> : vector<2x128xf32>
    %347 = tpu.matmul %346, %40, %cst_124 {dimension_numbers = #tpu.dot_dimension_numbers<[1], [0], [0], [1], [0, 0, 1, 1], [], []>} : vector<2x32xbf16>, vector<32x128xbf16>, vector<2x128xf32> -> vector<2x128xf32>
    %348 = arith.addf %345, %347 : vector<2x128xf32>
    %349 = vector.extract_strided_slice %348 {offsets = [0, 0], sizes = [2, 96], strides = [1, 1]} : vector<2x128xf32> to vector<2x96xf32>
    %350 = arith.negf %349 : vector<2x96xf32>
    %351 = math.exp %350 : vector<2x96xf32>
    %cst_125 = arith.constant 1.000000e+00 : f32
    %352 = vector.broadcast %cst_125 : f32 to vector<2x96xf32>
    %353 = arith.addf %352, %351 : vector<2x96xf32>
    %354 = arith.divf %352, %353 : vector<2x96xf32>
    %355 = vector.extract_strided_slice %348 {offsets = [0, 96], sizes = [2, 32], strides = [1, 1]} : vector<2x128xf32> to vector<2x32xf32>
    %356 = math.tanh %355 : vector<2x32xf32>
    %357 = vector.extract_strided_slice %354 {offsets = [0, 0], sizes = [2, 32], strides = [1, 1]} : vector<2x96xf32> to vector<2x32xf32>
    %358 = vector.extract_strided_slice %354 {offsets = [0, 32], sizes = [2, 32], strides = [1, 1]} : vector<2x96xf32> to vector<2x32xf32>
    %359 = vector.extract_strided_slice %354 {offsets = [0, 64], sizes = [2, 32], strides = [1, 1]} : vector<2x96xf32> to vector<2x32xf32>
    %360 = arith.mulf %358, %307 : vector<2x32xf32>
    %361 = arith.mulf %357, %356 : vector<2x32xf32>
    %362 = arith.addf %360, %361 : vector<2x32xf32>
    %363 = math.tanh %362 : vector<2x32xf32>
    %364 = arith.mulf %359, %363 : vector<2x32xf32>
    %365 = arith.truncf %342 : vector<2x32xf32> to vector<2x32xbf16>
    %366 = arith.index_cast %c5_i32 : i32 to index
    %c0_126 = arith.constant 0 : index
    %c0_127 = arith.constant 0 : index
    %367 = vector.load %arg9[%366, %c0_126, %c0_127] : memref<8x2x32xbf16, #tpu.memory_space<vmem>>, vector<1x2x32xbf16>
    %368 = vector.shape_cast %367 : vector<1x2x32xbf16> to vector<2x32xbf16>
    %369 = vector.shape_cast %365 : vector<2x32xbf16> to vector<1x2x32xbf16>
    tpu.vector_store %arg9[%366, %c0_126, %c0_127], %369 {strides = array<i32>} : memref<8x2x32xbf16, #tpu.memory_space<vmem>>, vector<1x2x32xbf16>,
    %370 = arith.truncf %364 : vector<2x32xf32> to vector<2x32xbf16>
    %371 = arith.index_cast %320 : i32 to index
    %c0_128 = arith.constant 0 : index
    %c0_129 = arith.constant 0 : index
    %372 = vector.load %arg10[%371, %c0_128, %c0_129] : memref<8x2x32xbf16, #tpu.memory_space<vmem>>, vector<1x2x32xbf16>
    %373 = vector.shape_cast %372 : vector<1x2x32xbf16> to vector<2x32xbf16>
    %374 = vector.shape_cast %370 : vector<2x32xbf16> to vector<1x2x32xbf16>
    tpu.vector_store %arg10[%371, %c0_128, %c0_129], %374 {strides = array<i32>} : memref<8x2x32xbf16, #tpu.memory_space<vmem>>, vector<1x2x32xbf16>,
    %c6_i32 = arith.constant 6 : i32
    %c7_i32_130 = arith.constant 7 : i32
    %375 = arith.subi %c7_i32_130, %c6_i32 : i32
    %376 = arith.index_cast %c6_i32 : i32 to index
    %c0_131 = arith.constant 0 : index
    %c0_132 = arith.constant 0 : index
    %377 = vector.load %arg17[%376, %c0_131, %c0_132] : memref<8x2x128xf32, #tpu.memory_space<vmem>>, vector<1x2x128xf32>
    %378 = vector.shape_cast %377 : vector<1x2x128xf32> to vector<2x128xf32>
    %379 = arith.truncf %342 : vector<2x32xf32> to vector<2x32xbf16>
    %cst_133 = arith.constant dense<0.000000e+00> : vector<2x128xf32>
    %380 = tpu.matmul %379, %38, %cst_133 {dimension_numbers = #tpu.dot_dimension_numbers<[1], [0], [0], [1], [0, 0, 1, 1], [], []>} : vector<2x32xbf16>, vector<32x128xbf16>, vector<2x128xf32> -> vector<2x128xf32>
    %381 = arith.addf %378, %380 : vector<2x128xf32>
    %382 = vector.extract_strided_slice %381 {offsets = [0, 0], sizes = [2, 96], strides = [1, 1]} : vector<2x128xf32> to vector<2x96xf32>
    %383 = arith.negf %382 : vector<2x96xf32>
    %384 = math.exp %383 : vector<2x96xf32>
    %cst_134 = arith.constant 1.000000e+00 : f32
    %385 = vector.broadcast %cst_134 : f32 to vector<2x96xf32>
    %386 = arith.addf %385, %384 : vector<2x96xf32>
    %387 = arith.divf %385, %386 : vector<2x96xf32>
    %388 = vector.extract_strided_slice %381 {offsets = [0, 96], sizes = [2, 32], strides = [1, 1]} : vector<2x128xf32> to vector<2x32xf32>
    %389 = math.tanh %388 : vector<2x32xf32>
    %390 = vector.extract_strided_slice %387 {offsets = [0, 0], sizes = [2, 32], strides = [1, 1]} : vector<2x96xf32> to vector<2x32xf32>
    %391 = vector.extract_strided_slice %387 {offsets = [0, 32], sizes = [2, 32], strides = [1, 1]} : vector<2x96xf32> to vector<2x32xf32>
    %392 = vector.extract_strided_slice %387 {offsets = [0, 64], sizes = [2, 32], strides = [1, 1]} : vector<2x96xf32> to vector<2x32xf32>
    %393 = arith.mulf %391, %340 : vector<2x32xf32>
    %394 = arith.mulf %390, %389 : vector<2x32xf32>
    %395 = arith.addf %393, %394 : vector<2x32xf32>
    %396 = math.tanh %395 : vector<2x32xf32>
    %397 = arith.mulf %392, %396 : vector<2x32xf32>
    %398 = arith.index_cast %375 : i32 to index
    %c0_135 = arith.constant 0 : index
    %c0_136 = arith.constant 0 : index
    %399 = vector.load %arg18[%398, %c0_135, %c0_136] : memref<8x2x128xf32, #tpu.memory_space<vmem>>, vector<1x2x128xf32>
    %400 = vector.shape_cast %399 : vector<1x2x128xf32> to vector<2x128xf32>
    %401 = arith.truncf %364 : vector<2x32xf32> to vector<2x32xbf16>
    %cst_137 = arith.constant dense<0.000000e+00> : vector<2x128xf32>
    %402 = tpu.matmul %401, %40, %cst_137 {dimension_numbers = #tpu.dot_dimension_numbers<[1], [0], [0], [1], [0, 0, 1, 1], [], []>} : vector<2x32xbf16>, vector<32x128xbf16>, vector<2x128xf32> -> vector<2x128xf32>
    %403 = arith.addf %400, %402 : vector<2x128xf32>
    %404 = vector.extract_strided_slice %403 {offsets = [0, 0], sizes = [2, 96], strides = [1, 1]} : vector<2x128xf32> to vector<2x96xf32>
    %405 = arith.negf %404 : vector<2x96xf32>
    %406 = math.exp %405 : vector<2x96xf32>
    %cst_138 = arith.constant 1.000000e+00 : f32
    %407 = vector.broadcast %cst_138 : f32 to vector<2x96xf32>
    %408 = arith.addf %407, %406 : vector<2x96xf32>
    %409 = arith.divf %407, %408 : vector<2x96xf32>
    %410 = vector.extract_strided_slice %403 {offsets = [0, 96], sizes = [2, 32], strides = [1, 1]} : vector<2x128xf32> to vector<2x32xf32>
    %411 = math.tanh %410 : vector<2x32xf32>
    %412 = vector.extract_strided_slice %409 {offsets = [0, 0], sizes = [2, 32], strides = [1, 1]} : vector<2x96xf32> to vector<2x32xf32>
    %413 = vector.extract_strided_slice %409 {offsets = [0, 32], sizes = [2, 32], strides = [1, 1]} : vector<2x96xf32> to vector<2x32xf32>
    %414 = vector.extract_strided_slice %409 {offsets = [0, 64], sizes = [2, 32], strides = [1, 1]} : vector<2x96xf32> to vector<2x32xf32>
    %415 = arith.mulf %413, %362 : vector<2x32xf32>
    %416 = arith.mulf %412, %411 : vector<2x32xf32>
    %417 = arith.addf %415, %416 : vector<2x32xf32>
    %418 = math.tanh %417 : vector<2x32xf32>
    %419 = arith.mulf %414, %418 : vector<2x32xf32>
    %420 = arith.truncf %397 : vector<2x32xf32> to vector<2x32xbf16>
    %421 = arith.index_cast %c6_i32 : i32 to index
    %c0_139 = arith.constant 0 : index
    %c0_140 = arith.constant 0 : index
    %422 = vector.load %arg9[%421, %c0_139, %c0_140] : memref<8x2x32xbf16, #tpu.memory_space<vmem>>, vector<1x2x32xbf16>
    %423 = vector.shape_cast %422 : vector<1x2x32xbf16> to vector<2x32xbf16>
    %424 = vector.shape_cast %420 : vector<2x32xbf16> to vector<1x2x32xbf16>
    tpu.vector_store %arg9[%421, %c0_139, %c0_140], %424 {strides = array<i32>} : memref<8x2x32xbf16, #tpu.memory_space<vmem>>, vector<1x2x32xbf16>,
    %425 = arith.truncf %419 : vector<2x32xf32> to vector<2x32xbf16>
    %426 = arith.index_cast %375 : i32 to index
    %c0_141 = arith.constant 0 : index
    %c0_142 = arith.constant 0 : index
    %427 = vector.load %arg10[%426, %c0_141, %c0_142] : memref<8x2x32xbf16, #tpu.memory_space<vmem>>, vector<1x2x32xbf16>
    %428 = vector.shape_cast %427 : vector<1x2x32xbf16> to vector<2x32xbf16>
    %429 = vector.shape_cast %425 : vector<2x32xbf16> to vector<1x2x32xbf16>
    tpu.vector_store %arg10[%426, %c0_141, %c0_142], %429 {strides = array<i32>} : memref<8x2x32xbf16, #tpu.memory_space<vmem>>, vector<1x2x32xbf16>,
    %c7_i32_143 = arith.constant 7 : i32
    %c7_i32_144 = arith.constant 7 : i32
    %430 = arith.subi %c7_i32_144, %c7_i32_143 : i32
    %431 = arith.index_cast %c7_i32_143 : i32 to index
    %c0_145 = arith.constant 0 : index
    %c0_146 = arith.constant 0 : index
    %432 = vector.load %arg17[%431, %c0_145, %c0_146] : memref<8x2x128xf32, #tpu.memory_space<vmem>>, vector<1x2x128xf32>
    %433 = vector.shape_cast %432 : vector<1x2x128xf32> to vector<2x128xf32>
    %434 = arith.truncf %397 : vector<2x32xf32> to vector<2x32xbf16>
    %cst_147 = arith.constant dense<0.000000e+00> : vector<2x128xf32>
    %435 = tpu.matmul %434, %38, %cst_147 {dimension_numbers = #tpu.dot_dimension_numbers<[1], [0], [0], [1], [0, 0, 1, 1], [], []>} : vector<2x32xbf16>, vector<32x128xbf16>, vector<2x128xf32> -> vector<2x128xf32>
    %436 = arith.addf %433, %435 : vector<2x128xf32>
    %437 = vector.extract_strided_slice %436 {offsets = [0, 0], sizes = [2, 96], strides = [1, 1]} : vector<2x128xf32> to vector<2x96xf32>
    %438 = arith.negf %437 : vector<2x96xf32>
    %439 = math.exp %438 : vector<2x96xf32>
    %cst_148 = arith.constant 1.000000e+00 : f32
    %440 = vector.broadcast %cst_148 : f32 to vector<2x96xf32>
    %441 = arith.addf %440, %439 : vector<2x96xf32>
    %442 = arith.divf %440, %441 : vector<2x96xf32>
    %443 = vector.extract_strided_slice %436 {offsets = [0, 96], sizes = [2, 32], strides = [1, 1]} : vector<2x128xf32> to vector<2x32xf32>
    %444 = math.tanh %443 : vector<2x32xf32>
    %445 = vector.extract_strided_slice %442 {offsets = [0, 0], sizes = [2, 32], strides = [1, 1]} : vector<2x96xf32> to vector<2x32xf32>
    %446 = vector.extract_strided_slice %442 {offsets = [0, 32], sizes = [2, 32], strides = [1, 1]} : vector<2x96xf32> to vector<2x32xf32>
    %447 = vector.extract_strided_slice %442 {offsets = [0, 64], sizes = [2, 32], strides = [1, 1]} : vector<2x96xf32> to vector<2x32xf32>
    %448 = arith.mulf %446, %395 : vector<2x32xf32>
    %449 = arith.mulf %445, %444 : vector<2x32xf32>
    %450 = arith.addf %448, %449 : vector<2x32xf32>
    %451 = math.tanh %450 : vector<2x32xf32>
    %452 = arith.mulf %447, %451 : vector<2x32xf32>
    %453 = arith.index_cast %430 : i32 to index
    %c0_149 = arith.constant 0 : index
    %c0_150 = arith.constant 0 : index
    %454 = vector.load %arg18[%453, %c0_149, %c0_150] : memref<8x2x128xf32, #tpu.memory_space<vmem>>, vector<1x2x128xf32>
    %455 = vector.shape_cast %454 : vector<1x2x128xf32> to vector<2x128xf32>
    %456 = arith.truncf %419 : vector<2x32xf32> to vector<2x32xbf16>
    %cst_151 = arith.constant dense<0.000000e+00> : vector<2x128xf32>
    %457 = tpu.matmul %456, %40, %cst_151 {dimension_numbers = #tpu.dot_dimension_numbers<[1], [0], [0], [1], [0, 0, 1, 1], [], []>} : vector<2x32xbf16>, vector<32x128xbf16>, vector<2x128xf32> -> vector<2x128xf32>
    %458 = arith.addf %455, %457 : vector<2x128xf32>
    %459 = vector.extract_strided_slice %458 {offsets = [0, 0], sizes = [2, 96], strides = [1, 1]} : vector<2x128xf32> to vector<2x96xf32>
    %460 = arith.negf %459 : vector<2x96xf32>
    %461 = math.exp %460 : vector<2x96xf32>
    %cst_152 = arith.constant 1.000000e+00 : f32
    %462 = vector.broadcast %cst_152 : f32 to vector<2x96xf32>
    %463 = arith.addf %462, %461 : vector<2x96xf32>
    %464 = arith.divf %462, %463 : vector<2x96xf32>
    %465 = vector.extract_strided_slice %458 {offsets = [0, 96], sizes = [2, 32], strides = [1, 1]} : vector<2x128xf32> to vector<2x32xf32>
    %466 = math.tanh %465 : vector<2x32xf32>
    %467 = vector.extract_strided_slice %464 {offsets = [0, 0], sizes = [2, 32], strides = [1, 1]} : vector<2x96xf32> to vector<2x32xf32>
    %468 = vector.extract_strided_slice %464 {offsets = [0, 32], sizes = [2, 32], strides = [1, 1]} : vector<2x96xf32> to vector<2x32xf32>
    %469 = vector.extract_strided_slice %464 {offsets = [0, 64], sizes = [2, 32], strides = [1, 1]} : vector<2x96xf32> to vector<2x32xf32>
    %470 = arith.mulf %468, %417 : vector<2x32xf32>
    %471 = arith.mulf %467, %466 : vector<2x32xf32>
    %472 = arith.addf %470, %471 : vector<2x32xf32>
    %473 = math.tanh %472 : vector<2x32xf32>
    %474 = arith.mulf %469, %473 : vector<2x32xf32>
    %475 = arith.truncf %452 : vector<2x32xf32> to vector<2x32xbf16>
    %476 = arith.index_cast %c7_i32_143 : i32 to index
    %c0_153 = arith.constant 0 : index
    %c0_154 = arith.constant 0 : index
    %477 = vector.load %arg9[%476, %c0_153, %c0_154] : memref<8x2x32xbf16, #tpu.memory_space<vmem>>, vector<1x2x32xbf16>
    %478 = vector.shape_cast %477 : vector<1x2x32xbf16> to vector<2x32xbf16>
    %479 = vector.shape_cast %475 : vector<2x32xbf16> to vector<1x2x32xbf16>
    tpu.vector_store %arg9[%476, %c0_153, %c0_154], %479 {strides = array<i32>} : memref<8x2x32xbf16, #tpu.memory_space<vmem>>, vector<1x2x32xbf16>,
    %480 = arith.truncf %474 : vector<2x32xf32> to vector<2x32xbf16>
    %481 = arith.index_cast %430 : i32 to index
    %c0_155 = arith.constant 0 : index
    %c0_156 = arith.constant 0 : index
    %482 = vector.load %arg10[%481, %c0_155, %c0_156] : memref<8x2x32xbf16, #tpu.memory_space<vmem>>, vector<1x2x32xbf16>
    %483 = vector.shape_cast %482 : vector<1x2x32xbf16> to vector<2x32xbf16>
    %484 = vector.shape_cast %480 : vector<2x32xbf16> to vector<1x2x32xbf16>
    tpu.vector_store %arg10[%481, %c0_155, %c0_156], %484 {strides = array<i32>} : memref<8x2x32xbf16, #tpu.memory_space<vmem>>, vector<1x2x32xbf16>,
    %c8_i32 = arith.constant 8 : i32
    %c0_157 = arith.constant 0 : index
    %c0_158 = arith.constant 0 : index
    %485 = vector.load %arg13[%c0_157, %c0_158] : memref<2x32xf32, #tpu.memory_space<vmem>>, vector<2x32xf32>
    tpu.vector_store %arg13[%c0_157, %c0_158], %452 {strides = array<i32>} : memref<2x32xf32, #tpu.memory_space<vmem>>, vector<2x32xf32>,
    %c0_159 = arith.constant 0 : index
    %c0_160 = arith.constant 0 : index
    %486 = vector.load %arg14[%c0_159, %c0_160] : memref<2x32xf32, #tpu.memory_space<vmem>>, vector<2x32xf32>
    tpu.vector_store %arg14[%c0_159, %c0_160], %450 {strides = array<i32>} : memref<2x32xf32, #tpu.memory_space<vmem>>, vector<2x32xf32>,
    %c0_161 = arith.constant 0 : index
    %c0_162 = arith.constant 0 : index
    %487 = vector.load %arg15[%c0_161, %c0_162] : memref<2x32xf32, #tpu.memory_space<vmem>>, vector<2x32xf32>
    tpu.vector_store %arg15[%c0_161, %c0_162], %474 {strides = array<i32>} : memref<2x32xf32, #tpu.memory_space<vmem>>, vector<2x32xf32>,
    %c0_163 = arith.constant 0 : index
    %c0_164 = arith.constant 0 : index
    %488 = vector.load %arg16[%c0_163, %c0_164] : memref<2x32xf32, #tpu.memory_space<vmem>>, vector<2x32xf32>
    tpu.vector_store %arg16[%c0_163, %c0_164], %472 {strides = array<i32>} : memref<2x32xf32, #tpu.memory_space<vmem>>, vector<2x32xf32>,
    %c0_i32_165 = arith.constant 0 : i32
    %489 = arith.cmpi eq, %arg0, %c0_i32_165 : i32
    %490 = arith.extui %489 : i1 to i32
    %c0_i32_166 = arith.constant 0 : i32
    %491 = arith.cmpi ne, %490, %c0_i32_166 : i32
    scf.if %491 {
      %c0_167 = arith.constant 0 : index
      %c0_168 = arith.constant 0 : index
      %c0_169 = arith.constant 0 : index
      %492 = vector.load %arg11[%c0_167, %c0_168, %c0_169] : memref<2x2x32xf32, #tpu.memory_space<vmem>>, vector<1x2x32xf32>
      %493 = vector.shape_cast %492 : vector<1x2x32xf32> to vector<2x32xf32>
      %494 = vector.shape_cast %452 : vector<2x32xf32> to vector<1x2x32xf32>
      tpu.vector_store %arg11[%c0_167, %c0_168, %c0_169], %494 {strides = array<i32>} : memref<2x2x32xf32, #tpu.memory_space<vmem>>, vector<1x2x32xf32>,
      %c1_170 = arith.constant 1 : index
      %c0_171 = arith.constant 0 : index
      %c0_172 = arith.constant 0 : index
      %495 = vector.load %arg11[%c1_170, %c0_171, %c0_172] : memref<2x2x32xf32, #tpu.memory_space<vmem>>, vector<1x2x32xf32>
      %496 = vector.shape_cast %495 : vector<1x2x32xf32> to vector<2x32xf32>
      %497 = vector.shape_cast %474 : vector<2x32xf32> to vector<1x2x32xf32>
      tpu.vector_store %arg11[%c1_170, %c0_171, %c0_172], %497 {strides = array<i32>} : memref<2x2x32xf32, #tpu.memory_space<vmem>>, vector<1x2x32xf32>,
      %c0_173 = arith.constant 0 : index
      %c0_174 = arith.constant 0 : index
      %c0_175 = arith.constant 0 : index
      %498 = vector.load %arg12[%c0_173, %c0_174, %c0_175] : memref<2x2x32xf32, #tpu.memory_space<vmem>>, vector<1x2x32xf32>
      %499 = vector.shape_cast %498 : vector<1x2x32xf32> to vector<2x32xf32>
      %500 = vector.shape_cast %450 : vector<2x32xf32> to vector<1x2x32xf32>
      tpu.vector_store %arg12[%c0_173, %c0_174, %c0_175], %500 {strides = array<i32>} : memref<2x2x32xf32, #tpu.memory_space<vmem>>, vector<1x2x32xf32>,
      %c1_176 = arith.constant 1 : index
      %c0_177 = arith.constant 0 : index
      %c0_178 = arith.constant 0 : index
      %501 = vector.load %arg12[%c1_176, %c0_177, %c0_178] : memref<2x2x32xf32, #tpu.memory_space<vmem>>, vector<1x2x32xf32>
      %502 = vector.shape_cast %501 : vector<1x2x32xf32> to vector<2x32xf32>
      %503 = vector.shape_cast %472 : vector<2x32xf32> to vector<1x2x32xf32>
      tpu.vector_store %arg12[%c1_176, %c0_177, %c0_178], %503 {strides = array<i32>} : memref<2x2x32xf32, #tpu.memory_space<vmem>>, vector<1x2x32xf32>,
    } else {
    }
    return
  }
  func.func @transform_0(%arg0: i32) -> (i32, i32, i32) {
    %c0_i32 = arith.constant 0 : i32
    %c0_i32_0 = arith.constant 0 : i32
    %c0_i32_1 = arith.constant 0 : i32
    return %arg0, %c0_i32, %c0_i32_0 : i32, i32, i32
  }
  func.func @transform_1(%arg0: i32) -> (i32, i32, i32) {
    %c0_i32 = arith.constant 0 : i32
    %c0_i32_0 = arith.constant 0 : i32
    %c0_i32_1 = arith.constant 0 : i32
    return %arg0, %c0_i32, %c0_i32_0 : i32, i32, i32
  }
  func.func @transform_2(%arg0: i32) -> (i32, i32, i32) {
    %c0_i32 = arith.constant 0 : i32
    %0 = arith.subi %c0_i32, %arg0 : i32
    %c0_i32_0 = arith.constant 0 : i32
    %c0_i32_1 = arith.constant 0 : i32
    %c0_i32_2 = arith.constant 0 : i32
    return %0, %c0_i32_0, %c0_i32_1 : i32, i32, i32
  }
  func.func @transform_3(%arg0: i32) -> (i32, i32, i32) {
    %c0_i32 = arith.constant 0 : i32
    %0 = arith.subi %c0_i32, %arg0 : i32
    %c0_i32_0 = arith.constant 0 : i32
    %c0_i32_1 = arith.constant 0 : i32
    %c0_i32_2 = arith.constant 0 : i32
    return %0, %c0_i32_0, %c0_i32_1 : i32, i32, i32
  }
  func.func @transform_4(%arg0: i32) -> (i32, i32, i32) {
    %c0_i32 = arith.constant 0 : i32
    %c0_i32_0 = arith.constant 0 : i32
    %c0_i32_1 = arith.constant 0 : i32
    %c0_i32_2 = arith.constant 0 : i32
    return %c0_i32, %c0_i32_0, %c0_i32_1 : i32, i32, i32
  }
  func.func @transform_5(%arg0: i32) -> (i32, i32, i32) {
    %c0_i32 = arith.constant 0 : i32
    %c0_i32_0 = arith.constant 0 : i32
    %c0_i32_1 = arith.constant 0 : i32
    %c0_i32_2 = arith.constant 0 : i32
    return %c0_i32, %c0_i32_0, %c0_i32_1 : i32, i32, i32
  }
  func.func @transform_6(%arg0: i32) -> (i32, i32, i32) {
    %c0_i32 = arith.constant 0 : i32
    %c0_i32_0 = arith.constant 0 : i32
    %c0_i32_1 = arith.constant 0 : i32
    %c0_i32_2 = arith.constant 0 : i32
    return %c0_i32, %c0_i32_0, %c0_i32_1 : i32, i32, i32
  }
  func.func @transform_7(%arg0: i32) -> (i32, i32, i32) {
    %c0_i32 = arith.constant 0 : i32
    %c0_i32_0 = arith.constant 0 : i32
    %c0_i32_1 = arith.constant 0 : i32
    %c0_i32_2 = arith.constant 0 : i32
    return %c0_i32, %c0_i32_0, %c0_i32_1 : i32, i32, i32
  }
  func.func @transform_8(%arg0: i32) -> (i32, i32, i32) {
    %c0_i32 = arith.constant 0 : i32
    %c0_i32_0 = arith.constant 0 : i32
    %c0_i32_1 = arith.constant 0 : i32
    return %arg0, %c0_i32, %c0_i32_0 : i32, i32, i32
  }
  func.func @transform_9(%arg0: i32) -> (i32, i32, i32) {
    %c0_i32 = arith.constant 0 : i32
    %0 = arith.subi %c0_i32, %arg0 : i32
    %c0_i32_0 = arith.constant 0 : i32
    %c0_i32_1 = arith.constant 0 : i32
    %c0_i32_2 = arith.constant 0 : i32
    return %0, %c0_i32_0, %c0_i32_1 : i32, i32, i32
  }
  func.func @transform_10(%arg0: i32) -> (i32, i32, i32) {
    %c0_i32 = arith.constant 0 : i32
    %c0_i32_0 = arith.constant 0 : i32
    %c0_i32_1 = arith.constant 0 : i32
    %c0_i32_2 = arith.constant 0 : i32
    return %c0_i32, %c0_i32_0, %c0_i32_1 : i32, i32, i32
  }
  func.func @transform_11(%arg0: i32) -> (i32, i32, i32) {
    %c0_i32 = arith.constant 0 : i32
    %c0_i32_0 = arith.constant 0 : i32
    %c0_i32_1 = arith.constant 0 : i32
    %c0_i32_2 = arith.constant 0 : i32
    return %c0_i32, %c0_i32_0, %c0_i32_1 : i32, i32, i32
  }
}

</mosaic_0001>

<llo_original>
// kernel: lstm_forward.2
$region0: #{lstm_forward.2}
  #allocation0 [shape = 'u32[]', space=smem, size = 0x4, offset = 0x4, fixed_abs, tag = 'smem constant byte address 0x4 - core index']
  #allocation1 [shape = 'u32[72,128]{1,0:T(1,128)}', space=vmem, size = 0x9000, scoped, tag = 'internal scratch']
  #allocation2 [shape = 'f32[2,32]{1,0:T(2,128)}', space=vmem, size = 0x400, scoped, tag = 'scratch operand']
  #allocation3 [shape = 'f32[2,32]{1,0:T(2,128)}', space=vmem, size = 0x400, scoped, tag = 'scratch operand']
  #allocation4 [shape = 'f32[2,32]{1,0:T(2,128)}', space=vmem, size = 0x400, scoped, tag = 'scratch operand']
  #allocation5 [shape = 'f32[2,32]{1,0:T(2,128)}', space=vmem, size = 0x400, scoped, tag = 'scratch operand']
  #allocation6 [shape = 'f32[8,2,128]{2,1,0:T(2,128)}', space=vmem, size = 0x2000, scoped, tag = 'scratch operand']
  #allocation7 [shape = 'f32[8,2,128]{2,1,0:T(2,128)}', space=vmem, size = 0x2000, scoped, tag = 'scratch operand']
  %s0 = inlined_call_operand.vmem [shape: bf16[8,2,16], index: 0, kind: input, shape index: {}, may-alias: {0,1}]
  %s1 = inlined_call_operand.vmem [shape: bf16[8,2,16], index: 1, kind: input, shape index: {}, may-alias: {0,1}]
  %s2 = inlined_call_operand.hbm [shape: bf16[2,16,128], index: 2, kind: input, shape index: {}]
  %s3 = inlined_call_operand.hbm [shape: bf16[2,32,128], index: 3, kind: input, shape index: {}]
  %s4 = inlined_call_operand.hbm [shape: f32[2,1,128], index: 4, kind: input, shape index: {}]
  %s5 = inlined_call_operand.vmem [shape: bf16[8,2,32], index: 5, kind: output, shape index: {0}]
  %s6 = inlined_call_operand.vmem [shape: bf16[8,2,32], index: 6, kind: output, shape index: {1}]
  %s7 = inlined_call_operand.vmem [shape: f32[2,2,32], index: 7, kind: output, shape index: {2}]
  %s8 = inlined_call_operand.vmem [shape: f32[2,2,32], index: 8, kind: output, shape index: {3}]
  %9 = xla_tuple %s5, %s6, %s7, %s8
  %s10 = sld [smem:[#allocation0]]
  $region74: #{lstm_forward.2} parent=0
    _
  %s12 = ssub.s32 1, %s10
  %s13 = scalar_select 0, %s12, %s10
  $region1: #{lstm_forward.2} parent=0
    #allocation8 [shape = 'u8[8192]{0}', space=vmem, size = 0x2000, scoped, tag = 'input window, operand 2, single buffered']
    #allocation9 [shape = 's32[1]{0}', space=sflag, size = 0x4, scoped, tag = 'scoped memory for lstm_forward.2']
    #allocation10 [shape = 'u8[16384]{0}', space=vmem, size = 0x4000, scoped, tag = 'input window, operand 3, single buffered']
    #allocation11 [shape = 's32[1]{0}', space=sflag, size = 0x4, scoped, tag = 'scoped memory for lstm_forward.2']
    #allocation12 [shape = 'u8[1024]{0}', space=vmem, size = 0x400, scoped, tag = 'input window, operand 4, single buffered']
    %14 = vsyncpa [#allocation9], 0
    %15 = vsyncpa [#allocation11], 0
    // Predicated region
    $region2: #{lstm_forward.2} parent=1 // pred_check
      _
    $region3: #{lstm_forward.2} parent=1 // pred_check_branch
      %17 = sbr.rel (0) target = $region5
    $region4: #{lstm_forward.2} parent=1 // pred_region
      _
    $region5: #{lstm_forward.2} parent=1 // pred_fallthru
      _
    // Predicated region
    $region6: #{lstm_forward.2} parent=1 // pred_check
      _
    $region7: #{lstm_forward.2} parent=1 // pred_check_branch
      %19 = sbr.rel (0) target = $region9
    $region8: #{lstm_forward.2} parent=1 // pred_region
      %s20 = ssub.s32 0, 0
      %s21 = smul.u32 8, %s20
      %p22 = scmp.lt.s32.totalorder %s21, 7
      %s23 = scalar_select %p22, %s21, 7
      %s24 = scalar_lea.vmem %s1, %s23
      %s25 = ssub.s32 0, 0
      %s26 = smul.u32 8, %s25
    $region9: #{lstm_forward.2} parent=1 // pred_fallthru
      _
    // Predicated region
    $region10: #{lstm_forward.2} parent=1 // pred_check
      _
    $region11: #{lstm_forward.2} parent=1 // pred_check_branch
      %28 = sbr.rel (0) target = $region13
    $region12: #{lstm_forward.2} parent=1 // pred_region
      %30 = vsyncadd [#allocation9], 0
      %s31 = sshll.u32 %s2, 4
      %s32 = int_to_ptr.hbm [resolvable:$true] %s31
      %s33 = sshll.u32 [#allocation8], 4
      %s34 = int_to_ptr.vmem [resolvable:$true] %s33
      %39 = dma.hbm_to_vmem [thread:$0]  %s32, 256, %s34, [#allocation9], 64, 64, 4
    $region13: #{lstm_forward.2} parent=1 // pred_fallthru
      _
    // Predicated region
    $region14: #{lstm_forward.2} parent=1 // pred_check
      _
    $region15: #{lstm_forward.2} parent=1 // pred_check_branch
      %41 = sbr.rel (0) target = $region17
    $region16: #{lstm_forward.2} parent=1 // pred_region
      %43 = vsyncadd [#allocation11], 0
      %s44 = sshll.u32 %s3, 4
      %s45 = int_to_ptr.hbm [resolvable:$true] %s44
      %s46 = sshll.u32 [#allocation10], 4
      %s47 = int_to_ptr.vmem [resolvable:$true] %s46
      %52 = dma.hbm_to_vmem [thread:$0]  %s45, 512, %s47, [#allocation11], 64, 64, 4
    $region17: #{lstm_forward.2} parent=1 // pred_fallthru
      _
    // Predicated region
    $region18: #{lstm_forward.2} parent=1 // pred_check
      _
    $region19: #{lstm_forward.2} parent=1 // pred_check_branch
      %54 = sbr.rel (0) target = $region21
    $region20: #{lstm_forward.2} parent=1 // pred_region
      %56 = vsyncadd [#allocation11], 0
      %s57 = sshll.u32 %s4, 4
      %s58 = int_to_ptr.hbm [resolvable:$true] %s57
      %s59 = sshll.u32 [#allocation12], 4
      %s60 = int_to_ptr.vmem [resolvable:$true] %s59
      %65 = dma.hbm_to_vmem [thread:$0]  %s58, 32, %s60, [#allocation11], 16, 16, 1
    $region21: #{lstm_forward.2} parent=1 // pred_fallthru
      _
    // Predicated region
    $region22: #{lstm_forward.2} parent=1 // pred_check
      _
    $region23: #{lstm_forward.2} parent=1 // pred_check_branch
      %67 = sbr.rel (0) target = $region25
    $region24: #{lstm_forward.2} parent=1 // pred_region
      %69 = dma.done [#allocation9], 256
    $region25: #{lstm_forward.2} parent=1 // pred_fallthru
      _
    // Predicated region
    $region26: #{lstm_forward.2} parent=1 // pred_check
      _
    $region27: #{lstm_forward.2} parent=1 // pred_check_branch
      %71 = sbr.rel (0) target = $region29
    $region28: #{lstm_forward.2} parent=1 // pred_region
      %73 = dma.done [#allocation11], 512
    $region29: #{lstm_forward.2} parent=1 // pred_fallthru
      _
    // Predicated region
    $region30: #{lstm_forward.2} parent=1 // pred_check
      _
    $region31: #{lstm_forward.2} parent=1 // pred_check_branch
      %75 = sbr.rel (0) target = $region33
    $region32: #{lstm_forward.2} parent=1 // pred_region
      %77 = dma.done [#allocation11], 32
    $region33: #{lstm_forward.2} parent=1 // pred_fallthru
      _
    %s78 = ssub.s32 0, 0
    %s79 = smul.u32 8, %s78
    %p80 = scmp.lt.s32.totalorder %s79, 7
    %s81 = scalar_select %p80, %s79, 7
    %s82 = scalar_lea.vmem %s1, %s81
    %s83 = ssub.s32 0, 0
    %s84 = smul.u32 8, %s83
    %p85 = scmp.lt.s32.totalorder %s84, 7
    %s86 = scalar_select %p85, %s84, 7
    %s87 = scalar_lea.vmem %s6, %s86
    %s88 = ssub.s32 0, 0
    %s89 = smul.u32 8, %s88
    %p90 = scmp.lt.s32.totalorder %s89, 7
    %s91 = scalar_select %p90, %s89, 7
    %s92 = scalar_lea.vmem %s1, %s91
    %s93 = ssub.s32 0, 0
    %s94 = smul.u32 8, %s93
    %s95 = ssub.s32 0, 0
    %s96 = smul.u32 8, %s95
    %p97 = scmp.lt.s32.totalorder %s96, 7
    %s98 = scalar_select %p97, %s96, 7
    %s99 = scalar_lea.vmem %s6, %s98
    %s100 = ssub.s32 0, 0
    %s101 = smul.u32 8, %s100
    %p103 = scmp.eq.s32.totalorder 0, 0
    // Predicated region
    $region34: #{lstm_forward.2} parent=1 // pred_check
      %p104 = pneg %p103
    $region35: #{lstm_forward.2} parent=1 // pred_check_branch
      %106 = sbr.rel (%p104) target = $region37
    $region36: #{lstm_forward.2} parent=1 // pred_region
      %vm107 = vcmask 254976
      %108 = vst.msk [vmem:[#allocation2] sm:$0x3] %vm107, 0.0
      %109 = vst.msk [vmem:[#allocation3] sm:$0x3] %vm107, 0.0
      %110 = vst.msk [vmem:[#allocation4] sm:$0x3] %vm107, 0.0
      %111 = vst.msk [vmem:[#allocation5] sm:$0x3] %vm107, 0.0
    $region37: #{lstm_forward.2} parent=1 // pred_fallthru
      _
    %v112 = vld [vmem:[#allocation12] sm:$0x1]
    %s113 = scalar_lea.vmem [#allocation12], 1
    %v114 = vld [vmem:[%s113] sm:$0x1]
    %v115 = vld [vmem:[%s0] sm:$0x1]
    %v116 = vld [vmem:[%s0 + $0x1] sm:$0x1]
    %v117 = vld [vmem:[%s0 + $0x2] sm:$0x1]
    %v118 = vld [vmem:[%s0 + $0x3] sm:$0x1]
    %v119 = vld [vmem:[%s0 + $0x4] sm:$0x1]
    %v120 = vld [vmem:[%s0 + $0x5] sm:$0x1]
    %v121 = vld [vmem:[%s0 + $0x6] sm:$0x1]
    %v122 = vld [vmem:[%s0 + $0x7] sm:$0x1]
    %v123 = vld [vmem:[%s92] sm:$0x1]
    %v124 = vld [vmem:[%s92 + $0x1] sm:$0x1]
    %v125 = vld [vmem:[%s92 + $0x2] sm:$0x1]
    %v126 = vld [vmem:[%s92 + $0x3] sm:$0x1]
    %v127 = vld [vmem:[%s92 + $0x4] sm:$0x1]
    %v128 = vld [vmem:[%s92 + $0x5] sm:$0x1]
    %v129 = vld [vmem:[%s92 + $0x6] sm:$0x1]
    %v130 = vld [vmem:[%s92 + $0x7] sm:$0x1]
    %v131 = vld [vmem:[#allocation8] sm:$0xf]
    %v132 = vld [vmem:[#allocation8 + $0x4] sm:$0xf]
    %134 = vst [vmem:[#allocation1] ss:$9 sm:$0xff] %v115
    %s136 = scalar_lea.vmem [#allocation1], 1
    %137 = vst [vmem:[%s136] ss:$9 sm:$0xff] %v116
    %s139 = scalar_lea.vmem [#allocation1], 2
    %140 = vst [vmem:[%s139] ss:$9 sm:$0xff] %v117
    %s142 = scalar_lea.vmem [#allocation1], 3
    %143 = vst [vmem:[%s142] ss:$9 sm:$0xff] %v118
    %s145 = scalar_lea.vmem [#allocation1], 4
    %146 = vst [vmem:[%s145] ss:$9 sm:$0xff] %v119
    %s148 = scalar_lea.vmem [#allocation1], 5
    %149 = vst [vmem:[%s148] ss:$9 sm:$0xff] %v120
    %s151 = scalar_lea.vmem [#allocation1], 6
    %152 = vst [vmem:[%s151] ss:$9 sm:$0xff] %v121
    %s154 = scalar_lea.vmem [#allocation1], 7
    %155 = vst [vmem:[%s154] ss:$9 sm:$0xff] %v122
    %v156 = vld [vmem:[#allocation1] sm:$0xff]
    %v159 = vunpack.c.l.b16 %v131
    %v160 = vunpack.c.l.b16 %v132
    %v161 = vpack.c.b16 %v160, %v159
    %vm163 = vcmask 130048
    %v164 = vsel %vm163, %v156, 0
    %166 = vmatpush.bf16.msra.mxu0 0
    %167 = vmatpush.bf16.msra.mxu0 0
    %168 = vmatpush.bf16.msra.mxu0 0
    %169 = vmatpush.bf16.msra.mxu0 0
    %170 = vmatpush.bf16.msra.mxu0 0
    %171 = vmatpush.bf16.msra.mxu0 0
    %172 = vmatpush.bf16.msra.mxu0 0
    %173 = vmatpush.bf16.msra.mxu0 %v161
    %174 = vmatmul.bf16.gmra.mxu0 %v164
    %v175 = vpop.f32.mrf.mxu0
    %v176 = vadd.f32 0.0, %v175
    %v177 = vpop.f32.mrf.mxu0
    %v178 = vadd.f32 0.0, %v177
    %179 = vdwg.mxu0
    %v181 = vperm.slane %v112, 0
    %v183 = vadd.f32 %v181, %v176
    %v184 = vadd.f32 %v181, %v178
    %s185 = scalar_lea.vmem [#allocation8], 8
    %v186 = vld [vmem:[%s185] sm:$0xf]
    %v187 = vld [vmem:[%s185 + $0x4] sm:$0xf]
    %189 = vst [vmem:[#allocation1] ss:$9 sm:$0xff] %v123
    %s191 = scalar_lea.vmem [#allocation1], 1
    %192 = vst [vmem:[%s191] ss:$9 sm:$0xff] %v124
    %s194 = scalar_lea.vmem [#allocation1], 2
    %195 = vst [vmem:[%s194] ss:$9 sm:$0xff] %v125
    %s197 = scalar_lea.vmem [#allocation1], 3
    %198 = vst [vmem:[%s197] ss:$9 sm:$0xff] %v126
    %s200 = scalar_lea.vmem [#allocation1], 4
    %201 = vst [vmem:[%s200] ss:$9 sm:$0xff] %v127
    %s203 = scalar_lea.vmem [#allocation1], 5
    %204 = vst [vmem:[%s203] ss:$9 sm:$0xff] %v128
    %s206 = scalar_lea.vmem [#allocation1], 6
    %207 = vst [vmem:[%s206] ss:$9 sm:$0xff] %v129
    %s209 = scalar_lea.vmem [#allocation1], 7
    %210 = vst [vmem:[%s209] ss:$9 sm:$0xff] %v130
    %v211 = vld [vmem:[#allocation1] sm:$0xff]
    %v214 = vunpack.c.l.b16 %v186
    %v215 = vunpack.c.l.b16 %v187
    %v216 = vpack.c.b16 %v215, %v214
    %v218 = vsel %vm163, %v211, 0
    %220 = vmatpush.bf16.msra.mxu0 0
    %221 = vmatpush.bf16.msra.mxu0 0
    %222 = vmatpush.bf16.msra.mxu0 0
    %223 = vmatpush.bf16.msra.mxu0 0
    %224 = vmatpush.bf16.msra.mxu0 0
    %225 = vmatpush.bf16.msra.mxu0 0
    %226 = vmatpush.bf16.msra.mxu0 0
    %227 = vmatpush.bf16.msra.mxu0 %v216
    %228 = vmatmul.bf16.gmra.mxu0 %v218
    %v229 = vpop.f32.mrf.mxu0
    %v230 = vadd.f32 0.0, %v229
    %v231 = vpop.f32.mrf.mxu0
    %v232 = vadd.f32 0.0, %v231
    %233 = vdwg.mxu0
    %v235 = vperm.slane %v114, 0
    %v237 = vadd.f32 %v235, %v230
    %v238 = vadd.f32 %v235, %v232
    %v241 = vrot.slane %v183, 2
    %v242 = vrot.slane %v183, 4
    %v243 = vrot.slane %v183, 6
    %v244 = vrot.slane %v184, 2
    %v245 = vrot.slane %v184, 4
    %v246 = vrot.slane %v184, 6
    %253 = vst [vmem:[#allocation6] sm:$0x3] %v183
    %254 = vst [vmem:[#allocation6 + $0x2] sm:$0x3] %v241
    %255 = vst [vmem:[#allocation6 + $0x4] sm:$0x3] %v242
    %256 = vst [vmem:[#allocation6 + $0x6] sm:$0x3] %v243
    %257 = vst [vmem:[#allocation6 + $0x8] sm:$0x3] %v184
    %258 = vst [vmem:[#allocation6 + $0xa] sm:$0x3] %v244
    %259 = vst [vmem:[#allocation6 + $0xc] sm:$0x3] %v245
    %260 = vst [vmem:[#allocation6 + $0xe] sm:$0x3] %v246
    %v263 = vrot.slane %v237, 2
    %v264 = vrot.slane %v237, 4
    %v265 = vrot.slane %v237, 6
    %v266 = vrot.slane %v238, 2
    %v267 = vrot.slane %v238, 4
    %v268 = vrot.slane %v238, 6
    %275 = vst [vmem:[#allocation7] sm:$0x3] %v237
    %276 = vst [vmem:[#allocation7 + $0x2] sm:$0x3] %v263
    %277 = vst [vmem:[#allocation7 + $0x4] sm:$0x3] %v264
    %278 = vst [vmem:[#allocation7 + $0x6] sm:$0x3] %v265
    %279 = vst [vmem:[#allocation7 + $0x8] sm:$0x3] %v238
    %280 = vst [vmem:[#allocation7 + $0xa] sm:$0x3] %v266
    %281 = vst [vmem:[#allocation7 + $0xc] sm:$0x3] %v267
    %282 = vst [vmem:[#allocation7 + $0xe] sm:$0x3] %v268
    %v283 = vld [vmem:[#allocation10] sm:$0xf]
    %v284 = vld [vmem:[#allocation10 + $0x4] sm:$0xf]
    %v285 = vld [vmem:[#allocation10 + $0x8] sm:$0xf]
    %v286 = vld [vmem:[#allocation10 + $0xc] sm:$0xf]
    %s287 = scalar_lea.vmem [#allocation10], 16
    %v288 = vld [vmem:[%s287] sm:$0xf]
    %v289 = vld [vmem:[%s287 + $0x4] sm:$0xf]
    %v290 = vld [vmem:[%s287 + $0x8] sm:$0xf]
    %v291 = vld [vmem:[%s287 + $0xc] sm:$0xf]
    %v292 = vld [vmem:[#allocation2] sm:$0x3]
    %v293 = vld [vmem:[#allocation3] sm:$0x3]
    %v294 = vld [vmem:[#allocation4] sm:$0x3]
    %v295 = vld [vmem:[#allocation5] sm:$0x3]
    %v296 = vld [vmem:[#allocation6] sm:$0x3]
    %v297 = vpack.c.bf16 %v292, %v292
    %v302 = vunpack.c.l.b16 %v283
    %v303 = vunpack.c.l.b16 %v284
    %v304 = vunpack.c.l.b16 %v285
    %v305 = vunpack.c.l.b16 %v286
    %v306 = vpack.c.b16 %v303, %v302
    %v307 = vpack.c.b16 %v305, %v304
    %vm310 = vcmask 261120
    %v312 = vsel %vm310, %v297, 0
    %314 = vmatpush.bf16.msra.mxu0 0
    %315 = vmatpush.bf16.msra.mxu0 0
    %316 = vmatpush.bf16.msra.mxu0 0
    %317 = vmatpush.bf16.msra.mxu0 0
    %318 = vmatpush.bf16.msra.mxu0 0
    %319 = vmatpush.bf16.msra.mxu0 0
    %320 = vmatpush.bf16.msra.mxu0 %v307
    %321 = vmatpush.bf16.msra.mxu0 %v306
    %322 = vmatmul.bf16.gmra.mxu0 %v312
    %v323 = vpop.f32.mrf.mxu0
    %v324 = vadd.f32 0.0, %v323
    %v325 = vpop.f32.mrf.mxu0
    %326 = vdwg.mxu0
    %v327 = vadd.f32 %v296, %v324
    %v328 = vxor.u32 %v327, 2147483648
    %v329 = vmul.f32 %v328, 1.442695
    %v330 = vpow.pop %v329
    %v331 = vadd.f32 %v330, 1.0
    %v332 = vrcp.pop %v331
    %v333 = vmul.f32 %v331, %v332
    %v334 = vsub.f32 1.0, %v333
    %v335 = vmul.f32 %v332, %v334
    %v336 = vadd.f32 %v332, %v335
    %vm337 = vweird.f32 %v331
    %vm338 = vweird.f32 %v332
    %vm339 = vmor %vm337, %vm338
    %v340 = vsel %vm339, %v332, %v336
    %v341 = vand.u32 2147483647, %v331
    %vm342 = vcmp.eq.f32.partialorder %v341, 8.507059e+37
    %v343 = vand.u32 %v331, 2147483648
    %v344 = vor.u32 1.1754944e-38, %v343
    %v345 = vsel %vm342, %v344, %v340
    %v346 = vmul.f32 1.0, %v345
    %v347 = vtanh.pop %v327
    %349 = vrot.lane.b32.xlu0 %v293, 32
    %v350 = vpop.permute.xlu0 %349
    %v352 = vmul.f32 %v346, %v350
    %354 = vrot.lane.b32.xlu0 %v347, 32
    %v355 = vpop.permute.xlu0 %354
    %v357 = vmul.f32 %v346, %v355
    %359 = vrot.lane.b32.xlu0 %v357, 32
    %v360 = vpop.permute.xlu0 %359
    %v362 = vadd.f32 %v352, %v360
    %v363 = vtanh.pop %v362
    %365 = vrot.lane.b32.xlu0 %v363, 32
    %v366 = vpop.permute.xlu0 %365
    %v368 = vmul.f32 %v346, %v366
    %s369 = scalar_lea.vmem [#allocation7], 14
    %v370 = vld [vmem:[%s369] sm:$0x3]
    %v371 = vpack.c.bf16 %v294, %v294
    %v376 = vunpack.c.l.b16 %v288
    %v377 = vunpack.c.l.b16 %v289
    %v378 = vunpack.c.l.b16 %v290
    %v379 = vunpack.c.l.b16 %v291
    %v380 = vpack.c.b16 %v377, %v376
    %v381 = vpack.c.b16 %v379, %v378
    %v385 = vsel %vm310, %v371, 0
    %387 = vmatpush.bf16.msra.mxu0 0
    %388 = vmatpush.bf16.msra.mxu0 0
    %389 = vmatpush.bf16.msra.mxu0 0
    %390 = vmatpush.bf16.msra.mxu0 0
    %391 = vmatpush.bf16.msra.mxu0 0
    %392 = vmatpush.bf16.msra.mxu0 0
    %393 = vmatpush.bf16.msra.mxu0 %v381
    %394 = vmatpush.bf16.msra.mxu0 %v380
    %395 = vmatmul.bf16.gmra.mxu0 %v385
    %v396 = vpop.f32.mrf.mxu0
    %v397 = vadd.f32 0.0, %v396
    %v398 = vpop.f32.mrf.mxu0
    %399 = vdwg.mxu0
    %v400 = vadd.f32 %v370, %v397
    %v401 = vxor.u32 %v400, 2147483648
    %v402 = vmul.f32 %v401, 1.442695
    %v403 = vpow.pop %v402
    %v404 = vadd.f32 %v403, 1.0
    %v405 = vrcp.pop %v404
    %v406 = vmul.f32 %v404, %v405
    %v407 = vsub.f32 1.0, %v406
    %v408 = vmul.f32 %v405, %v407
    %v409 = vadd.f32 %v405, %v408
    %vm410 = vweird.f32 %v404
    %vm411 = vweird.f32 %v405
    %vm412 = vmor %vm410, %vm411
    %v413 = vsel %vm412, %v405, %v409
    %v414 = vand.u32 2147483647, %v404
    %vm415 = vcmp.eq.f32.partialorder %v414, 8.507059e+37
    %v416 = vand.u32 %v404, 2147483648
    %v417 = vor.u32 1.1754944e-38, %v416
    %v418 = vsel %vm415, %v417, %v413
    %v419 = vmul.f32 1.0, %v418
    %v420 = vtanh.pop %v400
    %422 = vrot.lane.b32.xlu0 %v295, 32
    %v423 = vpop.permute.xlu0 %422
    %v425 = vmul.f32 %v419, %v423
    %427 = vrot.lane.b32.xlu0 %v420, 32
    %v428 = vpop.permute.xlu0 %427
    %v430 = vmul.f32 %v419, %v428
    %432 = vrot.lane.b32.xlu0 %v430, 32
    %v433 = vpop.permute.xlu0 %432
    %v435 = vadd.f32 %v425, %v433
    %v436 = vtanh.pop %v435
    %438 = vrot.lane.b32.xlu0 %v436, 32
    %v439 = vpop.permute.xlu0 %438
    %v441 = vmul.f32 %v419, %v439
    %v442 = vpack.c.bf16 %v368, %v368
    %v444 = vrot.slane %v442, 3
    %vm445 = vcmask 1040384
    %v448 = vsel %vm445, %v442, %v444
    %450 = vrot.lane.b32.xlu0 %v448, 64
    %v451 = vpop.permute.xlu0 %450
    %vm453 = vcmask 253952
    %454 = vst.msk [vmem:[%s5] sm:$0x1] %vm453, %v451
    %v455 = vpack.c.bf16 %v441, %v441
    %v457 = vrot.slane %v455, 3
    %v460 = vsel %vm445, %v455, %v457
    %462 = vrot.lane.b32.xlu0 %v460, 64
    %v463 = vpop.permute.xlu0 %462
    %s465 = scalar_lea.vmem %s99, 7
    %466 = vst.msk [vmem:[%s465] sm:$0x1] %vm453, %v463
    %s467 = scalar_lea.vmem [#allocation6], 2
    %v468 = vld [vmem:[%s467] sm:$0x3]
    %v469 = vunpack.c.l.b16 %v442
    %v470 = vpack.c.b16 %v469, %v469
    %471 = vrot.lane.b32.xlu0 %v470, 64
    %v472 = vpop.permute.xlu0 %471
    %v474 = vsel %vm310, %v472, 0
    %476 = vmatpush.bf16.msra.mxu0 0
    %477 = vmatpush.bf16.msra.mxu0 0
    %478 = vmatpush.bf16.msra.mxu0 0
    %479 = vmatpush.bf16.msra.mxu0 0
    %480 = vmatpush.bf16.msra.mxu0 0
    %481 = vmatpush.bf16.msra.mxu0 0
    %482 = vmatpush.bf16.msra.mxu0 %v307
    %483 = vmatpush.bf16.msra.mxu0 %v306
    %484 = vmatmul.bf16.gmra.mxu0 %v474
    %v485 = vpop.f32.mrf.mxu0
    %v486 = vadd.f32 0.0, %v485
    %v487 = vpop.f32.mrf.mxu0
    %488 = vdwg.mxu0
    %v489 = vadd.f32 %v468, %v486
    %v490 = vxor.u32 %v489, 2147483648
    %v491 = vmul.f32 %v490, 1.442695
    %v492 = vpow.pop %v491
    %v493 = vadd.f32 %v492, 1.0
    %v494 = vrcp.pop %v493
    %v495 = vmul.f32 %v493, %v494
    %v496 = vsub.f32 1.0, %v495
    %v497 = vmul.f32 %v494, %v496
    %v498 = vadd.f32 %v494, %v497
    %vm499 = vweird.f32 %v493
    %vm500 = vweird.f32 %v494
    %vm501 = vmor %vm499, %vm500
    %v502 = vsel %vm501, %v494, %v498
    %v503 = vand.u32 2147483647, %v493
    %vm504 = vcmp.eq.f32.partialorder %v503, 8.507059e+37
    %v505 = vand.u32 %v493, 2147483648
    %v506 = vor.u32 1.1754944e-38, %v505
    %v507 = vsel %vm504, %v506, %v502
    %v508 = vmul.f32 1.0, %v507
    %v509 = vtanh.pop %v489
    %v510 = vmul.f32 %v508, %v362
    %512 = vrot.lane.b32.xlu0 %v509, 32
    %v513 = vpop.permute.xlu0 %512
    %v515 = vmul.f32 %v508, %v513
    %517 = vrot.lane.b32.xlu0 %v515, 32
    %v518 = vpop.permute.xlu0 %517
    %v520 = vadd.f32 %v510, %v518
    %v521 = vtanh.pop %v520
    %523 = vrot.lane.b32.xlu0 %v521, 32
    %v524 = vpop.permute.xlu0 %523
    %v526 = vmul.f32 %v508, %v524
    %s527 = scalar_lea.vmem [#allocation7], 12
    %v528 = vld [vmem:[%s527] sm:$0x3]
    %v529 = vunpack.c.l.b16 %v455
    %v530 = vpack.c.b16 %v529, %v529
    %531 = vrot.lane.b32.xlu0 %v530, 64
    %v532 = vpop.permute.xlu0 %531
    %v534 = vsel %vm310, %v532, 0
    %536 = vmatpush.bf16.msra.mxu0 0
    %537 = vmatpush.bf16.msra.mxu0 0
    %538 = vmatpush.bf16.msra.mxu0 0
    %539 = vmatpush.bf16.msra.mxu0 0
    %540 = vmatpush.bf16.msra.mxu0 0
    %541 = vmatpush.bf16.msra.mxu0 0
    %542 = vmatpush.bf16.msra.mxu0 %v381
    %543 = vmatpush.bf16.msra.mxu0 %v380
    %544 = vmatmul.bf16.gmra.mxu0 %v534
    %v545 = vpop.f32.mrf.mxu0
    %v546 = vadd.f32 0.0, %v545
    %v547 = vpop.f32.mrf.mxu0
    %548 = vdwg.mxu0
    %v549 = vadd.f32 %v528, %v546
    %v550 = vxor.u32 %v549, 2147483648
    %v551 = vmul.f32 %v550, 1.442695
    %v552 = vpow.pop %v551
    %v553 = vadd.f32 %v552, 1.0
    %v554 = vrcp.pop %v553
    %v555 = vmul.f32 %v553, %v554
    %v556 = vsub.f32 1.0, %v555
    %v557 = vmul.f32 %v554, %v556
    %v558 = vadd.f32 %v554, %v557
    %vm559 = vweird.f32 %v553
    %vm560 = vweird.f32 %v554
    %vm561 = vmor %vm559, %vm560
    %v562 = vsel %vm561, %v554, %v558
    %v563 = vand.u32 2147483647, %v553
    %vm564 = vcmp.eq.f32.partialorder %v563, 8.507059e+37
    %v565 = vand.u32 %v553, 2147483648
    %v566 = vor.u32 1.1754944e-38, %v565
    %v567 = vsel %vm564, %v566, %v562
    %v568 = vmul.f32 1.0, %v567
    %v569 = vtanh.pop %v549
    %v570 = vmul.f32 %v568, %v435
    %572 = vrot.lane.b32.xlu0 %v569, 32
    %v573 = vpop.permute.xlu0 %572
    %v575 = vmul.f32 %v568, %v573
    %577 = vrot.lane.b32.xlu0 %v575, 32
    %v578 = vpop.permute.xlu0 %577
    %v580 = vadd.f32 %v570, %v578
    %v581 = vtanh.pop %v580
    %583 = vrot.lane.b32.xlu0 %v581, 32
    %v584 = vpop.permute.xlu0 %583
    %v586 = vmul.f32 %v568, %v584
    %v587 = vpack.c.bf16 %v526, %v526
    %v589 = vrot.slane %v587, 3
    %v592 = vsel %vm445, %v587, %v589
    %594 = vrot.lane.b32.xlu0 %v592, 64
    %v595 = vpop.permute.xlu0 %594
    %s597 = scalar_lea.vmem %s5, 1
    %598 = vst.msk [vmem:[%s597] sm:$0x1] %vm453, %v595
    %v599 = vpack.c.bf16 %v586, %v586
    %v601 = vrot.slane %v599, 3
    %v604 = vsel %vm445, %v599, %v601
    %606 = vrot.lane.b32.xlu0 %v604, 64
    %v607 = vpop.permute.xlu0 %606
    %s609 = scalar_lea.vmem %s99, 6
    %610 = vst.msk [vmem:[%s609] sm:$0x1] %vm453, %v607
    %s611 = scalar_lea.vmem [#allocation6], 4
    %v612 = vld [vmem:[%s611] sm:$0x3]
    %v613 = vunpack.c.l.b16 %v587
    %v614 = vpack.c.b16 %v613, %v613
    %615 = vrot.lane.b32.xlu0 %v614, 64
    %v616 = vpop.permute.xlu0 %615
    %v618 = vsel %vm310, %v616, 0
    %620 = vmatpush.bf16.msra.mxu0 0
    %621 = vmatpush.bf16.msra.mxu0 0
    %622 = vmatpush.bf16.msra.mxu0 0
    %623 = vmatpush.bf16.msra.mxu0 0
    %624 = vmatpush.bf16.msra.mxu0 0
    %625 = vmatpush.bf16.msra.mxu0 0
    %626 = vmatpush.bf16.msra.mxu0 %v307
    %627 = vmatpush.bf16.msra.mxu0 %v306
    %628 = vmatmul.bf16.gmra.mxu0 %v618
    %v629 = vpop.f32.mrf.mxu0
    %v630 = vadd.f32 0.0, %v629
    %v631 = vpop.f32.mrf.mxu0
    %632 = vdwg.mxu0
    %v633 = vadd.f32 %v612, %v630
    %v634 = vxor.u32 %v633, 2147483648
    %v635 = vmul.f32 %v634, 1.442695
    %v636 = vpow.pop %v635
    %v637 = vadd.f32 %v636, 1.0
    %v638 = vrcp.pop %v637
    %v639 = vmul.f32 %v637, %v638
    %v640 = vsub.f32 1.0, %v639
    %v641 = vmul.f32 %v638, %v640
    %v642 = vadd.f32 %v638, %v641
    %vm643 = vweird.f32 %v637
    %vm644 = vweird.f32 %v638
    %vm645 = vmor %vm643, %vm644
    %v646 = vsel %vm645, %v638, %v642
    %v647 = vand.u32 2147483647, %v637
    %vm648 = vcmp.eq.f32.partialorder %v647, 8.507059e+37
    %v649 = vand.u32 %v637, 2147483648
    %v650 = vor.u32 1.1754944e-38, %v649
    %v651 = vsel %vm648, %v650, %v646
    %v652 = vmul.f32 1.0, %v651
    %v653 = vtanh.pop %v633
    %v654 = vmul.f32 %v652, %v520
    %656 = vrot.lane.b32.xlu0 %v653, 32
    %v657 = vpop.permute.xlu0 %656
    %v659 = vmul.f32 %v652, %v657
    %661 = vrot.lane.b32.xlu0 %v659, 32
    %v662 = vpop.permute.xlu0 %661
    %v664 = vadd.f32 %v654, %v662
    %v665 = vtanh.pop %v664
    %667 = vrot.lane.b32.xlu0 %v665, 32
    %v668 = vpop.permute.xlu0 %667
    %v670 = vmul.f32 %v652, %v668
    %s671 = scalar_lea.vmem [#allocation7], 10
    %v672 = vld [vmem:[%s671] sm:$0x3]
    %v673 = vunpack.c.l.b16 %v599
    %v674 = vpack.c.b16 %v673, %v673
    %675 = vrot.lane.b32.xlu0 %v674, 64
    %v676 = vpop.permute.xlu0 %675
    %v678 = vsel %vm310, %v676, 0
    %680 = vmatpush.bf16.msra.mxu0 0
    %681 = vmatpush.bf16.msra.mxu0 0
    %682 = vmatpush.bf16.msra.mxu0 0
    %683 = vmatpush.bf16.msra.mxu0 0
    %684 = vmatpush.bf16.msra.mxu0 0
    %685 = vmatpush.bf16.msra.mxu0 0
    %686 = vmatpush.bf16.msra.mxu0 %v381
    %687 = vmatpush.bf16.msra.mxu0 %v380
    %688 = vmatmul.bf16.gmra.mxu0 %v678
    %v689 = vpop.f32.mrf.mxu0
    %v690 = vadd.f32 0.0, %v689
    %v691 = vpop.f32.mrf.mxu0
    %692 = vdwg.mxu0
    %v693 = vadd.f32 %v672, %v690
    %v694 = vxor.u32 %v693, 2147483648
    %v695 = vmul.f32 %v694, 1.442695
    %v696 = vpow.pop %v695
    %v697 = vadd.f32 %v696, 1.0
    %v698 = vrcp.pop %v697
    %v699 = vmul.f32 %v697, %v698
    %v700 = vsub.f32 1.0, %v699
    %v701 = vmul.f32 %v698, %v700
    %v702 = vadd.f32 %v698, %v701
    %vm703 = vweird.f32 %v697
    %vm704 = vweird.f32 %v698
    %vm705 = vmor %vm703, %vm704
    %v706 = vsel %vm705, %v698, %v702
    %v707 = vand.u32 2147483647, %v697
    %vm708 = vcmp.eq.f32.partialorder %v707, 8.507059e+37
    %v709 = vand.u32 %v697, 2147483648
    %v710 = vor.u32 1.1754944e-38, %v709
    %v711 = vsel %vm708, %v710, %v706
    %v712 = vmul.f32 1.0, %v711
    %v713 = vtanh.pop %v693
    %v714 = vmul.f32 %v712, %v580
    %716 = vrot.lane.b32.xlu0 %v713, 32
    %v717 = vpop.permute.xlu0 %716
    %v719 = vmul.f32 %v712, %v717
    %721 = vrot.lane.b32.xlu0 %v719, 32
    %v722 = vpop.permute.xlu0 %721
    %v724 = vadd.f32 %v714, %v722
    %v725 = vtanh.pop %v724
    %727 = vrot.lane.b32.xlu0 %v725, 32
    %v728 = vpop.permute.xlu0 %727
    %v730 = vmul.f32 %v712, %v728
    %v731 = vpack.c.bf16 %v670, %v670
    %v733 = vrot.slane %v731, 3
    %v736 = vsel %vm445, %v731, %v733
    %738 = vrot.lane.b32.xlu0 %v736, 64
    %v739 = vpop.permute.xlu0 %738
    %s741 = scalar_lea.vmem %s5, 2
    %742 = vst.msk [vmem:[%s741] sm:$0x1] %vm453, %v739
    %v743 = vpack.c.bf16 %v730, %v730
    %v745 = vrot.slane %v743, 3
    %v748 = vsel %vm445, %v743, %v745
    %750 = vrot.lane.b32.xlu0 %v748, 64
    %v751 = vpop.permute.xlu0 %750
    %s753 = scalar_lea.vmem %s99, 5
    %754 = vst.msk [vmem:[%s753] sm:$0x1] %vm453, %v751
    %s755 = scalar_lea.vmem [#allocation6], 6
    %v756 = vld [vmem:[%s755] sm:$0x3]
    %v757 = vunpack.c.l.b16 %v731
    %v758 = vpack.c.b16 %v757, %v757
    %759 = vrot.lane.b32.xlu0 %v758, 64
    %v760 = vpop.permute.xlu0 %759
    %v762 = vsel %vm310, %v760, 0
    %764 = vmatpush.bf16.msra.mxu0 0
    %765 = vmatpush.bf16.msra.mxu0 0
    %766 = vmatpush.bf16.msra.mxu0 0
    %767 = vmatpush.bf16.msra.mxu0 0
    %768 = vmatpush.bf16.msra.mxu0 0
    %769 = vmatpush.bf16.msra.mxu0 0
    %770 = vmatpush.bf16.msra.mxu0 %v307
    %771 = vmatpush.bf16.msra.mxu0 %v306
    %772 = vmatmul.bf16.gmra.mxu0 %v762
    %v773 = vpop.f32.mrf.mxu0
    %v774 = vadd.f32 0.0, %v773
    %v775 = vpop.f32.mrf.mxu0
    %776 = vdwg.mxu0
    %v777 = vadd.f32 %v756, %v774
    %v778 = vxor.u32 %v777, 2147483648
    %v779 = vmul.f32 %v778, 1.442695
    %v780 = vpow.pop %v779
    %v781 = vadd.f32 %v780, 1.0
    %v782 = vrcp.pop %v781
    %v783 = vmul.f32 %v781, %v782
    %v784 = vsub.f32 1.0, %v783
    %v785 = vmul.f32 %v782, %v784
    %v786 = vadd.f32 %v782, %v785
    %vm787 = vweird.f32 %v781
    %vm788 = vweird.f32 %v782
    %vm789 = vmor %vm787, %vm788
    %v790 = vsel %vm789, %v782, %v786
    %v791 = vand.u32 2147483647, %v781
    %vm792 = vcmp.eq.f32.partialorder %v791, 8.507059e+37
    %v793 = vand.u32 %v781, 2147483648
    %v794 = vor.u32 1.1754944e-38, %v793
    %v795 = vsel %vm792, %v794, %v790
    %v796 = vmul.f32 1.0, %v795
    %v797 = vtanh.pop %v777
    %v798 = vmul.f32 %v796, %v664
    %800 = vrot.lane.b32.xlu0 %v797, 32
    %v801 = vpop.permute.xlu0 %800
    %v803 = vmul.f32 %v796, %v801
    %805 = vrot.lane.b32.xlu0 %v803, 32
    %v806 = vpop.permute.xlu0 %805
    %v808 = vadd.f32 %v798, %v806
    %v809 = vtanh.pop %v808
    %811 = vrot.lane.b32.xlu0 %v809, 32
    %v812 = vpop.permute.xlu0 %811
    %v814 = vmul.f32 %v796, %v812
    %s815 = scalar_lea.vmem [#allocation7], 8
    %v816 = vld [vmem:[%s815] sm:$0x3]
    %v817 = vunpack.c.l.b16 %v743
    %v818 = vpack.c.b16 %v817, %v817
    %819 = vrot.lane.b32.xlu0 %v818, 64
    %v820 = vpop.permute.xlu0 %819
    %v822 = vsel %vm310, %v820, 0
    %824 = vmatpush.bf16.msra.mxu0 0
    %825 = vmatpush.bf16.msra.mxu0 0
    %826 = vmatpush.bf16.msra.mxu0 0
    %827 = vmatpush.bf16.msra.mxu0 0
    %828 = vmatpush.bf16.msra.mxu0 0
    %829 = vmatpush.bf16.msra.mxu0 0
    %830 = vmatpush.bf16.msra.mxu0 %v381
    %831 = vmatpush.bf16.msra.mxu0 %v380
    %832 = vmatmul.bf16.gmra.mxu0 %v822
    %v833 = vpop.f32.mrf.mxu0
    %v834 = vadd.f32 0.0, %v833
    %v835 = vpop.f32.mrf.mxu0
    %836 = vdwg.mxu0
    %v837 = vadd.f32 %v816, %v834
    %v838 = vxor.u32 %v837, 2147483648
    %v839 = vmul.f32 %v838, 1.442695
    %v840 = vpow.pop %v839
    %v841 = vadd.f32 %v840, 1.0
    %v842 = vrcp.pop %v841
    %v843 = vmul.f32 %v841, %v842
    %v844 = vsub.f32 1.0, %v843
    %v845 = vmul.f32 %v842, %v844
    %v846 = vadd.f32 %v842, %v845
    %vm847 = vweird.f32 %v841
    %vm848 = vweird.f32 %v842
    %vm849 = vmor %vm847, %vm848
    %v850 = vsel %vm849, %v842, %v846
    %v851 = vand.u32 2147483647, %v841
    %vm852 = vcmp.eq.f32.partialorder %v851, 8.507059e+37
    %v853 = vand.u32 %v841, 2147483648
    %v854 = vor.u32 1.1754944e-38, %v853
    %v855 = vsel %vm852, %v854, %v850
    %v856 = vmul.f32 1.0, %v855
    %v857 = vtanh.pop %v837
    %v858 = vmul.f32 %v856, %v724
    %860 = vrot.lane.b32.xlu0 %v857, 32
    %v861 = vpop.permute.xlu0 %860
    %v863 = vmul.f32 %v856, %v861
    %865 = vrot.lane.b32.xlu0 %v863, 32
    %v866 = vpop.permute.xlu0 %865
    %v868 = vadd.f32 %v858, %v866
    %v869 = vtanh.pop %v868
    %871 = vrot.lane.b32.xlu0 %v869, 32
    %v872 = vpop.permute.xlu0 %871
    %v874 = vmul.f32 %v856, %v872
    %v875 = vpack.c.bf16 %v814, %v814
    %v877 = vrot.slane %v875, 3
    %v880 = vsel %vm445, %v875, %v877
    %882 = vrot.lane.b32.xlu0 %v880, 64
    %v883 = vpop.permute.xlu0 %882
    %s885 = scalar_lea.vmem %s5, 3
    %886 = vst.msk [vmem:[%s885] sm:$0x1] %vm453, %v883
    %v887 = vpack.c.bf16 %v874, %v874
    %v889 = vrot.slane %v887, 3
    %v892 = vsel %vm445, %v887, %v889
    %894 = vrot.lane.b32.xlu0 %v892, 64
    %v895 = vpop.permute.xlu0 %894
    %s897 = scalar_lea.vmem %s99, 4
    %898 = vst.msk [vmem:[%s897] sm:$0x1] %vm453, %v895
    %s899 = scalar_lea.vmem [#allocation6], 8
    %v900 = vld [vmem:[%s899] sm:$0x3]
    %v901 = vunpack.c.l.b16 %v875
    %v902 = vpack.c.b16 %v901, %v901
    %903 = vrot.lane.b32.xlu0 %v902, 64
    %v904 = vpop.permute.xlu0 %903
    %v906 = vsel %vm310, %v904, 0
    %908 = vmatpush.bf16.msra.mxu0 0
    %909 = vmatpush.bf16.msra.mxu0 0
    %910 = vmatpush.bf16.msra.mxu0 0
    %911 = vmatpush.bf16.msra.mxu0 0
    %912 = vmatpush.bf16.msra.mxu0 0
    %913 = vmatpush.bf16.msra.mxu0 0
    %914 = vmatpush.bf16.msra.mxu0 %v307
    %915 = vmatpush.bf16.msra.mxu0 %v306
    %916 = vmatmul.bf16.gmra.mxu0 %v906
    %v917 = vpop.f32.mrf.mxu0
    %v918 = vadd.f32 0.0, %v917
    %v919 = vpop.f32.mrf.mxu0
    %920 = vdwg.mxu0
    %v921 = vadd.f32 %v900, %v918
    %v922 = vxor.u32 %v921, 2147483648
    %v923 = vmul.f32 %v922, 1.442695
    %v924 = vpow.pop %v923
    %v925 = vadd.f32 %v924, 1.0
    %v926 = vrcp.pop %v925
    %v927 = vmul.f32 %v925, %v926
    %v928 = vsub.f32 1.0, %v927
    %v929 = vmul.f32 %v926, %v928
    %v930 = vadd.f32 %v926, %v929
    %vm931 = vweird.f32 %v925
    %vm932 = vweird.f32 %v926
    %vm933 = vmor %vm931, %vm932
    %v934 = vsel %vm933, %v926, %v930
    %v935 = vand.u32 2147483647, %v925
    %vm936 = vcmp.eq.f32.partialorder %v935, 8.507059e+37
    %v937 = vand.u32 %v925, 2147483648
    %v938 = vor.u32 1.1754944e-38, %v937
    %v939 = vsel %vm936, %v938, %v934
    %v940 = vmul.f32 1.0, %v939
    %v941 = vtanh.pop %v921
    %v942 = vmul.f32 %v940, %v808
    %944 = vrot.lane.b32.xlu0 %v941, 32
    %v945 = vpop.permute.xlu0 %944
    %v947 = vmul.f32 %v940, %v945
    %949 = vrot.lane.b32.xlu0 %v947, 32
    %v950 = vpop.permute.xlu0 %949
    %v952 = vadd.f32 %v942, %v950
    %v953 = vtanh.pop %v952
    %955 = vrot.lane.b32.xlu0 %v953, 32
    %v956 = vpop.permute.xlu0 %955
    %v958 = vmul.f32 %v940, %v956
    %s959 = scalar_lea.vmem [#allocation7], 6
    %v960 = vld [vmem:[%s959] sm:$0x3]
    %v961 = vunpack.c.l.b16 %v887
    %v962 = vpack.c.b16 %v961, %v961
    %963 = vrot.lane.b32.xlu0 %v962, 64
    %v964 = vpop.permute.xlu0 %963
    %v966 = vsel %vm310, %v964, 0
    %968 = vmatpush.bf16.msra.mxu0 0
    %969 = vmatpush.bf16.msra.mxu0 0
    %970 = vmatpush.bf16.msra.mxu0 0
    %971 = vmatpush.bf16.msra.mxu0 0
    %972 = vmatpush.bf16.msra.mxu0 0
    %973 = vmatpush.bf16.msra.mxu0 0
    %974 = vmatpush.bf16.msra.mxu0 %v381
    %975 = vmatpush.bf16.msra.mxu0 %v380
    %976 = vmatmul.bf16.gmra.mxu0 %v966
    %v977 = vpop.f32.mrf.mxu0
    %v978 = vadd.f32 0.0, %v977
    %v979 = vpop.f32.mrf.mxu0
    %980 = vdwg.mxu0
    %v981 = vadd.f32 %v960, %v978
    %v982 = vxor.u32 %v981, 2147483648
    %v983 = vmul.f32 %v982, 1.442695
    %v984 = vpow.pop %v983
    %v985 = vadd.f32 %v984, 1.0
    %v986 = vrcp.pop %v985
    %v987 = vmul.f32 %v985, %v986
    %v988 = vsub.f32 1.0, %v987
    %v989 = vmul.f32 %v986, %v988
    %v990 = vadd.f32 %v986, %v989
    %vm991 = vweird.f32 %v985
    %vm992 = vweird.f32 %v986
    %vm993 = vmor %vm991, %vm992
    %v994 = vsel %vm993, %v986, %v990
    %v995 = vand.u32 2147483647, %v985
    %vm996 = vcmp.eq.f32.partialorder %v995, 8.507059e+37
    %v997 = vand.u32 %v985, 2147483648
    %v998 = vor.u32 1.1754944e-38, %v997
    %v999 = vsel %vm996, %v998, %v994
    %v1000 = vmul.f32 1.0, %v999
    %v1001 = vtanh.pop %v981
    %v1002 = vmul.f32 %v1000, %v868
    %1004 = vrot.lane.b32.xlu0 %v1001, 32
    %v1005 = vpop.permute.xlu0 %1004
    %v1007 = vmul.f32 %v1000, %v1005
    %1009 = vrot.lane.b32.xlu0 %v1007, 32
    %v1010 = vpop.permute.xlu0 %1009
    %v1012 = vadd.f32 %v1002, %v1010
    %v1013 = vtanh.pop %v1012
    %1015 = vrot.lane.b32.xlu0 %v1013, 32
    %v1016 = vpop.permute.xlu0 %1015
    %v1018 = vmul.f32 %v1000, %v1016
    %v1019 = vpack.c.bf16 %v958, %v958
    %v1021 = vrot.slane %v1019, 3
    %v1024 = vsel %vm445, %v1019, %v1021
    %1026 = vrot.lane.b32.xlu0 %v1024, 64
    %v1027 = vpop.permute.xlu0 %1026
    %s1029 = scalar_lea.vmem %s5, 4
    %1030 = vst.msk [vmem:[%s1029] sm:$0x1] %vm453, %v1027
    %v1031 = vpack.c.bf16 %v1018, %v1018
    %v1033 = vrot.slane %v1031, 3
    %v1036 = vsel %vm445, %v1031, %v1033
    %1038 = vrot.lane.b32.xlu0 %v1036, 64
    %v1039 = vpop.permute.xlu0 %1038
    %s1041 = scalar_lea.vmem %s99, 3
    %1042 = vst.msk [vmem:[%s1041] sm:$0x1] %vm453, %v1039
    %s1043 = scalar_lea.vmem [#allocation6], 10
    %v1044 = vld [vmem:[%s1043] sm:$0x3]
    %v1045 = vunpack.c.l.b16 %v1019
    %v1046 = vpack.c.b16 %v1045, %v1045
    %1047 = vrot.lane.b32.xlu0 %v1046, 64
    %v1048 = vpop.permute.xlu0 %1047
    %v1050 = vsel %vm310, %v1048, 0
    %1052 = vmatpush.bf16.msra.mxu0 0
    %1053 = vmatpush.bf16.msra.mxu0 0
    %1054 = vmatpush.bf16.msra.mxu0 0
    %1055 = vmatpush.bf16.msra.mxu0 0
    %1056 = vmatpush.bf16.msra.mxu0 0
    %1057 = vmatpush.bf16.msra.mxu0 0
    %1058 = vmatpush.bf16.msra.mxu0 %v307
    %1059 = vmatpush.bf16.msra.mxu0 %v306
    %1060 = vmatmul.bf16.gmra.mxu0 %v1050
    %v1061 = vpop.f32.mrf.mxu0
    %v1062 = vadd.f32 0.0, %v1061
    %v1063 = vpop.f32.mrf.mxu0
    %1064 = vdwg.mxu0
    %v1065 = vadd.f32 %v1044, %v1062
    %v1066 = vxor.u32 %v1065, 2147483648
    %v1067 = vmul.f32 %v1066, 1.442695
    %v1068 = vpow.pop %v1067
    %v1069 = vadd.f32 %v1068, 1.0
    %v1070 = vrcp.pop %v1069
    %v1071 = vmul.f32 %v1069, %v1070
    %v1072 = vsub.f32 1.0, %v1071
    %v1073 = vmul.f32 %v1070, %v1072
    %v1074 = vadd.f32 %v1070, %v1073
    %vm1075 = vweird.f32 %v1069
    %vm1076 = vweird.f32 %v1070
    %vm1077 = vmor %vm1075, %vm1076
    %v1078 = vsel %vm1077, %v1070, %v1074
    %v1079 = vand.u32 2147483647, %v1069
    %vm1080 = vcmp.eq.f32.partialorder %v1079, 8.507059e+37
    %v1081 = vand.u32 %v1069, 2147483648
    %v1082 = vor.u32 1.1754944e-38, %v1081
    %v1083 = vsel %vm1080, %v1082, %v1078
    %v1084 = vmul.f32 1.0, %v1083
    %v1085 = vtanh.pop %v1065
    %v1086 = vmul.f32 %v1084, %v952
    %1088 = vrot.lane.b32.xlu0 %v1085, 32
    %v1089 = vpop.permute.xlu0 %1088
    %v1091 = vmul.f32 %v1084, %v1089
    %1093 = vrot.lane.b32.xlu0 %v1091, 32
    %v1094 = vpop.permute.xlu0 %1093
    %v1096 = vadd.f32 %v1086, %v1094
    %v1097 = vtanh.pop %v1096
    %1099 = vrot.lane.b32.xlu0 %v1097, 32
    %v1100 = vpop.permute.xlu0 %1099
    %v1102 = vmul.f32 %v1084, %v1100
    %s1103 = scalar_lea.vmem [#allocation7], 4
    %v1104 = vld [vmem:[%s1103] sm:$0x3]
    %v1105 = vunpack.c.l.b16 %v1031
    %v1106 = vpack.c.b16 %v1105, %v1105
    %1107 = vrot.lane.b32.xlu0 %v1106, 64
    %v1108 = vpop.permute.xlu0 %1107
    %v1110 = vsel %vm310, %v1108, 0
    %1112 = vmatpush.bf16.msra.mxu0 0
    %1113 = vmatpush.bf16.msra.mxu0 0
    %1114 = vmatpush.bf16.msra.mxu0 0
    %1115 = vmatpush.bf16.msra.mxu0 0
    %1116 = vmatpush.bf16.msra.mxu0 0
    %1117 = vmatpush.bf16.msra.mxu0 0
    %1118 = vmatpush.bf16.msra.mxu0 %v381
    %1119 = vmatpush.bf16.msra.mxu0 %v380
    %1120 = vmatmul.bf16.gmra.mxu0 %v1110
    %v1121 = vpop.f32.mrf.mxu0
    %v1122 = vadd.f32 0.0, %v1121
    %v1123 = vpop.f32.mrf.mxu0
    %1124 = vdwg.mxu0
    %v1125 = vadd.f32 %v1104, %v1122
    %v1126 = vxor.u32 %v1125, 2147483648
    %v1127 = vmul.f32 %v1126, 1.442695
    %v1128 = vpow.pop %v1127
    %v1129 = vadd.f32 %v1128, 1.0
    %v1130 = vrcp.pop %v1129
    %v1131 = vmul.f32 %v1129, %v1130
    %v1132 = vsub.f32 1.0, %v1131
    %v1133 = vmul.f32 %v1130, %v1132
    %v1134 = vadd.f32 %v1130, %v1133
    %vm1135 = vweird.f32 %v1129
    %vm1136 = vweird.f32 %v1130
    %vm1137 = vmor %vm1135, %vm1136
    %v1138 = vsel %vm1137, %v1130, %v1134
    %v1139 = vand.u32 2147483647, %v1129
    %vm1140 = vcmp.eq.f32.partialorder %v1139, 8.507059e+37
    %v1141 = vand.u32 %v1129, 2147483648
    %v1142 = vor.u32 1.1754944e-38, %v1141
    %v1143 = vsel %vm1140, %v1142, %v1138
    %v1144 = vmul.f32 1.0, %v1143
    %v1145 = vtanh.pop %v1125
    %v1146 = vmul.f32 %v1144, %v1012
    %1148 = vrot.lane.b32.xlu0 %v1145, 32
    %v1149 = vpop.permute.xlu0 %1148
    %v1151 = vmul.f32 %v1144, %v1149
    %1153 = vrot.lane.b32.xlu0 %v1151, 32
    %v1154 = vpop.permute.xlu0 %1153
    %v1156 = vadd.f32 %v1146, %v1154
    %v1157 = vtanh.pop %v1156
    %1159 = vrot.lane.b32.xlu0 %v1157, 32
    %v1160 = vpop.permute.xlu0 %1159
    %v1162 = vmul.f32 %v1144, %v1160
    %v1163 = vpack.c.bf16 %v1102, %v1102
    %v1165 = vrot.slane %v1163, 3
    %v1168 = vsel %vm445, %v1163, %v1165
    %1170 = vrot.lane.b32.xlu0 %v1168, 64
    %v1171 = vpop.permute.xlu0 %1170
    %s1173 = scalar_lea.vmem %s5, 5
    %1174 = vst.msk [vmem:[%s1173] sm:$0x1] %vm453, %v1171
    %v1175 = vpack.c.bf16 %v1162, %v1162
    %v1177 = vrot.slane %v1175, 3
    %v1180 = vsel %vm445, %v1175, %v1177
    %1182 = vrot.lane.b32.xlu0 %v1180, 64
    %v1183 = vpop.permute.xlu0 %1182
    %s1185 = scalar_lea.vmem %s99, 2
    %1186 = vst.msk [vmem:[%s1185] sm:$0x1] %vm453, %v1183
    %s1187 = scalar_lea.vmem [#allocation6], 12
    %v1188 = vld [vmem:[%s1187] sm:$0x3]
    %v1189 = vunpack.c.l.b16 %v1163
    %v1190 = vpack.c.b16 %v1189, %v1189
    %1191 = vrot.lane.b32.xlu0 %v1190, 64
    %v1192 = vpop.permute.xlu0 %1191
    %v1194 = vsel %vm310, %v1192, 0
    %1196 = vmatpush.bf16.msra.mxu0 0
    %1197 = vmatpush.bf16.msra.mxu0 0
    %1198 = vmatpush.bf16.msra.mxu0 0
    %1199 = vmatpush.bf16.msra.mxu0 0
    %1200 = vmatpush.bf16.msra.mxu0 0
    %1201 = vmatpush.bf16.msra.mxu0 0
    %1202 = vmatpush.bf16.msra.mxu0 %v307
    %1203 = vmatpush.bf16.msra.mxu0 %v306
    %1204 = vmatmul.bf16.gmra.mxu0 %v1194
    %v1205 = vpop.f32.mrf.mxu0
    %v1206 = vadd.f32 0.0, %v1205
    %v1207 = vpop.f32.mrf.mxu0
    %1208 = vdwg.mxu0
    %v1209 = vadd.f32 %v1188, %v1206
    %v1210 = vxor.u32 %v1209, 2147483648
    %v1211 = vmul.f32 %v1210, 1.442695
    %v1212 = vpow.pop %v1211
    %v1213 = vadd.f32 %v1212, 1.0
    %v1214 = vrcp.pop %v1213
    %v1215 = vmul.f32 %v1213, %v1214
    %v1216 = vsub.f32 1.0, %v1215
    %v1217 = vmul.f32 %v1214, %v1216
    %v1218 = vadd.f32 %v1214, %v1217
    %vm1219 = vweird.f32 %v1213
    %vm1220 = vweird.f32 %v1214
    %vm1221 = vmor %vm1219, %vm1220
    %v1222 = vsel %vm1221, %v1214, %v1218
    %v1223 = vand.u32 2147483647, %v1213
    %vm1224 = vcmp.eq.f32.partialorder %v1223, 8.507059e+37
    %v1225 = vand.u32 %v1213, 2147483648
    %v1226 = vor.u32 1.1754944e-38, %v1225
    %v1227 = vsel %vm1224, %v1226, %v1222
    %v1228 = vmul.f32 1.0, %v1227
    %v1229 = vtanh.pop %v1209
    %v1230 = vmul.f32 %v1228, %v1096
    %1232 = vrot.lane.b32.xlu0 %v1229, 32
    %v1233 = vpop.permute.xlu0 %1232
    %v1235 = vmul.f32 %v1228, %v1233
    %1237 = vrot.lane.b32.xlu0 %v1235, 32
    %v1238 = vpop.permute.xlu0 %1237
    %v1240 = vadd.f32 %v1230, %v1238
    %v1241 = vtanh.pop %v1240
    %1243 = vrot.lane.b32.xlu0 %v1241, 32
    %v1244 = vpop.permute.xlu0 %1243
    %v1246 = vmul.f32 %v1228, %v1244
    %s1247 = scalar_lea.vmem [#allocation7], 2
    %v1248 = vld [vmem:[%s1247] sm:$0x3]
    %v1249 = vunpack.c.l.b16 %v1175
    %v1250 = vpack.c.b16 %v1249, %v1249
    %1251 = vrot.lane.b32.xlu0 %v1250, 64
    %v1252 = vpop.permute.xlu0 %1251
    %v1254 = vsel %vm310, %v1252, 0
    %1256 = vmatpush.bf16.msra.mxu0 0
    %1257 = vmatpush.bf16.msra.mxu0 0
    %1258 = vmatpush.bf16.msra.mxu0 0
    %1259 = vmatpush.bf16.msra.mxu0 0
    %1260 = vmatpush.bf16.msra.mxu0 0
    %1261 = vmatpush.bf16.msra.mxu0 0
    %1262 = vmatpush.bf16.msra.mxu0 %v381
    %1263 = vmatpush.bf16.msra.mxu0 %v380
    %1264 = vmatmul.bf16.gmra.mxu0 %v1254
    %v1265 = vpop.f32.mrf.mxu0
    %v1266 = vadd.f32 0.0, %v1265
    %v1267 = vpop.f32.mrf.mxu0
    %1268 = vdwg.mxu0
    %v1269 = vadd.f32 %v1248, %v1266
    %v1270 = vxor.u32 %v1269, 2147483648
    %v1271 = vmul.f32 %v1270, 1.442695
    %v1272 = vpow.pop %v1271
    %v1273 = vadd.f32 %v1272, 1.0
    %v1274 = vrcp.pop %v1273
    %v1275 = vmul.f32 %v1273, %v1274
    %v1276 = vsub.f32 1.0, %v1275
    %v1277 = vmul.f32 %v1274, %v1276
    %v1278 = vadd.f32 %v1274, %v1277
    %vm1279 = vweird.f32 %v1273
    %vm1280 = vweird.f32 %v1274
    %vm1281 = vmor %vm1279, %vm1280
    %v1282 = vsel %vm1281, %v1274, %v1278
    %v1283 = vand.u32 2147483647, %v1273
    %vm1284 = vcmp.eq.f32.partialorder %v1283, 8.507059e+37
    %v1285 = vand.u32 %v1273, 2147483648
    %v1286 = vor.u32 1.1754944e-38, %v1285
    %v1287 = vsel %vm1284, %v1286, %v1282
    %v1288 = vmul.f32 1.0, %v1287
    %v1289 = vtanh.pop %v1269
    %v1290 = vmul.f32 %v1288, %v1156
    %1292 = vrot.lane.b32.xlu0 %v1289, 32
    %v1293 = vpop.permute.xlu0 %1292
    %v1295 = vmul.f32 %v1288, %v1293
    %1297 = vrot.lane.b32.xlu0 %v1295, 32
    %v1298 = vpop.permute.xlu0 %1297
    %v1300 = vadd.f32 %v1290, %v1298
    %v1301 = vtanh.pop %v1300
    %1303 = vrot.lane.b32.xlu0 %v1301, 32
    %v1304 = vpop.permute.xlu0 %1303
    %v1306 = vmul.f32 %v1288, %v1304
    %v1307 = vpack.c.bf16 %v1246, %v1246
    %v1309 = vrot.slane %v1307, 3
    %v1312 = vsel %vm445, %v1307, %v1309
    %1314 = vrot.lane.b32.xlu0 %v1312, 64
    %v1315 = vpop.permute.xlu0 %1314
    %s1317 = scalar_lea.vmem %s5, 6
    %1318 = vst.msk [vmem:[%s1317] sm:$0x1] %vm453, %v1315
    %v1319 = vpack.c.bf16 %v1306, %v1306
    %v1321 = vrot.slane %v1319, 3
    %v1324 = vsel %vm445, %v1319, %v1321
    %1326 = vrot.lane.b32.xlu0 %v1324, 64
    %v1327 = vpop.permute.xlu0 %1326
    %s1329 = scalar_lea.vmem %s99, 1
    %1330 = vst.msk [vmem:[%s1329] sm:$0x1] %vm453, %v1327
    %s1331 = scalar_lea.vmem [#allocation6], 14
    %v1332 = vld [vmem:[%s1331] sm:$0x3]
    %v1333 = vunpack.c.l.b16 %v1307
    %v1334 = vpack.c.b16 %v1333, %v1333
    %1335 = vrot.lane.b32.xlu0 %v1334, 64
    %v1336 = vpop.permute.xlu0 %1335
    %v1338 = vsel %vm310, %v1336, 0
    %1340 = vmatpush.bf16.msra.mxu0 0
    %1341 = vmatpush.bf16.msra.mxu0 0
    %1342 = vmatpush.bf16.msra.mxu0 0
    %1343 = vmatpush.bf16.msra.mxu0 0
    %1344 = vmatpush.bf16.msra.mxu0 0
    %1345 = vmatpush.bf16.msra.mxu0 0
    %1346 = vmatpush.bf16.msra.mxu0 %v307
    %1347 = vmatpush.bf16.msra.mxu0 %v306
    %1348 = vmatmul.bf16.gmra.mxu0 %v1338
    %v1349 = vpop.f32.mrf.mxu0
    %v1350 = vadd.f32 0.0, %v1349
    %v1351 = vpop.f32.mrf.mxu0
    %1352 = vdwg.mxu0
    %v1353 = vadd.f32 %v1332, %v1350
    %v1354 = vxor.u32 %v1353, 2147483648
    %v1355 = vmul.f32 %v1354, 1.442695
    %v1356 = vpow.pop %v1355
    %v1357 = vadd.f32 %v1356, 1.0
    %v1358 = vrcp.pop %v1357
    %v1359 = vmul.f32 %v1357, %v1358
    %v1360 = vsub.f32 1.0, %v1359
    %v1361 = vmul.f32 %v1358, %v1360
    %v1362 = vadd.f32 %v1358, %v1361
    %vm1363 = vweird.f32 %v1357
    %vm1364 = vweird.f32 %v1358
    %vm1365 = vmor %vm1363, %vm1364
    %v1366 = vsel %vm1365, %v1358, %v1362
    %v1367 = vand.u32 2147483647, %v1357
    %vm1368 = vcmp.eq.f32.partialorder %v1367, 8.507059e+37
    %v1369 = vand.u32 %v1357, 2147483648
    %v1370 = vor.u32 1.1754944e-38, %v1369
    %v1371 = vsel %vm1368, %v1370, %v1366
    %v1372 = vmul.f32 1.0, %v1371
    %v1373 = vtanh.pop %v1353
    %v1374 = vmul.f32 %v1372, %v1240
    %1376 = vrot.lane.b32.xlu0 %v1373, 32
    %v1377 = vpop.permute.xlu0 %1376
    %v1379 = vmul.f32 %v1372, %v1377
    %1381 = vrot.lane.b32.xlu0 %v1379, 32
    %v1382 = vpop.permute.xlu0 %1381
    %v1384 = vadd.f32 %v1374, %v1382
    %v1385 = vtanh.pop %v1384
    %1387 = vrot.lane.b32.xlu0 %v1385, 32
    %v1388 = vpop.permute.xlu0 %1387
    %v1390 = vmul.f32 %v1372, %v1388
    %v1391 = vld [vmem:[#allocation7] sm:$0x3]
    %v1392 = vunpack.c.l.b16 %v1319
    %v1393 = vpack.c.b16 %v1392, %v1392
    %1394 = vrot.lane.b32.xlu0 %v1393, 64
    %v1395 = vpop.permute.xlu0 %1394
    %v1397 = vsel %vm310, %v1395, 0
    %1399 = vmatpush.bf16.msra.mxu0 0
    %1400 = vmatpush.bf16.msra.mxu0 0
    %1401 = vmatpush.bf16.msra.mxu0 0
    %1402 = vmatpush.bf16.msra.mxu0 0
    %1403 = vmatpush.bf16.msra.mxu0 0
    %1404 = vmatpush.bf16.msra.mxu0 0
    %1405 = vmatpush.bf16.msra.mxu0 %v381
    %1406 = vmatpush.bf16.msra.mxu0 %v380
    %1407 = vmatmul.bf16.gmra.mxu0 %v1397
    %v1408 = vpop.f32.mrf.mxu0
    %v1409 = vadd.f32 0.0, %v1408
    %v1410 = vpop.f32.mrf.mxu0
    %1411 = vdwg.mxu0
    %v1412 = vadd.f32 %v1391, %v1409
    %v1413 = vxor.u32 %v1412, 2147483648
    %v1414 = vmul.f32 %v1413, 1.442695
    %v1415 = vpow.pop %v1414
    %v1416 = vadd.f32 %v1415, 1.0
    %v1417 = vrcp.pop %v1416
    %v1418 = vmul.f32 %v1416, %v1417
    %v1419 = vsub.f32 1.0, %v1418
    %v1420 = vmul.f32 %v1417, %v1419
    %v1421 = vadd.f32 %v1417, %v1420
    %vm1422 = vweird.f32 %v1416
    %vm1423 = vweird.f32 %v1417
    %vm1424 = vmor %vm1422, %vm1423
    %v1425 = vsel %vm1424, %v1417, %v1421
    %v1426 = vand.u32 2147483647, %v1416
    %vm1427 = vcmp.eq.f32.partialorder %v1426, 8.507059e+37
    %v1428 = vand.u32 %v1416, 2147483648
    %v1429 = vor.u32 1.1754944e-38, %v1428
    %v1430 = vsel %vm1427, %v1429, %v1425
    %v1431 = vmul.f32 1.0, %v1430
    %v1432 = vtanh.pop %v1412
    %v1433 = vmul.f32 %v1431, %v1300
    %1435 = vrot.lane.b32.xlu0 %v1432, 32
    %v1436 = vpop.permute.xlu0 %1435
    %v1438 = vmul.f32 %v1431, %v1436
    %1440 = vrot.lane.b32.xlu0 %v1438, 32
    %v1441 = vpop.permute.xlu0 %1440
    %v1443 = vadd.f32 %v1433, %v1441
    %v1444 = vtanh.pop %v1443
    %1446 = vrot.lane.b32.xlu0 %v1444, 32
    %v1447 = vpop.permute.xlu0 %1446
    %v1449 = vmul.f32 %v1431, %v1447
    %v1450 = vpack.c.bf16 %v1390, %v1390
    %v1452 = vrot.slane %v1450, 3
    %v1455 = vsel %vm445, %v1450, %v1452
    %1457 = vrot.lane.b32.xlu0 %v1455, 64
    %v1458 = vpop.permute.xlu0 %1457
    %s1460 = scalar_lea.vmem %s5, 7
    %1461 = vst.msk [vmem:[%s1460] sm:$0x1] %vm453, %v1458
    %v1462 = vpack.c.bf16 %v1449, %v1449
    %v1464 = vrot.slane %v1462, 3
    %v1467 = vsel %vm445, %v1462, %v1464
    %1469 = vrot.lane.b32.xlu0 %v1467, 64
    %v1470 = vpop.permute.xlu0 %1469
    %1472 = vst.msk [vmem:[%s99] sm:$0x1] %vm453, %v1470
    %1474 = vrot.lane.b32.xlu0 %v1390, 64
    %v1475 = vpop.permute.xlu0 %1474
    %vm1477 = vcmask 254976
    %1478 = vst.msk [vmem:[#allocation2] sm:$0x3] %vm1477, %v1475
    %1480 = vrot.lane.b32.xlu0 %v1384, 96
    %v1481 = vpop.permute.xlu0 %1480
    %1483 = vst.msk [vmem:[#allocation3] sm:$0x3] %vm1477, %v1481
    %1485 = vrot.lane.b32.xlu0 %v1449, 64
    %v1486 = vpop.permute.xlu0 %1485
    %1488 = vst.msk [vmem:[#allocation4] sm:$0x3] %vm1477, %v1486
    %1490 = vrot.lane.b32.xlu0 %v1443, 96
    %v1491 = vpop.permute.xlu0 %1490
    %1493 = vst.msk [vmem:[#allocation5] sm:$0x3] %vm1477, %v1491
    // Predicated region
    $region38: #{lstm_forward.2} parent=1 // pred_check
      %p1494 = pneg %p103
    $region39: #{lstm_forward.2} parent=1 // pred_check_branch
      %1496 = sbr.rel (%p1494) target = $region41
    $region40: #{lstm_forward.2} parent=1 // pred_region
      %1497 = vst.msk [vmem:[%s7] sm:$0x3] %vm1477, %v1475
      %s1498 = scalar_lea.vmem %s7, 2
      %1499 = vst.msk [vmem:[%s1498] sm:$0x3] %vm1477, %v1486
      %1500 = vst.msk [vmem:[%s8] sm:$0x3] %vm1477, %v1481
      %s1501 = scalar_lea.vmem %s8, 2
      %1502 = vst.msk [vmem:[%s1501] sm:$0x3] %vm1477, %v1491
    $region41: #{lstm_forward.2} parent=1 // pred_fallthru
      _
    %s1503 = ssub.s32 0, 0
    %s1504 = smul.u32 8, %s1503
    %p1505 = scmp.lt.s32.totalorder %s1504, 7
    %s1506 = scalar_select %p1505, %s1504, 7
    %s1507 = scalar_lea.vmem %s6, %s1506
    // Predicated region
    $region42: #{lstm_forward.2} parent=1 // pred_check
      _
    $region43: #{lstm_forward.2} parent=1 // pred_check_branch
      %1509 = sbr.rel (0) target = $region45
    $region44: #{lstm_forward.2} parent=1 // pred_region
      _
    $region45: #{lstm_forward.2} parent=1 // pred_fallthru
      _
    // Predicated region
    $region46: #{lstm_forward.2} parent=1 // pred_check
      _
    $region47: #{lstm_forward.2} parent=1 // pred_check_branch
      %1511 = sbr.rel (0) target = $region49
    $region48: #{lstm_forward.2} parent=1 // pred_region
      %s1512 = ssub.s32 0, 0
      %s1513 = smul.u32 8, %s1512
    $region49: #{lstm_forward.2} parent=1 // pred_fallthru
      _
    // Predicated region
    $region50: #{lstm_forward.2} parent=1 // pred_check
      _
    $region51: #{lstm_forward.2} parent=1 // pred_check_branch
      %1515 = sbr.rel (0) target = $region53
    $region52: #{lstm_forward.2} parent=1 // pred_region
      _
    $region53: #{lstm_forward.2} parent=1 // pred_fallthru
      _
    // Predicated region
    $region54: #{lstm_forward.2} parent=1 // pred_check
      _
    $region55: #{lstm_forward.2} parent=1 // pred_check_branch
      %1517 = sbr.rel (0) target = $region57
    $region56: #{lstm_forward.2} parent=1 // pred_region
      _
    $region57: #{lstm_forward.2} parent=1 // pred_fallthru
      _
    // Predicated region
    $region58: #{lstm_forward.2} parent=1 // pred_check
      _
    $region59: #{lstm_forward.2} parent=1 // pred_check_branch
      %1519 = sbr.rel (0) target = $region61
    $region60: #{lstm_forward.2} parent=1 // pred_region
      _
    $region61: #{lstm_forward.2} parent=1 // pred_fallthru
      _
    // Predicated region
    $region62: #{lstm_forward.2} parent=1 // pred_check
      _
    $region63: #{lstm_forward.2} parent=1 // pred_check_branch
      %1521 = sbr.rel (0) target = $region65
    $region64: #{lstm_forward.2} parent=1 // pred_region
      %s1522 = ssub.s32 0, 0
      %s1523 = smul.u32 8, %s1522
      %p1524 = scmp.lt.s32.totalorder %s1523, 7
      %s1525 = scalar_select %p1524, %s1523, 7
      %s1526 = scalar_lea.vmem %s6, %s1525
    $region65: #{lstm_forward.2} parent=1 // pred_fallthru
      _
    // Predicated region
    $region66: #{lstm_forward.2} parent=1 // pred_check
      _
    $region67: #{lstm_forward.2} parent=1 // pred_check_branch
      %1528 = sbr.rel (0) target = $region69
    $region68: #{lstm_forward.2} parent=1 // pred_region
      _
    $region69: #{lstm_forward.2} parent=1 // pred_fallthru
      _
    // Predicated region
    $region70: #{lstm_forward.2} parent=1 // pred_check
      _
    $region71: #{lstm_forward.2} parent=1 // pred_check_branch
      %1530 = sbr.rel (0) target = $region73
    $region72: #{lstm_forward.2} parent=1 // pred_region
      _
    $region73: #{lstm_forward.2} parent=1 // pred_fallthru
      _
    %1531 = vsyncpa [#allocation9], 1
    %1532 = vsyncpa [#allocation11], 1

// kernel: lstm_forward.3
$region0: #{lstm_forward.3}
  #allocation0 [shape = 'u32[]', space=smem, size = 0x4, offset = 0x4, fixed_abs, tag = 'smem constant byte address 0x4 - core index']
  #allocation1 [shape = 'u32[72,128]{1,0:T(1,128)}', space=vmem, size = 0x9000, scoped, tag = 'internal scratch']
  #allocation2 [shape = 'f32[2,32]{1,0:T(2,128)}', space=vmem, size = 0x400, scoped, tag = 'scratch operand']
  #allocation3 [shape = 'f32[2,32]{1,0:T(2,128)}', space=vmem, size = 0x400, scoped, tag = 'scratch operand']
  #allocation4 [shape = 'f32[2,32]{1,0:T(2,128)}', space=vmem, size = 0x400, scoped, tag = 'scratch operand']
  #allocation5 [shape = 'f32[2,32]{1,0:T(2,128)}', space=vmem, size = 0x400, scoped, tag = 'scratch operand']
  #allocation6 [shape = 'f32[8,2,128]{2,1,0:T(2,128)}', space=vmem, size = 0x2000, scoped, tag = 'scratch operand']
  #allocation7 [shape = 'f32[8,2,128]{2,1,0:T(2,128)}', space=vmem, size = 0x2000, scoped, tag = 'scratch operand']
  %s0 = inlined_call_operand.vmem [shape: bf16[8,2,32], index: 0, kind: input, shape index: {}, may-alias: {0,2}]
  %s1 = inlined_call_operand.vmem [shape: bf16[8,2,32], index: 1, kind: input, shape index: {}, may-alias: {1,3}]
  %s2 = inlined_call_operand.vmem [shape: bf16[8,2,32], index: 2, kind: input, shape index: {}, may-alias: {0,2}]
  %s3 = inlined_call_operand.vmem [shape: bf16[8,2,32], index: 3, kind: input, shape index: {}, may-alias: {1,3}]
  %s4 = inlined_call_operand.vmem [shape: bf16[2,32,128], index: 4, kind: input, shape index: {}]
  %s5 = inlined_call_operand.hbm [shape: bf16[2,32,128], index: 5, kind: input, shape index: {}]
  %s6 = inlined_call_operand.hbm [shape: bf16[2,32,128], index: 6, kind: input, shape index: {}]
  %s7 = inlined_call_operand.vmem [shape: f32[2,1,128], index: 7, kind: input, shape index: {}]
  %s8 = inlined_call_operand.vmem [shape: bf16[8,2,32], index: 8, kind: output, shape index: {0}]
  %s9 = inlined_call_operand.vmem [shape: bf16[8,2,32], index: 9, kind: output, shape index: {1}]
  %s10 = inlined_call_operand.vmem [shape: f32[2,2,32], index: 10, kind: output, shape index: {2}]
  %s11 = inlined_call_operand.vmem [shape: f32[2,2,32], index: 11, kind: output, shape index: {3}]
  %12 = xla_tuple %s8, %s9, %s10, %s11
  %s13 = sld [smem:[#allocation0]]
  $region82: #{lstm_forward.3} parent=0
    _
  %s15 = ssub.s32 1, %s13
  %s16 = scalar_select 0, %s15, %s13
  $region1: #{lstm_forward.3} parent=0
    #allocation8 [shape = 'u8[16384]{0}', space=vmem, size = 0x4000, scoped, tag = 'input window, operand 5, single buffered']
    #allocation9 [shape = 's32[1]{0}', space=sflag, size = 0x4, scoped, tag = 'scoped memory for lstm_forward.3']
    #allocation10 [shape = 'u8[16384]{0}', space=vmem, size = 0x4000, scoped, tag = 'input window, operand 6, single buffered']
    #allocation11 [shape = 's32[1]{0}', space=sflag, size = 0x4, scoped, tag = 'scoped memory for lstm_forward.3']
    %17 = vsyncpa [#allocation9], 0
    %18 = vsyncpa [#allocation11], 0
    // Predicated region
    $region2: #{lstm_forward.3} parent=1 // pred_check
      _
    $region3: #{lstm_forward.3} parent=1 // pred_check_branch
      %20 = sbr.rel (0) target = $region5
    $region4: #{lstm_forward.3} parent=1 // pred_region
      _
    $region5: #{lstm_forward.3} parent=1 // pred_fallthru
      _
    // Predicated region
    $region6: #{lstm_forward.3} parent=1 // pred_check
      _
    $region7: #{lstm_forward.3} parent=1 // pred_check_branch
      %22 = sbr.rel (0) target = $region9
    $region8: #{lstm_forward.3} parent=1 // pred_region
      _
    $region9: #{lstm_forward.3} parent=1 // pred_fallthru
      _
    // Predicated region
    $region10: #{lstm_forward.3} parent=1 // pred_check
      _
    $region11: #{lstm_forward.3} parent=1 // pred_check_branch
      %24 = sbr.rel (0) target = $region13
    $region12: #{lstm_forward.3} parent=1 // pred_region
      %s25 = ssub.s32 0, 0
      %s26 = smul.u32 8, %s25
      %p27 = scmp.lt.s32.totalorder %s26, 7
      %s28 = scalar_select %p27, %s26, 7
      %s29 = scalar_lea.vmem %s2, %s28
      %s30 = ssub.s32 0, 0
      %s31 = smul.u32 8, %s30
    $region13: #{lstm_forward.3} parent=1 // pred_fallthru
      _
    // Predicated region
    $region14: #{lstm_forward.3} parent=1 // pred_check
      _
    $region15: #{lstm_forward.3} parent=1 // pred_check_branch
      %33 = sbr.rel (0) target = $region17
    $region16: #{lstm_forward.3} parent=1 // pred_region
      %s34 = ssub.s32 0, 0
      %s35 = smul.u32 8, %s34
      %p36 = scmp.lt.s32.totalorder %s35, 7
      %s37 = scalar_select %p36, %s35, 7
      %s38 = scalar_lea.vmem %s3, %s37
      %s39 = ssub.s32 0, 0
      %s40 = smul.u32 8, %s39
    $region17: #{lstm_forward.3} parent=1 // pred_fallthru
      _
    // Predicated region
    $region18: #{lstm_forward.3} parent=1 // pred_check
      _
    $region19: #{lstm_forward.3} parent=1 // pred_check_branch
      %42 = sbr.rel (0) target = $region21
    $region20: #{lstm_forward.3} parent=1 // pred_region
      _
    $region21: #{lstm_forward.3} parent=1 // pred_fallthru
      _
    // Predicated region
    $region22: #{lstm_forward.3} parent=1 // pred_check
      _
    $region23: #{lstm_forward.3} parent=1 // pred_check_branch
      %44 = sbr.rel (0) target = $region25
    $region24: #{lstm_forward.3} parent=1 // pred_region
      %46 = vsyncadd [#allocation9], 0
      %s47 = sshll.u32 %s5, 4
      %s48 = int_to_ptr.hbm [resolvable:$true] %s47
      %s49 = sshll.u32 [#allocation8], 4
      %s50 = int_to_ptr.vmem [resolvable:$true] %s49
      %55 = dma.hbm_to_vmem [thread:$0]  %s48, 512, %s50, [#allocation9], 64, 64, 4
    $region25: #{lstm_forward.3} parent=1 // pred_fallthru
      _
    // Predicated region
    $region26: #{lstm_forward.3} parent=1 // pred_check
      _
    $region27: #{lstm_forward.3} parent=1 // pred_check_branch
      %57 = sbr.rel (0) target = $region29
    $region28: #{lstm_forward.3} parent=1 // pred_region
      %59 = vsyncadd [#allocation11], 0
      %s60 = sshll.u32 %s6, 4
      %s61 = int_to_ptr.hbm [resolvable:$true] %s60
      %s62 = sshll.u32 [#allocation10], 4
      %s63 = int_to_ptr.vmem [resolvable:$true] %s62
      %68 = dma.hbm_to_vmem [thread:$0]  %s61, 512, %s63, [#allocation11], 64, 64, 4
    $region29: #{lstm_forward.3} parent=1 // pred_fallthru
      _
    // Predicated region
    $region30: #{lstm_forward.3} parent=1 // pred_check
      _
    $region31: #{lstm_forward.3} parent=1 // pred_check_branch
      %70 = sbr.rel (0) target = $region33
    $region32: #{lstm_forward.3} parent=1 // pred_region
      _
    $region33: #{lstm_forward.3} parent=1 // pred_fallthru
      _
    // Predicated region
    $region34: #{lstm_forward.3} parent=1 // pred_check
      _
    $region35: #{lstm_forward.3} parent=1 // pred_check_branch
      %72 = sbr.rel (0) target = $region37
    $region36: #{lstm_forward.3} parent=1 // pred_region
      %74 = dma.done [#allocation9], 512
    $region37: #{lstm_forward.3} parent=1 // pred_fallthru
      _
    // Predicated region
    $region38: #{lstm_forward.3} parent=1 // pred_check
      _
    $region39: #{lstm_forward.3} parent=1 // pred_check_branch
      %76 = sbr.rel (0) target = $region41
    $region40: #{lstm_forward.3} parent=1 // pred_region
      %78 = dma.done [#allocation11], 512
    $region41: #{lstm_forward.3} parent=1 // pred_fallthru
      _
    %s79 = ssub.s32 0, 0
    %s80 = smul.u32 8, %s79
    %p81 = scmp.lt.s32.totalorder %s80, 7
    %s82 = scalar_select %p81, %s80, 7
    %s83 = scalar_lea.vmem %s2, %s82
    %s84 = ssub.s32 0, 0
    %s85 = smul.u32 8, %s84
    %p86 = scmp.lt.s32.totalorder %s85, 7
    %s87 = scalar_select %p86, %s85, 7
    %s88 = scalar_lea.vmem %s3, %s87
    %s89 = ssub.s32 0, 0
    %s90 = smul.u32 8, %s89
    %p91 = scmp.lt.s32.totalorder %s90, 7
    %s92 = scalar_select %p91, %s90, 7
    %s93 = scalar_lea.vmem %s9, %s92
    %s94 = ssub.s32 0, 0
    %s95 = smul.u32 8, %s94
    %p96 = scmp.lt.s32.totalorder %s95, 7
    %s97 = scalar_select %p96, %s95, 7
    %s98 = scalar_lea.vmem %s2, %s97
    %s99 = ssub.s32 0, 0
    %s100 = smul.u32 8, %s99
    %s101 = ssub.s32 0, 0
    %s102 = smul.u32 8, %s101
    %p103 = scmp.lt.s32.totalorder %s102, 7
    %s104 = scalar_select %p103, %s102, 7
    %s105 = scalar_lea.vmem %s3, %s104
    %s106 = ssub.s32 0, 0
    %s107 = smul.u32 8, %s106
    %s108 = ssub.s32 0, 0
    %s109 = smul.u32 8, %s108
    %p110 = scmp.lt.s32.totalorder %s109, 7
    %s111 = scalar_select %p110, %s109, 7
    %s112 = scalar_lea.vmem %s9, %s111
    %s113 = ssub.s32 0, 0
    %s114 = smul.u32 8, %s113
    %p116 = scmp.eq.s32.totalorder 0, 0
    // Predicated region
    $region42: #{lstm_forward.3} parent=1 // pred_check
      %p117 = pneg %p116
    $region43: #{lstm_forward.3} parent=1 // pred_check_branch
      %119 = sbr.rel (%p117) target = $region45
    $region44: #{lstm_forward.3} parent=1 // pred_region
      %vm120 = vcmask 254976
      %121 = vst.msk [vmem:[#allocation2] sm:$0x3] %vm120, 0.0
      %122 = vst.msk [vmem:[#allocation3] sm:$0x3] %vm120, 0.0
      %123 = vst.msk [vmem:[#allocation4] sm:$0x3] %vm120, 0.0
      %124 = vst.msk [vmem:[#allocation5] sm:$0x3] %vm120, 0.0
    $region45: #{lstm_forward.3} parent=1 // pred_fallthru
      _
    %v125 = vld [vmem:[%s7] sm:$0x1]
    %s126 = scalar_lea.vmem %s7, 1
    %v127 = vld [vmem:[%s126] sm:$0x1]
    %v128 = vld [vmem:[%s0] sm:$0x1]
    %v129 = vld [vmem:[%s0 + $0x1] sm:$0x1]
    %v130 = vld [vmem:[%s0 + $0x2] sm:$0x1]
    %v131 = vld [vmem:[%s0 + $0x3] sm:$0x1]
    %v132 = vld [vmem:[%s0 + $0x4] sm:$0x1]
    %v133 = vld [vmem:[%s0 + $0x5] sm:$0x1]
    %v134 = vld [vmem:[%s0 + $0x6] sm:$0x1]
    %v135 = vld [vmem:[%s0 + $0x7] sm:$0x1]
    %v136 = vld [vmem:[%s98] sm:$0x1]
    %v137 = vld [vmem:[%s98 + $0x1] sm:$0x1]
    %v138 = vld [vmem:[%s98 + $0x2] sm:$0x1]
    %v139 = vld [vmem:[%s98 + $0x3] sm:$0x1]
    %v140 = vld [vmem:[%s98 + $0x4] sm:$0x1]
    %v141 = vld [vmem:[%s98 + $0x5] sm:$0x1]
    %v142 = vld [vmem:[%s98 + $0x6] sm:$0x1]
    %v143 = vld [vmem:[%s98 + $0x7] sm:$0x1]
    %v144 = vld [vmem:[%s4] sm:$0xf]
    %v145 = vld [vmem:[%s4 + $0x4] sm:$0xf]
    %v146 = vld [vmem:[%s4 + $0x8] sm:$0xf]
    %v147 = vld [vmem:[%s4 + $0xc] sm:$0xf]
    %149 = vst [vmem:[#allocation1] ss:$9 sm:$0xff] %v128
    %s151 = scalar_lea.vmem [#allocation1], 1
    %152 = vst [vmem:[%s151] ss:$9 sm:$0xff] %v129
    %s154 = scalar_lea.vmem [#allocation1], 2
    %155 = vst [vmem:[%s154] ss:$9 sm:$0xff] %v130
    %s157 = scalar_lea.vmem [#allocation1], 3
    %158 = vst [vmem:[%s157] ss:$9 sm:$0xff] %v131
    %s160 = scalar_lea.vmem [#allocation1], 4
    %161 = vst [vmem:[%s160] ss:$9 sm:$0xff] %v132
    %s163 = scalar_lea.vmem [#allocation1], 5
    %164 = vst [vmem:[%s163] ss:$9 sm:$0xff] %v133
    %s166 = scalar_lea.vmem [#allocation1], 6
    %167 = vst [vmem:[%s166] ss:$9 sm:$0xff] %v134
    %s169 = scalar_lea.vmem [#allocation1], 7
    %170 = vst [vmem:[%s169] ss:$9 sm:$0xff] %v135
    %v171 = vld [vmem:[#allocation1] sm:$0xff]
    %v176 = vunpack.c.l.b16 %v144
    %v177 = vunpack.c.l.b16 %v145
    %v178 = vunpack.c.l.b16 %v146
    %v179 = vunpack.c.l.b16 %v147
    %v180 = vpack.c.b16 %v177, %v176
    %v181 = vpack.c.b16 %v179, %v178
    %vm184 = vcmask 261120
    %v185 = vsel %vm184, %v171, 0
    %187 = vmatpush.bf16.msra.mxu0 0
    %188 = vmatpush.bf16.msra.mxu0 0
    %189 = vmatpush.bf16.msra.mxu0 0
    %190 = vmatpush.bf16.msra.mxu0 0
    %191 = vmatpush.bf16.msra.mxu0 0
    %192 = vmatpush.bf16.msra.mxu0 0
    %193 = vmatpush.bf16.msra.mxu0 %v181
    %194 = vmatpush.bf16.msra.mxu0 %v180
    %195 = vmatmul.bf16.gmra.mxu0 %v185
    %v196 = vpop.f32.mrf.mxu0
    %v197 = vadd.f32 0.0, %v196
    %v198 = vpop.f32.mrf.mxu0
    %v199 = vadd.f32 0.0, %v198
    %200 = vdwg.mxu0
    %v202 = vperm.slane %v125, 0
    %v204 = vadd.f32 %v202, %v197
    %v205 = vadd.f32 %v202, %v199
    %s206 = scalar_lea.vmem %s4, 16
    %v207 = vld [vmem:[%s206] sm:$0xf]
    %v208 = vld [vmem:[%s206 + $0x4] sm:$0xf]
    %v209 = vld [vmem:[%s206 + $0x8] sm:$0xf]
    %v210 = vld [vmem:[%s206 + $0xc] sm:$0xf]
    %212 = vst [vmem:[#allocation1] ss:$9 sm:$0xff] %v136
    %s214 = scalar_lea.vmem [#allocation1], 1
    %215 = vst [vmem:[%s214] ss:$9 sm:$0xff] %v137
    %s217 = scalar_lea.vmem [#allocation1], 2
    %218 = vst [vmem:[%s217] ss:$9 sm:$0xff] %v138
    %s220 = scalar_lea.vmem [#allocation1], 3
    %221 = vst [vmem:[%s220] ss:$9 sm:$0xff] %v139
    %s223 = scalar_lea.vmem [#allocation1], 4
    %224 = vst [vmem:[%s223] ss:$9 sm:$0xff] %v140
    %s226 = scalar_lea.vmem [#allocation1], 5
    %227 = vst [vmem:[%s226] ss:$9 sm:$0xff] %v141
    %s229 = scalar_lea.vmem [#allocation1], 6
    %230 = vst [vmem:[%s229] ss:$9 sm:$0xff] %v142
    %s232 = scalar_lea.vmem [#allocation1], 7
    %233 = vst [vmem:[%s232] ss:$9 sm:$0xff] %v143
    %v234 = vld [vmem:[#allocation1] sm:$0xff]
    %v239 = vunpack.c.l.b16 %v207
    %v240 = vunpack.c.l.b16 %v208
    %v241 = vunpack.c.l.b16 %v209
    %v242 = vunpack.c.l.b16 %v210
    %v243 = vpack.c.b16 %v240, %v239
    %v244 = vpack.c.b16 %v242, %v241
    %v247 = vsel %vm184, %v234, 0
    %249 = vmatpush.bf16.msra.mxu0 0
    %250 = vmatpush.bf16.msra.mxu0 0
    %251 = vmatpush.bf16.msra.mxu0 0
    %252 = vmatpush.bf16.msra.mxu0 0
    %253 = vmatpush.bf16.msra.mxu0 0
    %254 = vmatpush.bf16.msra.mxu0 0
    %255 = vmatpush.bf16.msra.mxu0 %v244
    %256 = vmatpush.bf16.msra.mxu0 %v243
    %257 = vmatmul.bf16.gmra.mxu0 %v247
    %v258 = vpop.f32.mrf.mxu0
    %v259 = vadd.f32 0.0, %v258
    %v260 = vpop.f32.mrf.mxu0
    %v261 = vadd.f32 0.0, %v260
    %262 = vdwg.mxu0
    %v264 = vperm.slane %v127, 0
    %v266 = vadd.f32 %v264, %v259
    %v267 = vadd.f32 %v264, %v261
    %v268 = vld [vmem:[%s1] sm:$0x1]
    %v269 = vld [vmem:[%s1 + $0x1] sm:$0x1]
    %v270 = vld [vmem:[%s1 + $0x2] sm:$0x1]
    %v271 = vld [vmem:[%s1 + $0x3] sm:$0x1]
    %v272 = vld [vmem:[%s1 + $0x4] sm:$0x1]
    %v273 = vld [vmem:[%s1 + $0x5] sm:$0x1]
    %v274 = vld [vmem:[%s1 + $0x6] sm:$0x1]
    %v275 = vld [vmem:[%s1 + $0x7] sm:$0x1]
    %v276 = vld [vmem:[%s105] sm:$0x1]
    %v277 = vld [vmem:[%s105 + $0x1] sm:$0x1]
    %v278 = vld [vmem:[%s105 + $0x2] sm:$0x1]
    %v279 = vld [vmem:[%s105 + $0x3] sm:$0x1]
    %v280 = vld [vmem:[%s105 + $0x4] sm:$0x1]
    %v281 = vld [vmem:[%s105 + $0x5] sm:$0x1]
    %v282 = vld [vmem:[%s105 + $0x6] sm:$0x1]
    %v283 = vld [vmem:[%s105 + $0x7] sm:$0x1]
    %v284 = vld [vmem:[#allocation8] sm:$0xf]
    %v285 = vld [vmem:[#allocation8 + $0x4] sm:$0xf]
    %v286 = vld [vmem:[#allocation8 + $0x8] sm:$0xf]
    %v287 = vld [vmem:[#allocation8 + $0xc] sm:$0xf]
    %289 = vst [vmem:[#allocation1] ss:$9 sm:$0xff] %v268
    %s291 = scalar_lea.vmem [#allocation1], 1
    %292 = vst [vmem:[%s291] ss:$9 sm:$0xff] %v269
    %s294 = scalar_lea.vmem [#allocation1], 2
    %295 = vst [vmem:[%s294] ss:$9 sm:$0xff] %v270
    %s297 = scalar_lea.vmem [#allocation1], 3
    %298 = vst [vmem:[%s297] ss:$9 sm:$0xff] %v271
    %s300 = scalar_lea.vmem [#allocation1], 4
    %301 = vst [vmem:[%s300] ss:$9 sm:$0xff] %v272
    %s303 = scalar_lea.vmem [#allocation1], 5
    %304 = vst [vmem:[%s303] ss:$9 sm:$0xff] %v273
    %s306 = scalar_lea.vmem [#allocation1], 6
    %307 = vst [vmem:[%s306] ss:$9 sm:$0xff] %v274
    %s309 = scalar_lea.vmem [#allocation1], 7
    %310 = vst [vmem:[%s309] ss:$9 sm:$0xff] %v275
    %v311 = vld [vmem:[#allocation1] sm:$0xff]
    %v316 = vunpack.c.l.b16 %v284
    %v317 = vunpack.c.l.b16 %v285
    %v318 = vunpack.c.l.b16 %v286
    %v319 = vunpack.c.l.b16 %v287
    %v320 = vpack.c.b16 %v317, %v316
    %v321 = vpack.c.b16 %v319, %v318
    %v324 = vsel %vm184, %v311, 0
    %326 = vmatpush.bf16.msra.mxu0 0
    %327 = vmatpush.bf16.msra.mxu0 0
    %328 = vmatpush.bf16.msra.mxu0 0
    %329 = vmatpush.bf16.msra.mxu0 0
    %330 = vmatpush.bf16.msra.mxu0 0
    %331 = vmatpush.bf16.msra.mxu0 0
    %332 = vmatpush.bf16.msra.mxu0 %v321
    %333 = vmatpush.bf16.msra.mxu0 %v320
    %334 = vmatmul.bf16.gmra.mxu0 %v324
    %v335 = vpop.f32.mrf.mxu0
    %v336 = vadd.f32 0.0, %v335
    %v337 = vpop.f32.mrf.mxu0
    %v338 = vadd.f32 0.0, %v337
    %339 = vdwg.mxu0
    %v340 = vadd.f32 %v204, %v336
    %v341 = vadd.f32 %v205, %v338
    %s342 = scalar_lea.vmem [#allocation8], 16
    %v343 = vld [vmem:[%s342] sm:$0xf]
    %v344 = vld [vmem:[%s342 + $0x4] sm:$0xf]
    %v345 = vld [vmem:[%s342 + $0x8] sm:$0xf]
    %v346 = vld [vmem:[%s342 + $0xc] sm:$0xf]
    %348 = vst [vmem:[#allocation1] ss:$9 sm:$0xff] %v276
    %s350 = scalar_lea.vmem [#allocation1], 1
    %351 = vst [vmem:[%s350] ss:$9 sm:$0xff] %v277
    %s353 = scalar_lea.vmem [#allocation1], 2
    %354 = vst [vmem:[%s353] ss:$9 sm:$0xff] %v278
    %s356 = scalar_lea.vmem [#allocation1], 3
    %357 = vst [vmem:[%s356] ss:$9 sm:$0xff] %v279
    %s359 = scalar_lea.vmem [#allocation1], 4
    %360 = vst [vmem:[%s359] ss:$9 sm:$0xff] %v280
    %s362 = scalar_lea.vmem [#allocation1], 5
    %363 = vst [vmem:[%s362] ss:$9 sm:$0xff] %v281
    %s365 = scalar_lea.vmem [#allocation1], 6
    %366 = vst [vmem:[%s365] ss:$9 sm:$0xff] %v282
    %s368 = scalar_lea.vmem [#allocation1], 7
    %369 = vst [vmem:[%s368] ss:$9 sm:$0xff] %v283
    %v370 = vld [vmem:[#allocation1] sm:$0xff]
    %v375 = vunpack.c.l.b16 %v343
    %v376 = vunpack.c.l.b16 %v344
    %v377 = vunpack.c.l.b16 %v345
    %v378 = vunpack.c.l.b16 %v346
    %v379 = vpack.c.b16 %v376, %v375
    %v380 = vpack.c.b16 %v378, %v377
    %v383 = vsel %vm184, %v370, 0
    %385 = vmatpush.bf16.msra.mxu0 0
    %386 = vmatpush.bf16.msra.mxu0 0
    %387 = vmatpush.bf16.msra.mxu0 0
    %388 = vmatpush.bf16.msra.mxu0 0
    %389 = vmatpush.bf16.msra.mxu0 0
    %390 = vmatpush.bf16.msra.mxu0 0
    %391 = vmatpush.bf16.msra.mxu0 %v380
    %392 = vmatpush.bf16.msra.mxu0 %v379
    %393 = vmatmul.bf16.gmra.mxu0 %v383
    %v394 = vpop.f32.mrf.mxu0
    %v395 = vadd.f32 0.0, %v394
    %v396 = vpop.f32.mrf.mxu0
    %v397 = vadd.f32 0.0, %v396
    %398 = vdwg.mxu0
    %v399 = vadd.f32 %v266, %v395
    %v400 = vadd.f32 %v267, %v397
    %v403 = vrot.slane %v340, 2
    %v404 = vrot.slane %v340, 4
    %v405 = vrot.slane %v340, 6
    %v406 = vrot.slane %v341, 2
    %v407 = vrot.slane %v341, 4
    %v408 = vrot.slane %v341, 6
    %415 = vst [vmem:[#allocation6] sm:$0x3] %v340
    %416 = vst [vmem:[#allocation6 + $0x2] sm:$0x3] %v403
    %417 = vst [vmem:[#allocation6 + $0x4] sm:$0x3] %v404
    %418 = vst [vmem:[#allocation6 + $0x6] sm:$0x3] %v405
    %419 = vst [vmem:[#allocation6 + $0x8] sm:$0x3] %v341
    %420 = vst [vmem:[#allocation6 + $0xa] sm:$0x3] %v406
    %421 = vst [vmem:[#allocation6 + $0xc] sm:$0x3] %v407
    %422 = vst [vmem:[#allocation6 + $0xe] sm:$0x3] %v408
    %v425 = vrot.slane %v399, 2
    %v426 = vrot.slane %v399, 4
    %v427 = vrot.slane %v399, 6
    %v428 = vrot.slane %v400, 2
    %v429 = vrot.slane %v400, 4
    %v430 = vrot.slane %v400, 6
    %437 = vst [vmem:[#allocation7] sm:$0x3] %v399
    %438 = vst [vmem:[#allocation7 + $0x2] sm:$0x3] %v425
    %439 = vst [vmem:[#allocation7 + $0x4] sm:$0x3] %v426
    %440 = vst [vmem:[#allocation7 + $0x6] sm:$0x3] %v427
    %441 = vst [vmem:[#allocation7 + $0x8] sm:$0x3] %v400
    %442 = vst [vmem:[#allocation7 + $0xa] sm:$0x3] %v428
    %443 = vst [vmem:[#allocation7 + $0xc] sm:$0x3] %v429
    %444 = vst [vmem:[#allocation7 + $0xe] sm:$0x3] %v430
    %v445 = vld [vmem:[#allocation10] sm:$0xf]
    %v446 = vld [vmem:[#allocation10 + $0x4] sm:$0xf]
    %v447 = vld [vmem:[#allocation10 + $0x8] sm:$0xf]
    %v448 = vld [vmem:[#allocation10 + $0xc] sm:$0xf]
    %s449 = scalar_lea.vmem [#allocation10], 16
    %v450 = vld [vmem:[%s449] sm:$0xf]
    %v451 = vld [vmem:[%s449 + $0x4] sm:$0xf]
    %v452 = vld [vmem:[%s449 + $0x8] sm:$0xf]
    %v453 = vld [vmem:[%s449 + $0xc] sm:$0xf]
    %v454 = vld [vmem:[#allocation2] sm:$0x3]
    %v455 = vld [vmem:[#allocation3] sm:$0x3]
    %v456 = vld [vmem:[#allocation4] sm:$0x3]
    %v457 = vld [vmem:[#allocation5] sm:$0x3]
    %v458 = vld [vmem:[#allocation6] sm:$0x3]
    %v459 = vpack.c.bf16 %v454, %v454
    %v464 = vunpack.c.l.b16 %v445
    %v465 = vunpack.c.l.b16 %v446
    %v466 = vunpack.c.l.b16 %v447
    %v467 = vunpack.c.l.b16 %v448
    %v468 = vpack.c.b16 %v465, %v464
    %v469 = vpack.c.b16 %v467, %v466
    %v473 = vsel %vm184, %v459, 0
    %475 = vmatpush.bf16.msra.mxu0 0
    %476 = vmatpush.bf16.msra.mxu0 0
    %477 = vmatpush.bf16.msra.mxu0 0
    %478 = vmatpush.bf16.msra.mxu0 0
    %479 = vmatpush.bf16.msra.mxu0 0
    %480 = vmatpush.bf16.msra.mxu0 0
    %481 = vmatpush.bf16.msra.mxu0 %v469
    %482 = vmatpush.bf16.msra.mxu0 %v468
    %483 = vmatmul.bf16.gmra.mxu0 %v473
    %v484 = vpop.f32.mrf.mxu0
    %v485 = vadd.f32 0.0, %v484
    %v486 = vpop.f32.mrf.mxu0
    %487 = vdwg.mxu0
    %v488 = vadd.f32 %v458, %v485
    %v489 = vxor.u32 %v488, 2147483648
    %v490 = vmul.f32 %v489, 1.442695
    %v491 = vpow.pop %v490
    %v492 = vadd.f32 %v491, 1.0
    %v493 = vrcp.pop %v492
    %v494 = vmul.f32 %v492, %v493
    %v495 = vsub.f32 1.0, %v494
    %v496 = vmul.f32 %v493, %v495
    %v497 = vadd.f32 %v493, %v496
    %vm498 = vweird.f32 %v492
    %vm499 = vweird.f32 %v493
    %vm500 = vmor %vm498, %vm499
    %v501 = vsel %vm500, %v493, %v497
    %v502 = vand.u32 2147483647, %v492
    %vm503 = vcmp.eq.f32.partialorder %v502, 8.507059e+37
    %v504 = vand.u32 %v492, 2147483648
    %v505 = vor.u32 1.1754944e-38, %v504
    %v506 = vsel %vm503, %v505, %v501
    %v507 = vmul.f32 1.0, %v506
    %v508 = vtanh.pop %v488
    %510 = vrot.lane.b32.xlu0 %v455, 32
    %v511 = vpop.permute.xlu0 %510
    %v513 = vmul.f32 %v507, %v511
    %515 = vrot.lane.b32.xlu0 %v508, 32
    %v516 = vpop.permute.xlu0 %515
    %v518 = vmul.f32 %v507, %v516
    %520 = vrot.lane.b32.xlu0 %v518, 32
    %v521 = vpop.permute.xlu0 %520
    %v523 = vadd.f32 %v513, %v521
    %v524 = vtanh.pop %v523
    %526 = vrot.lane.b32.xlu0 %v524, 32
    %v527 = vpop.permute.xlu0 %526
    %v529 = vmul.f32 %v507, %v527
    %s530 = scalar_lea.vmem [#allocation7], 14
    %v531 = vld [vmem:[%s530] sm:$0x3]
    %v532 = vpack.c.bf16 %v456, %v456
    %v537 = vunpack.c.l.b16 %v450
    %v538 = vunpack.c.l.b16 %v451
    %v539 = vunpack.c.l.b16 %v452
    %v540 = vunpack.c.l.b16 %v453
    %v541 = vpack.c.b16 %v538, %v537
    %v542 = vpack.c.b16 %v540, %v539
    %v546 = vsel %vm184, %v532, 0
    %548 = vmatpush.bf16.msra.mxu0 0
    %549 = vmatpush.bf16.msra.mxu0 0
    %550 = vmatpush.bf16.msra.mxu0 0
    %551 = vmatpush.bf16.msra.mxu0 0
    %552 = vmatpush.bf16.msra.mxu0 0
    %553 = vmatpush.bf16.msra.mxu0 0
    %554 = vmatpush.bf16.msra.mxu0 %v542
    %555 = vmatpush.bf16.msra.mxu0 %v541
    %556 = vmatmul.bf16.gmra.mxu0 %v546
    %v557 = vpop.f32.mrf.mxu0
    %v558 = vadd.f32 0.0, %v557
    %v559 = vpop.f32.mrf.mxu0
    %560 = vdwg.mxu0
    %v561 = vadd.f32 %v531, %v558
    %v562 = vxor.u32 %v561, 2147483648
    %v563 = vmul.f32 %v562, 1.442695
    %v564 = vpow.pop %v563
    %v565 = vadd.f32 %v564, 1.0
    %v566 = vrcp.pop %v565
    %v567 = vmul.f32 %v565, %v566
    %v568 = vsub.f32 1.0, %v567
    %v569 = vmul.f32 %v566, %v568
    %v570 = vadd.f32 %v566, %v569
    %vm571 = vweird.f32 %v565
    %vm572 = vweird.f32 %v566
    %vm573 = vmor %vm571, %vm572
    %v574 = vsel %vm573, %v566, %v570
    %v575 = vand.u32 2147483647, %v565
    %vm576 = vcmp.eq.f32.partialorder %v575, 8.507059e+37
    %v577 = vand.u32 %v565, 2147483648
    %v578 = vor.u32 1.1754944e-38, %v577
    %v579 = vsel %vm576, %v578, %v574
    %v580 = vmul.f32 1.0, %v579
    %v581 = vtanh.pop %v561
    %583 = vrot.lane.b32.xlu0 %v457, 32
    %v584 = vpop.permute.xlu0 %583
    %v586 = vmul.f32 %v580, %v584
    %588 = vrot.lane.b32.xlu0 %v581, 32
    %v589 = vpop.permute.xlu0 %588
    %v591 = vmul.f32 %v580, %v589
    %593 = vrot.lane.b32.xlu0 %v591, 32
    %v594 = vpop.permute.xlu0 %593
    %v596 = vadd.f32 %v586, %v594
    %v597 = vtanh.pop %v596
    %599 = vrot.lane.b32.xlu0 %v597, 32
    %v600 = vpop.permute.xlu0 %599
    %v602 = vmul.f32 %v580, %v600
    %v603 = vpack.c.bf16 %v529, %v529
    %v605 = vrot.slane %v603, 3
    %vm606 = vcmask 1040384
    %v609 = vsel %vm606, %v603, %v605
    %611 = vrot.lane.b32.xlu0 %v609, 64
    %v612 = vpop.permute.xlu0 %611
    %vm614 = vcmask 253952
    %615 = vst.msk [vmem:[%s8] sm:$0x1] %vm614, %v612
    %v616 = vpack.c.bf16 %v602, %v602
    %v618 = vrot.slane %v616, 3
    %v621 = vsel %vm606, %v616, %v618
    %623 = vrot.lane.b32.xlu0 %v621, 64
    %v624 = vpop.permute.xlu0 %623
    %s626 = scalar_lea.vmem %s112, 7
    %627 = vst.msk [vmem:[%s626] sm:$0x1] %vm614, %v624
    %s628 = scalar_lea.vmem [#allocation6], 2
    %v629 = vld [vmem:[%s628] sm:$0x3]
    %v630 = vunpack.c.l.b16 %v603
    %v631 = vpack.c.b16 %v630, %v630
    %632 = vrot.lane.b32.xlu0 %v631, 64
    %v633 = vpop.permute.xlu0 %632
    %v635 = vsel %vm184, %v633, 0
    %637 = vmatpush.bf16.msra.mxu0 0
    %638 = vmatpush.bf16.msra.mxu0 0
    %639 = vmatpush.bf16.msra.mxu0 0
    %640 = vmatpush.bf16.msra.mxu0 0
    %641 = vmatpush.bf16.msra.mxu0 0
    %642 = vmatpush.bf16.msra.mxu0 0
    %643 = vmatpush.bf16.msra.mxu0 %v469
    %644 = vmatpush.bf16.msra.mxu0 %v468
    %645 = vmatmul.bf16.gmra.mxu0 %v635
    %v646 = vpop.f32.mrf.mxu0
    %v647 = vadd.f32 0.0, %v646
    %v648 = vpop.f32.mrf.mxu0
    %649 = vdwg.mxu0
    %v650 = vadd.f32 %v629, %v647
    %v651 = vxor.u32 %v650, 2147483648
    %v652 = vmul.f32 %v651, 1.442695
    %v653 = vpow.pop %v652
    %v654 = vadd.f32 %v653, 1.0
    %v655 = vrcp.pop %v654
    %v656 = vmul.f32 %v654, %v655
    %v657 = vsub.f32 1.0, %v656
    %v658 = vmul.f32 %v655, %v657
    %v659 = vadd.f32 %v655, %v658
    %vm660 = vweird.f32 %v654
    %vm661 = vweird.f32 %v655
    %vm662 = vmor %vm660, %vm661
    %v663 = vsel %vm662, %v655, %v659
    %v664 = vand.u32 2147483647, %v654
    %vm665 = vcmp.eq.f32.partialorder %v664, 8.507059e+37
    %v666 = vand.u32 %v654, 2147483648
    %v667 = vor.u32 1.1754944e-38, %v666
    %v668 = vsel %vm665, %v667, %v663
    %v669 = vmul.f32 1.0, %v668
    %v670 = vtanh.pop %v650
    %v671 = vmul.f32 %v669, %v523
    %673 = vrot.lane.b32.xlu0 %v670, 32
    %v674 = vpop.permute.xlu0 %673
    %v676 = vmul.f32 %v669, %v674
    %678 = vrot.lane.b32.xlu0 %v676, 32
    %v679 = vpop.permute.xlu0 %678
    %v681 = vadd.f32 %v671, %v679
    %v682 = vtanh.pop %v681
    %684 = vrot.lane.b32.xlu0 %v682, 32
    %v685 = vpop.permute.xlu0 %684
    %v687 = vmul.f32 %v669, %v685
    %s688 = scalar_lea.vmem [#allocation7], 12
    %v689 = vld [vmem:[%s688] sm:$0x3]
    %v690 = vunpack.c.l.b16 %v616
    %v691 = vpack.c.b16 %v690, %v690
    %692 = vrot.lane.b32.xlu0 %v691, 64
    %v693 = vpop.permute.xlu0 %692
    %v695 = vsel %vm184, %v693, 0
    %697 = vmatpush.bf16.msra.mxu0 0
    %698 = vmatpush.bf16.msra.mxu0 0
    %699 = vmatpush.bf16.msra.mxu0 0
    %700 = vmatpush.bf16.msra.mxu0 0
    %701 = vmatpush.bf16.msra.mxu0 0
    %702 = vmatpush.bf16.msra.mxu0 0
    %703 = vmatpush.bf16.msra.mxu0 %v542
    %704 = vmatpush.bf16.msra.mxu0 %v541
    %705 = vmatmul.bf16.gmra.mxu0 %v695
    %v706 = vpop.f32.mrf.mxu0
    %v707 = vadd.f32 0.0, %v706
    %v708 = vpop.f32.mrf.mxu0
    %709 = vdwg.mxu0
    %v710 = vadd.f32 %v689, %v707
    %v711 = vxor.u32 %v710, 2147483648
    %v712 = vmul.f32 %v711, 1.442695
    %v713 = vpow.pop %v712
    %v714 = vadd.f32 %v713, 1.0
    %v715 = vrcp.pop %v714
    %v716 = vmul.f32 %v714, %v715
    %v717 = vsub.f32 1.0, %v716
    %v718 = vmul.f32 %v715, %v717
    %v719 = vadd.f32 %v715, %v718
    %vm720 = vweird.f32 %v714
    %vm721 = vweird.f32 %v715
    %vm722 = vmor %vm720, %vm721
    %v723 = vsel %vm722, %v715, %v719
    %v724 = vand.u32 2147483647, %v714
    %vm725 = vcmp.eq.f32.partialorder %v724, 8.507059e+37
    %v726 = vand.u32 %v714, 2147483648
    %v727 = vor.u32 1.1754944e-38, %v726
    %v728 = vsel %vm725, %v727, %v723
    %v729 = vmul.f32 1.0, %v728
    %v730 = vtanh.pop %v710
    %v731 = vmul.f32 %v729, %v596
    %733 = vrot.lane.b32.xlu0 %v730, 32
    %v734 = vpop.permute.xlu0 %733
    %v736 = vmul.f32 %v729, %v734
    %738 = vrot.lane.b32.xlu0 %v736, 32
    %v739 = vpop.permute.xlu0 %738
    %v741 = vadd.f32 %v731, %v739
    %v742 = vtanh.pop %v741
    %744 = vrot.lane.b32.xlu0 %v742, 32
    %v745 = vpop.permute.xlu0 %744
    %v747 = vmul.f32 %v729, %v745
    %v748 = vpack.c.bf16 %v687, %v687
    %v750 = vrot.slane %v748, 3
    %v753 = vsel %vm606, %v748, %v750
    %755 = vrot.lane.b32.xlu0 %v753, 64
    %v756 = vpop.permute.xlu0 %755
    %s758 = scalar_lea.vmem %s8, 1
    %759 = vst.msk [vmem:[%s758] sm:$0x1] %vm614, %v756
    %v760 = vpack.c.bf16 %v747, %v747
    %v762 = vrot.slane %v760, 3
    %v765 = vsel %vm606, %v760, %v762
    %767 = vrot.lane.b32.xlu0 %v765, 64
    %v768 = vpop.permute.xlu0 %767
    %s770 = scalar_lea.vmem %s112, 6
    %771 = vst.msk [vmem:[%s770] sm:$0x1] %vm614, %v768
    %s772 = scalar_lea.vmem [#allocation6], 4
    %v773 = vld [vmem:[%s772] sm:$0x3]
    %v774 = vunpack.c.l.b16 %v748
    %v775 = vpack.c.b16 %v774, %v774
    %776 = vrot.lane.b32.xlu0 %v775, 64
    %v777 = vpop.permute.xlu0 %776
    %v779 = vsel %vm184, %v777, 0
    %781 = vmatpush.bf16.msra.mxu0 0
    %782 = vmatpush.bf16.msra.mxu0 0
    %783 = vmatpush.bf16.msra.mxu0 0
    %784 = vmatpush.bf16.msra.mxu0 0
    %785 = vmatpush.bf16.msra.mxu0 0
    %786 = vmatpush.bf16.msra.mxu0 0
    %787 = vmatpush.bf16.msra.mxu0 %v469
    %788 = vmatpush.bf16.msra.mxu0 %v468
    %789 = vmatmul.bf16.gmra.mxu0 %v779
    %v790 = vpop.f32.mrf.mxu0
    %v791 = vadd.f32 0.0, %v790
    %v792 = vpop.f32.mrf.mxu0
    %793 = vdwg.mxu0
    %v794 = vadd.f32 %v773, %v791
    %v795 = vxor.u32 %v794, 2147483648
    %v796 = vmul.f32 %v795, 1.442695
    %v797 = vpow.pop %v796
    %v798 = vadd.f32 %v797, 1.0
    %v799 = vrcp.pop %v798
    %v800 = vmul.f32 %v798, %v799
    %v801 = vsub.f32 1.0, %v800
    %v802 = vmul.f32 %v799, %v801
    %v803 = vadd.f32 %v799, %v802
    %vm804 = vweird.f32 %v798
    %vm805 = vweird.f32 %v799
    %vm806 = vmor %vm804, %vm805
    %v807 = vsel %vm806, %v799, %v803
    %v808 = vand.u32 2147483647, %v798
    %vm809 = vcmp.eq.f32.partialorder %v808, 8.507059e+37
    %v810 = vand.u32 %v798, 2147483648
    %v811 = vor.u32 1.1754944e-38, %v810
    %v812 = vsel %vm809, %v811, %v807
    %v813 = vmul.f32 1.0, %v812
    %v814 = vtanh.pop %v794
    %v815 = vmul.f32 %v813, %v681
    %817 = vrot.lane.b32.xlu0 %v814, 32
    %v818 = vpop.permute.xlu0 %817
    %v820 = vmul.f32 %v813, %v818
    %822 = vrot.lane.b32.xlu0 %v820, 32
    %v823 = vpop.permute.xlu0 %822
    %v825 = vadd.f32 %v815, %v823
    %v826 = vtanh.pop %v825
    %828 = vrot.lane.b32.xlu0 %v826, 32
    %v829 = vpop.permute.xlu0 %828
    %v831 = vmul.f32 %v813, %v829
    %s832 = scalar_lea.vmem [#allocation7], 10
    %v833 = vld [vmem:[%s832] sm:$0x3]
    %v834 = vunpack.c.l.b16 %v760
    %v835 = vpack.c.b16 %v834, %v834
    %836 = vrot.lane.b32.xlu0 %v835, 64
    %v837 = vpop.permute.xlu0 %836
    %v839 = vsel %vm184, %v837, 0
    %841 = vmatpush.bf16.msra.mxu0 0
    %842 = vmatpush.bf16.msra.mxu0 0
    %843 = vmatpush.bf16.msra.mxu0 0
    %844 = vmatpush.bf16.msra.mxu0 0
    %845 = vmatpush.bf16.msra.mxu0 0
    %846 = vmatpush.bf16.msra.mxu0 0
    %847 = vmatpush.bf16.msra.mxu0 %v542
    %848 = vmatpush.bf16.msra.mxu0 %v541
    %849 = vmatmul.bf16.gmra.mxu0 %v839
    %v850 = vpop.f32.mrf.mxu0
    %v851 = vadd.f32 0.0, %v850
    %v852 = vpop.f32.mrf.mxu0
    %853 = vdwg.mxu0
    %v854 = vadd.f32 %v833, %v851
    %v855 = vxor.u32 %v854, 2147483648
    %v856 = vmul.f32 %v855, 1.442695
    %v857 = vpow.pop %v856
    %v858 = vadd.f32 %v857, 1.0
    %v859 = vrcp.pop %v858
    %v860 = vmul.f32 %v858, %v859
    %v861 = vsub.f32 1.0, %v860
    %v862 = vmul.f32 %v859, %v861
    %v863 = vadd.f32 %v859, %v862
    %vm864 = vweird.f32 %v858
    %vm865 = vweird.f32 %v859
    %vm866 = vmor %vm864, %vm865
    %v867 = vsel %vm866, %v859, %v863
    %v868 = vand.u32 2147483647, %v858
    %vm869 = vcmp.eq.f32.partialorder %v868, 8.507059e+37
    %v870 = vand.u32 %v858, 2147483648
    %v871 = vor.u32 1.1754944e-38, %v870
    %v872 = vsel %vm869, %v871, %v867
    %v873 = vmul.f32 1.0, %v872
    %v874 = vtanh.pop %v854
    %v875 = vmul.f32 %v873, %v741
    %877 = vrot.lane.b32.xlu0 %v874, 32
    %v878 = vpop.permute.xlu0 %877
    %v880 = vmul.f32 %v873, %v878
    %882 = vrot.lane.b32.xlu0 %v880, 32
    %v883 = vpop.permute.xlu0 %882
    %v885 = vadd.f32 %v875, %v883
    %v886 = vtanh.pop %v885
    %888 = vrot.lane.b32.xlu0 %v886, 32
    %v889 = vpop.permute.xlu0 %888
    %v891 = vmul.f32 %v873, %v889
    %v892 = vpack.c.bf16 %v831, %v831
    %v894 = vrot.slane %v892, 3
    %v897 = vsel %vm606, %v892, %v894
    %899 = vrot.lane.b32.xlu0 %v897, 64
    %v900 = vpop.permute.xlu0 %899
    %s902 = scalar_lea.vmem %s8, 2
    %903 = vst.msk [vmem:[%s902] sm:$0x1] %vm614, %v900
    %v904 = vpack.c.bf16 %v891, %v891
    %v906 = vrot.slane %v904, 3
    %v909 = vsel %vm606, %v904, %v906
    %911 = vrot.lane.b32.xlu0 %v909, 64
    %v912 = vpop.permute.xlu0 %911
    %s914 = scalar_lea.vmem %s112, 5
    %915 = vst.msk [vmem:[%s914] sm:$0x1] %vm614, %v912
    %s916 = scalar_lea.vmem [#allocation6], 6
    %v917 = vld [vmem:[%s916] sm:$0x3]
    %v918 = vunpack.c.l.b16 %v892
    %v919 = vpack.c.b16 %v918, %v918
    %920 = vrot.lane.b32.xlu0 %v919, 64
    %v921 = vpop.permute.xlu0 %920
    %v923 = vsel %vm184, %v921, 0
    %925 = vmatpush.bf16.msra.mxu0 0
    %926 = vmatpush.bf16.msra.mxu0 0
    %927 = vmatpush.bf16.msra.mxu0 0
    %928 = vmatpush.bf16.msra.mxu0 0
    %929 = vmatpush.bf16.msra.mxu0 0
    %930 = vmatpush.bf16.msra.mxu0 0
    %931 = vmatpush.bf16.msra.mxu0 %v469
    %932 = vmatpush.bf16.msra.mxu0 %v468
    %933 = vmatmul.bf16.gmra.mxu0 %v923
    %v934 = vpop.f32.mrf.mxu0
    %v935 = vadd.f32 0.0, %v934
    %v936 = vpop.f32.mrf.mxu0
    %937 = vdwg.mxu0
    %v938 = vadd.f32 %v917, %v935
    %v939 = vxor.u32 %v938, 2147483648
    %v940 = vmul.f32 %v939, 1.442695
    %v941 = vpow.pop %v940
    %v942 = vadd.f32 %v941, 1.0
    %v943 = vrcp.pop %v942
    %v944 = vmul.f32 %v942, %v943
    %v945 = vsub.f32 1.0, %v944
    %v946 = vmul.f32 %v943, %v945
    %v947 = vadd.f32 %v943, %v946
    %vm948 = vweird.f32 %v942
    %vm949 = vweird.f32 %v943
    %vm950 = vmor %vm948, %vm949
    %v951 = vsel %vm950, %v943, %v947
    %v952 = vand.u32 2147483647, %v942
    %vm953 = vcmp.eq.f32.partialorder %v952, 8.507059e+37
    %v954 = vand.u32 %v942, 2147483648
    %v955 = vor.u32 1.1754944e-38, %v954
    %v956 = vsel %vm953, %v955, %v951
    %v957 = vmul.f32 1.0, %v956
    %v958 = vtanh.pop %v938
    %v959 = vmul.f32 %v957, %v825
    %961 = vrot.lane.b32.xlu0 %v958, 32
    %v962 = vpop.permute.xlu0 %961
    %v964 = vmul.f32 %v957, %v962
    %966 = vrot.lane.b32.xlu0 %v964, 32
    %v967 = vpop.permute.xlu0 %966
    %v969 = vadd.f32 %v959, %v967
    %v970 = vtanh.pop %v969
    %972 = vrot.lane.b32.xlu0 %v970, 32
    %v973 = vpop.permute.xlu0 %972
    %v975 = vmul.f32 %v957, %v973
    %s976 = scalar_lea.vmem [#allocation7], 8
    %v977 = vld [vmem:[%s976] sm:$0x3]
    %v978 = vunpack.c.l.b16 %v904
    %v979 = vpack.c.b16 %v978, %v978
    %980 = vrot.lane.b32.xlu0 %v979, 64
    %v981 = vpop.permute.xlu0 %980
    %v983 = vsel %vm184, %v981, 0
    %985 = vmatpush.bf16.msra.mxu0 0
    %986 = vmatpush.bf16.msra.mxu0 0
    %987 = vmatpush.bf16.msra.mxu0 0
    %988 = vmatpush.bf16.msra.mxu0 0
    %989 = vmatpush.bf16.msra.mxu0 0
    %990 = vmatpush.bf16.msra.mxu0 0
    %991 = vmatpush.bf16.msra.mxu0 %v542
    %992 = vmatpush.bf16.msra.mxu0 %v541
    %993 = vmatmul.bf16.gmra.mxu0 %v983
    %v994 = vpop.f32.mrf.mxu0
    %v995 = vadd.f32 0.0, %v994
    %v996 = vpop.f32.mrf.mxu0
    %997 = vdwg.mxu0
    %v998 = vadd.f32 %v977, %v995
    %v999 = vxor.u32 %v998, 2147483648
    %v1000 = vmul.f32 %v999, 1.442695
    %v1001 = vpow.pop %v1000
    %v1002 = vadd.f32 %v1001, 1.0
    %v1003 = vrcp.pop %v1002
    %v1004 = vmul.f32 %v1002, %v1003
    %v1005 = vsub.f32 1.0, %v1004
    %v1006 = vmul.f32 %v1003, %v1005
    %v1007 = vadd.f32 %v1003, %v1006
    %vm1008 = vweird.f32 %v1002
    %vm1009 = vweird.f32 %v1003
    %vm1010 = vmor %vm1008, %vm1009
    %v1011 = vsel %vm1010, %v1003, %v1007
    %v1012 = vand.u32 2147483647, %v1002
    %vm1013 = vcmp.eq.f32.partialorder %v1012, 8.507059e+37
    %v1014 = vand.u32 %v1002, 2147483648
    %v1015 = vor.u32 1.1754944e-38, %v1014
    %v1016 = vsel %vm1013, %v1015, %v1011
    %v1017 = vmul.f32 1.0, %v1016
    %v1018 = vtanh.pop %v998
    %v1019 = vmul.f32 %v1017, %v885
    %1021 = vrot.lane.b32.xlu0 %v1018, 32
    %v1022 = vpop.permute.xlu0 %1021
    %v1024 = vmul.f32 %v1017, %v1022
    %1026 = vrot.lane.b32.xlu0 %v1024, 32
    %v1027 = vpop.permute.xlu0 %1026
    %v1029 = vadd.f32 %v1019, %v1027
    %v1030 = vtanh.pop %v1029
    %1032 = vrot.lane.b32.xlu0 %v1030, 32
    %v1033 = vpop.permute.xlu0 %1032
    %v1035 = vmul.f32 %v1017, %v1033
    %v1036 = vpack.c.bf16 %v975, %v975
    %v1038 = vrot.slane %v1036, 3
    %v1041 = vsel %vm606, %v1036, %v1038
    %1043 = vrot.lane.b32.xlu0 %v1041, 64
    %v1044 = vpop.permute.xlu0 %1043
    %s1046 = scalar_lea.vmem %s8, 3
    %1047 = vst.msk [vmem:[%s1046] sm:$0x1] %vm614, %v1044
    %v1048 = vpack.c.bf16 %v1035, %v1035
    %v1050 = vrot.slane %v1048, 3
    %v1053 = vsel %vm606, %v1048, %v1050
    %1055 = vrot.lane.b32.xlu0 %v1053, 64
    %v1056 = vpop.permute.xlu0 %1055
    %s1058 = scalar_lea.vmem %s112, 4
    %1059 = vst.msk [vmem:[%s1058] sm:$0x1] %vm614, %v1056
    %s1060 = scalar_lea.vmem [#allocation6], 8
    %v1061 = vld [vmem:[%s1060] sm:$0x3]
    %v1062 = vunpack.c.l.b16 %v1036
    %v1063 = vpack.c.b16 %v1062, %v1062
    %1064 = vrot.lane.b32.xlu0 %v1063, 64
    %v1065 = vpop.permute.xlu0 %1064
    %v1067 = vsel %vm184, %v1065, 0
    %1069 = vmatpush.bf16.msra.mxu0 0
    %1070 = vmatpush.bf16.msra.mxu0 0
    %1071 = vmatpush.bf16.msra.mxu0 0
    %1072 = vmatpush.bf16.msra.mxu0 0
    %1073 = vmatpush.bf16.msra.mxu0 0
    %1074 = vmatpush.bf16.msra.mxu0 0
    %1075 = vmatpush.bf16.msra.mxu0 %v469
    %1076 = vmatpush.bf16.msra.mxu0 %v468
    %1077 = vmatmul.bf16.gmra.mxu0 %v1067
    %v1078 = vpop.f32.mrf.mxu0
    %v1079 = vadd.f32 0.0, %v1078
    %v1080 = vpop.f32.mrf.mxu0
    %1081 = vdwg.mxu0
    %v1082 = vadd.f32 %v1061, %v1079
    %v1083 = vxor.u32 %v1082, 2147483648
    %v1084 = vmul.f32 %v1083, 1.442695
    %v1085 = vpow.pop %v1084
    %v1086 = vadd.f32 %v1085, 1.0
    %v1087 = vrcp.pop %v1086
    %v1088 = vmul.f32 %v1086, %v1087
    %v1089 = vsub.f32 1.0, %v1088
    %v1090 = vmul.f32 %v1087, %v1089
    %v1091 = vadd.f32 %v1087, %v1090
    %vm1092 = vweird.f32 %v1086
    %vm1093 = vweird.f32 %v1087
    %vm1094 = vmor %vm1092, %vm1093
    %v1095 = vsel %vm1094, %v1087, %v1091
    %v1096 = vand.u32 2147483647, %v1086
    %vm1097 = vcmp.eq.f32.partialorder %v1096, 8.507059e+37
    %v1098 = vand.u32 %v1086, 2147483648
    %v1099 = vor.u32 1.1754944e-38, %v1098
    %v1100 = vsel %vm1097, %v1099, %v1095
    %v1101 = vmul.f32 1.0, %v1100
    %v1102 = vtanh.pop %v1082
    %v1103 = vmul.f32 %v1101, %v969
    %1105 = vrot.lane.b32.xlu0 %v1102, 32
    %v1106 = vpop.permute.xlu0 %1105
    %v1108 = vmul.f32 %v1101, %v1106
    %1110 = vrot.lane.b32.xlu0 %v1108, 32
    %v1111 = vpop.permute.xlu0 %1110
    %v1113 = vadd.f32 %v1103, %v1111
    %v1114 = vtanh.pop %v1113
    %1116 = vrot.lane.b32.xlu0 %v1114, 32
    %v1117 = vpop.permute.xlu0 %1116
    %v1119 = vmul.f32 %v1101, %v1117
    %s1120 = scalar_lea.vmem [#allocation7], 6
    %v1121 = vld [vmem:[%s1120] sm:$0x3]
    %v1122 = vunpack.c.l.b16 %v1048
    %v1123 = vpack.c.b16 %v1122, %v1122
    %1124 = vrot.lane.b32.xlu0 %v1123, 64
    %v1125 = vpop.permute.xlu0 %1124
    %v1127 = vsel %vm184, %v1125, 0
    %1129 = vmatpush.bf16.msra.mxu0 0
    %1130 = vmatpush.bf16.msra.mxu0 0
    %1131 = vmatpush.bf16.msra.mxu0 0
    %1132 = vmatpush.bf16.msra.mxu0 0
    %1133 = vmatpush.bf16.msra.mxu0 0
    %1134 = vmatpush.bf16.msra.mxu0 0
    %1135 = vmatpush.bf16.msra.mxu0 %v542
    %1136 = vmatpush.bf16.msra.mxu0 %v541
    %1137 = vmatmul.bf16.gmra.mxu0 %v1127
    %v1138 = vpop.f32.mrf.mxu0
    %v1139 = vadd.f32 0.0, %v1138
    %v1140 = vpop.f32.mrf.mxu0
    %1141 = vdwg.mxu0
    %v1142 = vadd.f32 %v1121, %v1139
    %v1143 = vxor.u32 %v1142, 2147483648
    %v1144 = vmul.f32 %v1143, 1.442695
    %v1145 = vpow.pop %v1144
    %v1146 = vadd.f32 %v1145, 1.0
    %v1147 = vrcp.pop %v1146
    %v1148 = vmul.f32 %v1146, %v1147
    %v1149 = vsub.f32 1.0, %v1148
    %v1150 = vmul.f32 %v1147, %v1149
    %v1151 = vadd.f32 %v1147, %v1150
    %vm1152 = vweird.f32 %v1146
    %vm1153 = vweird.f32 %v1147
    %vm1154 = vmor %vm1152, %vm1153
    %v1155 = vsel %vm1154, %v1147, %v1151
    %v1156 = vand.u32 2147483647, %v1146
    %vm1157 = vcmp.eq.f32.partialorder %v1156, 8.507059e+37
    %v1158 = vand.u32 %v1146, 2147483648
    %v1159 = vor.u32 1.1754944e-38, %v1158
    %v1160 = vsel %vm1157, %v1159, %v1155
    %v1161 = vmul.f32 1.0, %v1160
    %v1162 = vtanh.pop %v1142
    %v1163 = vmul.f32 %v1161, %v1029
    %1165 = vrot.lane.b32.xlu0 %v1162, 32
    %v1166 = vpop.permute.xlu0 %1165
    %v1168 = vmul.f32 %v1161, %v1166
    %1170 = vrot.lane.b32.xlu0 %v1168, 32
    %v1171 = vpop.permute.xlu0 %1170
    %v1173 = vadd.f32 %v1163, %v1171
    %v1174 = vtanh.pop %v1173
    %1176 = vrot.lane.b32.xlu0 %v1174, 32
    %v1177 = vpop.permute.xlu0 %1176
    %v1179 = vmul.f32 %v1161, %v1177
    %v1180 = vpack.c.bf16 %v1119, %v1119
    %v1182 = vrot.slane %v1180, 3
    %v1185 = vsel %vm606, %v1180, %v1182
    %1187 = vrot.lane.b32.xlu0 %v1185, 64
    %v1188 = vpop.permute.xlu0 %1187
    %s1190 = scalar_lea.vmem %s8, 4
    %1191 = vst.msk [vmem:[%s1190] sm:$0x1] %vm614, %v1188
    %v1192 = vpack.c.bf16 %v1179, %v1179
    %v1194 = vrot.slane %v1192, 3
    %v1197 = vsel %vm606, %v1192, %v1194
    %1199 = vrot.lane.b32.xlu0 %v1197, 64
    %v1200 = vpop.permute.xlu0 %1199
    %s1202 = scalar_lea.vmem %s112, 3
    %1203 = vst.msk [vmem:[%s1202] sm:$0x1] %vm614, %v1200
    %s1204 = scalar_lea.vmem [#allocation6], 10
    %v1205 = vld [vmem:[%s1204] sm:$0x3]
    %v1206 = vunpack.c.l.b16 %v1180
    %v1207 = vpack.c.b16 %v1206, %v1206
    %1208 = vrot.lane.b32.xlu0 %v1207, 64
    %v1209 = vpop.permute.xlu0 %1208
    %v1211 = vsel %vm184, %v1209, 0
    %1213 = vmatpush.bf16.msra.mxu0 0
    %1214 = vmatpush.bf16.msra.mxu0 0
    %1215 = vmatpush.bf16.msra.mxu0 0
    %1216 = vmatpush.bf16.msra.mxu0 0
    %1217 = vmatpush.bf16.msra.mxu0 0
    %1218 = vmatpush.bf16.msra.mxu0 0
    %1219 = vmatpush.bf16.msra.mxu0 %v469
    %1220 = vmatpush.bf16.msra.mxu0 %v468
    %1221 = vmatmul.bf16.gmra.mxu0 %v1211
    %v1222 = vpop.f32.mrf.mxu0
    %v1223 = vadd.f32 0.0, %v1222
    %v1224 = vpop.f32.mrf.mxu0
    %1225 = vdwg.mxu0
    %v1226 = vadd.f32 %v1205, %v1223
    %v1227 = vxor.u32 %v1226, 2147483648
    %v1228 = vmul.f32 %v1227, 1.442695
    %v1229 = vpow.pop %v1228
    %v1230 = vadd.f32 %v1229, 1.0
    %v1231 = vrcp.pop %v1230
    %v1232 = vmul.f32 %v1230, %v1231
    %v1233 = vsub.f32 1.0, %v1232
    %v1234 = vmul.f32 %v1231, %v1233
    %v1235 = vadd.f32 %v1231, %v1234
    %vm1236 = vweird.f32 %v1230
    %vm1237 = vweird.f32 %v1231
    %vm1238 = vmor %vm1236, %vm1237
    %v1239 = vsel %vm1238, %v1231, %v1235
    %v1240 = vand.u32 2147483647, %v1230
    %vm1241 = vcmp.eq.f32.partialorder %v1240, 8.507059e+37
    %v1242 = vand.u32 %v1230, 2147483648
    %v1243 = vor.u32 1.1754944e-38, %v1242
    %v1244 = vsel %vm1241, %v1243, %v1239
    %v1245 = vmul.f32 1.0, %v1244
    %v1246 = vtanh.pop %v1226
    %v1247 = vmul.f32 %v1245, %v1113
    %1249 = vrot.lane.b32.xlu0 %v1246, 32
    %v1250 = vpop.permute.xlu0 %1249
    %v1252 = vmul.f32 %v1245, %v1250
    %1254 = vrot.lane.b32.xlu0 %v1252, 32
    %v1255 = vpop.permute.xlu0 %1254
    %v1257 = vadd.f32 %v1247, %v1255
    %v1258 = vtanh.pop %v1257
    %1260 = vrot.lane.b32.xlu0 %v1258, 32
    %v1261 = vpop.permute.xlu0 %1260
    %v1263 = vmul.f32 %v1245, %v1261
    %s1264 = scalar_lea.vmem [#allocation7], 4
    %v1265 = vld [vmem:[%s1264] sm:$0x3]
    %v1266 = vunpack.c.l.b16 %v1192
    %v1267 = vpack.c.b16 %v1266, %v1266
    %1268 = vrot.lane.b32.xlu0 %v1267, 64
    %v1269 = vpop.permute.xlu0 %1268
    %v1271 = vsel %vm184, %v1269, 0
    %1273 = vmatpush.bf16.msra.mxu0 0
    %1274 = vmatpush.bf16.msra.mxu0 0
    %1275 = vmatpush.bf16.msra.mxu0 0
    %1276 = vmatpush.bf16.msra.mxu0 0
    %1277 = vmatpush.bf16.msra.mxu0 0
    %1278 = vmatpush.bf16.msra.mxu0 0
    %1279 = vmatpush.bf16.msra.mxu0 %v542
    %1280 = vmatpush.bf16.msra.mxu0 %v541
    %1281 = vmatmul.bf16.gmra.mxu0 %v1271
    %v1282 = vpop.f32.mrf.mxu0
    %v1283 = vadd.f32 0.0, %v1282
    %v1284 = vpop.f32.mrf.mxu0
    %1285 = vdwg.mxu0
    %v1286 = vadd.f32 %v1265, %v1283
    %v1287 = vxor.u32 %v1286, 2147483648
    %v1288 = vmul.f32 %v1287, 1.442695
    %v1289 = vpow.pop %v1288
    %v1290 = vadd.f32 %v1289, 1.0
    %v1291 = vrcp.pop %v1290
    %v1292 = vmul.f32 %v1290, %v1291
    %v1293 = vsub.f32 1.0, %v1292
    %v1294 = vmul.f32 %v1291, %v1293
    %v1295 = vadd.f32 %v1291, %v1294
    %vm1296 = vweird.f32 %v1290
    %vm1297 = vweird.f32 %v1291
    %vm1298 = vmor %vm1296, %vm1297
    %v1299 = vsel %vm1298, %v1291, %v1295
    %v1300 = vand.u32 2147483647, %v1290
    %vm1301 = vcmp.eq.f32.partialorder %v1300, 8.507059e+37
    %v1302 = vand.u32 %v1290, 2147483648
    %v1303 = vor.u32 1.1754944e-38, %v1302
    %v1304 = vsel %vm1301, %v1303, %v1299
    %v1305 = vmul.f32 1.0, %v1304
    %v1306 = vtanh.pop %v1286
    %v1307 = vmul.f32 %v1305, %v1173
    %1309 = vrot.lane.b32.xlu0 %v1306, 32
    %v1310 = vpop.permute.xlu0 %1309
    %v1312 = vmul.f32 %v1305, %v1310
    %1314 = vrot.lane.b32.xlu0 %v1312, 32
    %v1315 = vpop.permute.xlu0 %1314
    %v1317 = vadd.f32 %v1307, %v1315
    %v1318 = vtanh.pop %v1317
    %1320 = vrot.lane.b32.xlu0 %v1318, 32
    %v1321 = vpop.permute.xlu0 %1320
    %v1323 = vmul.f32 %v1305, %v1321
    %v1324 = vpack.c.bf16 %v1263, %v1263
    %v1326 = vrot.slane %v1324, 3
    %v1329 = vsel %vm606, %v1324, %v1326
    %1331 = vrot.lane.b32.xlu0 %v1329, 64
    %v1332 = vpop.permute.xlu0 %1331
    %s1334 = scalar_lea.vmem %s8, 5
    %1335 = vst.msk [vmem:[%s1334] sm:$0x1] %vm614, %v1332
    %v1336 = vpack.c.bf16 %v1323, %v1323
    %v1338 = vrot.slane %v1336, 3
    %v1341 = vsel %vm606, %v1336, %v1338
    %1343 = vrot.lane.b32.xlu0 %v1341, 64
    %v1344 = vpop.permute.xlu0 %1343
    %s1346 = scalar_lea.vmem %s112, 2
    %1347 = vst.msk [vmem:[%s1346] sm:$0x1] %vm614, %v1344
    %s1348 = scalar_lea.vmem [#allocation6], 12
    %v1349 = vld [vmem:[%s1348] sm:$0x3]
    %v1350 = vunpack.c.l.b16 %v1324
    %v1351 = vpack.c.b16 %v1350, %v1350
    %1352 = vrot.lane.b32.xlu0 %v1351, 64
    %v1353 = vpop.permute.xlu0 %1352
    %v1355 = vsel %vm184, %v1353, 0
    %1357 = vmatpush.bf16.msra.mxu0 0
    %1358 = vmatpush.bf16.msra.mxu0 0
    %1359 = vmatpush.bf16.msra.mxu0 0
    %1360 = vmatpush.bf16.msra.mxu0 0
    %1361 = vmatpush.bf16.msra.mxu0 0
    %1362 = vmatpush.bf16.msra.mxu0 0
    %1363 = vmatpush.bf16.msra.mxu0 %v469
    %1364 = vmatpush.bf16.msra.mxu0 %v468
    %1365 = vmatmul.bf16.gmra.mxu0 %v1355
    %v1366 = vpop.f32.mrf.mxu0
    %v1367 = vadd.f32 0.0, %v1366
    %v1368 = vpop.f32.mrf.mxu0
    %1369 = vdwg.mxu0
    %v1370 = vadd.f32 %v1349, %v1367
    %v1371 = vxor.u32 %v1370, 2147483648
    %v1372 = vmul.f32 %v1371, 1.442695
    %v1373 = vpow.pop %v1372
    %v1374 = vadd.f32 %v1373, 1.0
    %v1375 = vrcp.pop %v1374
    %v1376 = vmul.f32 %v1374, %v1375
    %v1377 = vsub.f32 1.0, %v1376
    %v1378 = vmul.f32 %v1375, %v1377
    %v1379 = vadd.f32 %v1375, %v1378
    %vm1380 = vweird.f32 %v1374
    %vm1381 = vweird.f32 %v1375
    %vm1382 = vmor %vm1380, %vm1381
    %v1383 = vsel %vm1382, %v1375, %v1379
    %v1384 = vand.u32 2147483647, %v1374
    %vm1385 = vcmp.eq.f32.partialorder %v1384, 8.507059e+37
    %v1386 = vand.u32 %v1374, 2147483648
    %v1387 = vor.u32 1.1754944e-38, %v1386
    %v1388 = vsel %vm1385, %v1387, %v1383
    %v1389 = vmul.f32 1.0, %v1388
    %v1390 = vtanh.pop %v1370
    %v1391 = vmul.f32 %v1389, %v1257
    %1393 = vrot.lane.b32.xlu0 %v1390, 32
    %v1394 = vpop.permute.xlu0 %1393
    %v1396 = vmul.f32 %v1389, %v1394
    %1398 = vrot.lane.b32.xlu0 %v1396, 32
    %v1399 = vpop.permute.xlu0 %1398
    %v1401 = vadd.f32 %v1391, %v1399
    %v1402 = vtanh.pop %v1401
    %1404 = vrot.lane.b32.xlu0 %v1402, 32
    %v1405 = vpop.permute.xlu0 %1404
    %v1407 = vmul.f32 %v1389, %v1405
    %s1408 = scalar_lea.vmem [#allocation7], 2
    %v1409 = vld [vmem:[%s1408] sm:$0x3]
    %v1410 = vunpack.c.l.b16 %v1336
    %v1411 = vpack.c.b16 %v1410, %v1410
    %1412 = vrot.lane.b32.xlu0 %v1411, 64
    %v1413 = vpop.permute.xlu0 %1412
    %v1415 = vsel %vm184, %v1413, 0
    %1417 = vmatpush.bf16.msra.mxu0 0
    %1418 = vmatpush.bf16.msra.mxu0 0
    %1419 = vmatpush.bf16.msra.mxu0 0
    %1420 = vmatpush.bf16.msra.mxu0 0
    %1421 = vmatpush.bf16.msra.mxu0 0
    %1422 = vmatpush.bf16.msra.mxu0 0
    %1423 = vmatpush.bf16.msra.mxu0 %v542
    %1424 = vmatpush.bf16.msra.mxu0 %v541
    %1425 = vmatmul.bf16.gmra.mxu0 %v1415
    %v1426 = vpop.f32.mrf.mxu0
    %v1427 = vadd.f32 0.0, %v1426
    %v1428 = vpop.f32.mrf.mxu0
    %1429 = vdwg.mxu0
    %v1430 = vadd.f32 %v1409, %v1427
    %v1431 = vxor.u32 %v1430, 2147483648
    %v1432 = vmul.f32 %v1431, 1.442695
    %v1433 = vpow.pop %v1432
    %v1434 = vadd.f32 %v1433, 1.0
    %v1435 = vrcp.pop %v1434
    %v1436 = vmul.f32 %v1434, %v1435
    %v1437 = vsub.f32 1.0, %v1436
    %v1438 = vmul.f32 %v1435, %v1437
    %v1439 = vadd.f32 %v1435, %v1438
    %vm1440 = vweird.f32 %v1434
    %vm1441 = vweird.f32 %v1435
    %vm1442 = vmor %vm1440, %vm1441
    %v1443 = vsel %vm1442, %v1435, %v1439
    %v1444 = vand.u32 2147483647, %v1434
    %vm1445 = vcmp.eq.f32.partialorder %v1444, 8.507059e+37
    %v1446 = vand.u32 %v1434, 2147483648
    %v1447 = vor.u32 1.1754944e-38, %v1446
    %v1448 = vsel %vm1445, %v1447, %v1443
    %v1449 = vmul.f32 1.0, %v1448
    %v1450 = vtanh.pop %v1430
    %v1451 = vmul.f32 %v1449, %v1317
    %1453 = vrot.lane.b32.xlu0 %v1450, 32
    %v1454 = vpop.permute.xlu0 %1453
    %v1456 = vmul.f32 %v1449, %v1454
    %1458 = vrot.lane.b32.xlu0 %v1456, 32
    %v1459 = vpop.permute.xlu0 %1458
    %v1461 = vadd.f32 %v1451, %v1459
    %v1462 = vtanh.pop %v1461
    %1464 = vrot.lane.b32.xlu0 %v1462, 32
    %v1465 = vpop.permute.xlu0 %1464
    %v1467 = vmul.f32 %v1449, %v1465
    %v1468 = vpack.c.bf16 %v1407, %v1407
    %v1470 = vrot.slane %v1468, 3
    %v1473 = vsel %vm606, %v1468, %v1470
    %1475 = vrot.lane.b32.xlu0 %v1473, 64
    %v1476 = vpop.permute.xlu0 %1475
    %s1478 = scalar_lea.vmem %s8, 6
    %1479 = vst.msk [vmem:[%s1478] sm:$0x1] %vm614, %v1476
    %v1480 = vpack.c.bf16 %v1467, %v1467
    %v1482 = vrot.slane %v1480, 3
    %v1485 = vsel %vm606, %v1480, %v1482
    %1487 = vrot.lane.b32.xlu0 %v1485, 64
    %v1488 = vpop.permute.xlu0 %1487
    %s1490 = scalar_lea.vmem %s112, 1
    %1491 = vst.msk [vmem:[%s1490] sm:$0x1] %vm614, %v1488
    %s1492 = scalar_lea.vmem [#allocation6], 14
    %v1493 = vld [vmem:[%s1492] sm:$0x3]
    %v1494 = vunpack.c.l.b16 %v1468
    %v1495 = vpack.c.b16 %v1494, %v1494
    %1496 = vrot.lane.b32.xlu0 %v1495, 64
    %v1497 = vpop.permute.xlu0 %1496
    %v1499 = vsel %vm184, %v1497, 0
    %1501 = vmatpush.bf16.msra.mxu0 0
    %1502 = vmatpush.bf16.msra.mxu0 0
    %1503 = vmatpush.bf16.msra.mxu0 0
    %1504 = vmatpush.bf16.msra.mxu0 0
    %1505 = vmatpush.bf16.msra.mxu0 0
    %1506 = vmatpush.bf16.msra.mxu0 0
    %1507 = vmatpush.bf16.msra.mxu0 %v469
    %1508 = vmatpush.bf16.msra.mxu0 %v468
    %1509 = vmatmul.bf16.gmra.mxu0 %v1499
    %v1510 = vpop.f32.mrf.mxu0
    %v1511 = vadd.f32 0.0, %v1510
    %v1512 = vpop.f32.mrf.mxu0
    %1513 = vdwg.mxu0
    %v1514 = vadd.f32 %v1493, %v1511
    %v1515 = vxor.u32 %v1514, 2147483648
    %v1516 = vmul.f32 %v1515, 1.442695
    %v1517 = vpow.pop %v1516
    %v1518 = vadd.f32 %v1517, 1.0
    %v1519 = vrcp.pop %v1518
    %v1520 = vmul.f32 %v1518, %v1519
    %v1521 = vsub.f32 1.0, %v1520
    %v1522 = vmul.f32 %v1519, %v1521
    %v1523 = vadd.f32 %v1519, %v1522
    %vm1524 = vweird.f32 %v1518
    %vm1525 = vweird.f32 %v1519
    %vm1526 = vmor %vm1524, %vm1525
    %v1527 = vsel %vm1526, %v1519, %v1523
    %v1528 = vand.u32 2147483647, %v1518
    %vm1529 = vcmp.eq.f32.partialorder %v1528, 8.507059e+37
    %v1530 = vand.u32 %v1518, 2147483648
    %v1531 = vor.u32 1.1754944e-38, %v1530
    %v1532 = vsel %vm1529, %v1531, %v1527
    %v1533 = vmul.f32 1.0, %v1532
    %v1534 = vtanh.pop %v1514
    %v1535 = vmul.f32 %v1533, %v1401
    %1537 = vrot.lane.b32.xlu0 %v1534, 32
    %v1538 = vpop.permute.xlu0 %1537
    %v1540 = vmul.f32 %v1533, %v1538
    %1542 = vrot.lane.b32.xlu0 %v1540, 32
    %v1543 = vpop.permute.xlu0 %1542
    %v1545 = vadd.f32 %v1535, %v1543
    %v1546 = vtanh.pop %v1545
    %1548 = vrot.lane.b32.xlu0 %v1546, 32
    %v1549 = vpop.permute.xlu0 %1548
    %v1551 = vmul.f32 %v1533, %v1549
    %v1552 = vld [vmem:[#allocation7] sm:$0x3]
    %v1553 = vunpack.c.l.b16 %v1480
    %v1554 = vpack.c.b16 %v1553, %v1553
    %1555 = vrot.lane.b32.xlu0 %v1554, 64
    %v1556 = vpop.permute.xlu0 %1555
    %v1558 = vsel %vm184, %v1556, 0
    %1560 = vmatpush.bf16.msra.mxu0 0
    %1561 = vmatpush.bf16.msra.mxu0 0
    %1562 = vmatpush.bf16.msra.mxu0 0
    %1563 = vmatpush.bf16.msra.mxu0 0
    %1564 = vmatpush.bf16.msra.mxu0 0
    %1565 = vmatpush.bf16.msra.mxu0 0
    %1566 = vmatpush.bf16.msra.mxu0 %v542
    %1567 = vmatpush.bf16.msra.mxu0 %v541
    %1568 = vmatmul.bf16.gmra.mxu0 %v1558
    %v1569 = vpop.f32.mrf.mxu0
    %v1570 = vadd.f32 0.0, %v1569
    %v1571 = vpop.f32.mrf.mxu0
    %1572 = vdwg.mxu0
    %v1573 = vadd.f32 %v1552, %v1570
    %v1574 = vxor.u32 %v1573, 2147483648
    %v1575 = vmul.f32 %v1574, 1.442695
    %v1576 = vpow.pop %v1575
    %v1577 = vadd.f32 %v1576, 1.0
    %v1578 = vrcp.pop %v1577
    %v1579 = vmul.f32 %v1577, %v1578
    %v1580 = vsub.f32 1.0, %v1579
    %v1581 = vmul.f32 %v1578, %v1580
    %v1582 = vadd.f32 %v1578, %v1581
    %vm1583 = vweird.f32 %v1577
    %vm1584 = vweird.f32 %v1578
    %vm1585 = vmor %vm1583, %vm1584
    %v1586 = vsel %vm1585, %v1578, %v1582
    %v1587 = vand.u32 2147483647, %v1577
    %vm1588 = vcmp.eq.f32.partialorder %v1587, 8.507059e+37
    %v1589 = vand.u32 %v1577, 2147483648
    %v1590 = vor.u32 1.1754944e-38, %v1589
    %v1591 = vsel %vm1588, %v1590, %v1586
    %v1592 = vmul.f32 1.0, %v1591
    %v1593 = vtanh.pop %v1573
    %v1594 = vmul.f32 %v1592, %v1461
    %1596 = vrot.lane.b32.xlu0 %v1593, 32
    %v1597 = vpop.permute.xlu0 %1596
    %v1599 = vmul.f32 %v1592, %v1597
    %1601 = vrot.lane.b32.xlu0 %v1599, 32
    %v1602 = vpop.permute.xlu0 %1601
    %v1604 = vadd.f32 %v1594, %v1602
    %v1605 = vtanh.pop %v1604
    %1607 = vrot.lane.b32.xlu0 %v1605, 32
    %v1608 = vpop.permute.xlu0 %1607
    %v1610 = vmul.f32 %v1592, %v1608
    %v1611 = vpack.c.bf16 %v1551, %v1551
    %v1613 = vrot.slane %v1611, 3
    %v1616 = vsel %vm606, %v1611, %v1613
    %1618 = vrot.lane.b32.xlu0 %v1616, 64
    %v1619 = vpop.permute.xlu0 %1618
    %s1621 = scalar_lea.vmem %s8, 7
    %1622 = vst.msk [vmem:[%s1621] sm:$0x1] %vm614, %v1619
    %v1623 = vpack.c.bf16 %v1610, %v1610
    %v1625 = vrot.slane %v1623, 3
    %v1628 = vsel %vm606, %v1623, %v1625
    %1630 = vrot.lane.b32.xlu0 %v1628, 64
    %v1631 = vpop.permute.xlu0 %1630
    %1633 = vst.msk [vmem:[%s112] sm:$0x1] %vm614, %v1631
    %1635 = vrot.lane.b32.xlu0 %v1551, 64
    %v1636 = vpop.permute.xlu0 %1635
    %vm1638 = vcmask 254976
    %1639 = vst.msk [vmem:[#allocation2] sm:$0x3] %vm1638, %v1636
    %1641 = vrot.lane.b32.xlu0 %v1545, 96
    %v1642 = vpop.permute.xlu0 %1641
    %1644 = vst.msk [vmem:[#allocation3] sm:$0x3] %vm1638, %v1642
    %1646 = vrot.lane.b32.xlu0 %v1610, 64
    %v1647 = vpop.permute.xlu0 %1646
    %1649 = vst.msk [vmem:[#allocation4] sm:$0x3] %vm1638, %v1647
    %1651 = vrot.lane.b32.xlu0 %v1604, 96
    %v1652 = vpop.permute.xlu0 %1651
    %1654 = vst.msk [vmem:[#allocation5] sm:$0x3] %vm1638, %v1652
    // Predicated region
    $region46: #{lstm_forward.3} parent=1 // pred_check
      %p1655 = pneg %p116
    $region47: #{lstm_forward.3} parent=1 // pred_check_branch
      %1657 = sbr.rel (%p1655) target = $region49
    $region48: #{lstm_forward.3} parent=1 // pred_region
      %1658 = vst.msk [vmem:[%s10] sm:$0x3] %vm1638, %v1636
      %s1659 = scalar_lea.vmem %s10, 2
      %1660 = vst.msk [vmem:[%s1659] sm:$0x3] %vm1638, %v1647
      %1661 = vst.msk [vmem:[%s11] sm:$0x3] %vm1638, %v1642
      %s1662 = scalar_lea.vmem %s11, 2
      %1663 = vst.msk [vmem:[%s1662] sm:$0x3] %vm1638, %v1652
    $region49: #{lstm_forward.3} parent=1 // pred_fallthru
      _
    %s1664 = ssub.s32 0, 0
    %s1665 = smul.u32 8, %s1664
    %p1666 = scmp.lt.s32.totalorder %s1665, 7
    %s1667 = scalar_select %p1666, %s1665, 7
    %s1668 = scalar_lea.vmem %s9, %s1667
    // Predicated region
    $region50: #{lstm_forward.3} parent=1 // pred_check
      _
    $region51: #{lstm_forward.3} parent=1 // pred_check_branch
      %1670 = sbr.rel (0) target = $region53
    $region52: #{lstm_forward.3} parent=1 // pred_region
      _
    $region53: #{lstm_forward.3} parent=1 // pred_fallthru
      _
    // Predicated region
    $region54: #{lstm_forward.3} parent=1 // pred_check
      _
    $region55: #{lstm_forward.3} parent=1 // pred_check_branch
      %1672 = sbr.rel (0) target = $region57
    $region56: #{lstm_forward.3} parent=1 // pred_region
      %s1673 = ssub.s32 0, 0
      %s1674 = smul.u32 8, %s1673
    $region57: #{lstm_forward.3} parent=1 // pred_fallthru
      _
    // Predicated region
    $region58: #{lstm_forward.3} parent=1 // pred_check
      _
    $region59: #{lstm_forward.3} parent=1 // pred_check_branch
      %1676 = sbr.rel (0) target = $region61
    $region60: #{lstm_forward.3} parent=1 // pred_region
      _
    $region61: #{lstm_forward.3} parent=1 // pred_fallthru
      _
    // Predicated region
    $region62: #{lstm_forward.3} parent=1 // pred_check
      _
    $region63: #{lstm_forward.3} parent=1 // pred_check_branch
      %1678 = sbr.rel (0) target = $region65
    $region64: #{lstm_forward.3} parent=1 // pred_region
      _
    $region65: #{lstm_forward.3} parent=1 // pred_fallthru
      _
    // Predicated region
    $region66: #{lstm_forward.3} parent=1 // pred_check
      _
    $region67: #{lstm_forward.3} parent=1 // pred_check_branch
      %1680 = sbr.rel (0) target = $region69
    $region68: #{lstm_forward.3} parent=1 // pred_region
      _
    $region69: #{lstm_forward.3} parent=1 // pred_fallthru
      _
    // Predicated region
    $region70: #{lstm_forward.3} parent=1 // pred_check
      _
    $region71: #{lstm_forward.3} parent=1 // pred_check_branch
      %1682 = sbr.rel (0) target = $region73
    $region72: #{lstm_forward.3} parent=1 // pred_region
      %s1683 = ssub.s32 0, 0
      %s1684 = smul.u32 8, %s1683
      %p1685 = scmp.lt.s32.totalorder %s1684, 7
      %s1686 = scalar_select %p1685, %s1684, 7
      %s1687 = scalar_lea.vmem %s9, %s1686
    $region73: #{lstm_forward.3} parent=1 // pred_fallthru
      _
    // Predicated region
    $region74: #{lstm_forward.3} parent=1 // pred_check
      _
    $region75: #{lstm_forward.3} parent=1 // pred_check_branch
      %1689 = sbr.rel (0) target = $region77
    $region76: #{lstm_forward.3} parent=1 // pred_region
      _
    $region77: #{lstm_forward.3} parent=1 // pred_fallthru
      _
    // Predicated region
    $region78: #{lstm_forward.3} parent=1 // pred_check
      _
    $region79: #{lstm_forward.3} parent=1 // pred_check_branch
      %1691 = sbr.rel (0) target = $region81
    $region80: #{lstm_forward.3} parent=1 // pred_region
      _
    $region81: #{lstm_forward.3} parent=1 // pred_fallthru
      _
    %1692 = vsyncpa [#allocation9], 1
    %1693 = vsyncpa [#allocation11], 1

</llo_original>
